<compile_context>
chip_gen: v5e
topology: v5e:2x2
jax: 0.10.0
libtpu: 0.0.40
codegen_flags: <defaults>
</compile_context>

<pallas_src>
import functools

import jax
import jax.numpy as jnp
from jax.experimental import pallas as pl
from jax.experimental.pallas import tpu as pltpu

EPS = 1e-5                 # nn.BatchNorm2d default eps
LANE = 128                 # pad channel / matmul-N dims to multiples of 128 lanes
SUBLANE = 16               # bf16 sublane granule for M-dim blocks
MAX_TM, MAX_TN, MAX_TK = 256, 256, 512
MAX_TC_BN = 512
VMEM_LIMIT_BYTES = 32 * 1024 * 1024


# ----------------------------------------------------------------------------
# Small helpers
# ----------------------------------------------------------------------------
def _round_up(x, m):
    return (x + m - 1) // m * m


def _cpad(c):
    return _round_up(c, LANE)


def _pick_tile(dim, max_tile, granule):
    """Largest multiple of `granule` <= max_tile that divides `dim`."""
    t = min(max_tile, dim)
    t = (t // granule) * granule
    while dim % t:
        t -= granule
    return t


# ----------------------------------------------------------------------------
# Pallas kernels
# ----------------------------------------------------------------------------
def _mm_stats_kernel(p_ref, w_ref, o_ref, st_ref, acc_ref, *, k_steps):
    """o = patches @ W (bf16 x bf16 -> f32 acc); fused per-tile BN statistics."""
    k = pl.program_id(2)

    @pl.when(k == 0)
    def _():
        acc_ref[...] = jnp.zeros_like(acc_ref)

    acc_ref[...] += jnp.dot(p_ref[...], w_ref[...],
                            preferred_element_type=jnp.float32)

    @pl.when(k == k_steps - 1)
    def _():
        acc = acc_ref[...]
        o_ref[...] = acc.astype(o_ref.dtype)
        # Per-(M-tile, N-tile) partial column sum / sum-of-squares for BN.
        s = jnp.sum(acc, axis=0, keepdims=True)            # (1, tn)
        ss = jnp.sum(acc * acc, axis=0, keepdims=True)     # (1, tn)
        row = jax.lax.broadcasted_iota(jnp.int32, (8, acc.shape[1]), 0)
        st_ref[...] = jnp.where(row == 0, s, jnp.where(row == 1, ss, 0.0))


def _mm_bias_tanh_kernel(p_ref, w_ref, b_ref, o_ref, acc_ref, *, k_steps):
    """o = tanh(patches @ W + bias).  Used for the final 7x7 conv."""
    k = pl.program_id(2)

    @pl.when(k == 0)
    def _():
        acc_ref[...] = jnp.zeros_like(acc_ref)

    acc_ref[...] += jnp.dot(p_ref[...], w_ref[...],
                            preferred_element_type=jnp.float32)

    @pl.when(k == k_steps - 1)
    def _():
        o_ref[...] = jnp.tanh(acc_ref[...] + b_ref[...]).astype(o_ref.dtype)


def _bn_apply_kernel(x_ref, sc_ref, sh_ref, o_ref, *, relu):
    y = x_ref[...].astype(jnp.float32) * sc_ref[...] + sh_ref[...]
    if relu:
        y = jnp.maximum(y, 0.0)
    o_ref[...] = y.astype(o_ref.dtype)


def _bn_apply_res_kernel(x_ref, r_ref, sc_ref, sh_ref, o_ref):
    y = x_ref[...].astype(jnp.float32) * sc_ref[...] + sh_ref[...]
    o_ref[...] = (r_ref[...].astype(jnp.float32) + y).astype(o_ref.dtype)


# ----------------------------------------------------------------------------
# Kernel wrappers (tiling, padding, pallas_call)
# ----------------------------------------------------------------------------
def matmul_conv(patches, w_mat, *, bias=None, tanh=False, want_stats=True,
                out_dtype=jnp.bfloat16):
    """Tiled MXU matmul on bf16 operands with f32 accumulation.

    patches: (M, K) bf16;  w_mat: (K, Np) bf16 with Np a multiple of 128.
    Returns (y (Mp, Np), stats (gm*8, Np) or None).  stats rows 8*i+0 / 8*i+1
    hold the per-M-tile column sum / sum-of-squares of the f32 accumulator.
    """
    M, K = patches.shape
    Kw, Np = w_mat.shape
    assert K == Kw and Np % LANE == 0

    Mp = _round_up(M, SUBLANE)
    Kp = _round_up(K, LANE)
    tm = _pick_tile(Mp, MAX_TM, SUBLANE)
    tn = _pick_tile(Np, MAX_TN, LANE)
    tk = _pick_tile(Kp, MAX_TK, LANE)
    gm, gn, gk = Mp // tm, Np // tn, Kp // tk

    if Mp != M or Kp != K:
        patches = jnp.pad(patches, ((0, Mp - M), (0, Kp - K)))
    if Kp != K:
        w_mat = jnp.pad(w_mat, ((0, Kp - K), (0, 0)))

    cost = pl.CostEstimate(
        flops=2 * Mp * Np * Kp,
        transcendentals=(Mp * Np) if tanh else 0,
        bytes_accessed=(Mp * Kp + Kp * Np) * 2
        + Mp * Np * jnp.dtype(out_dtype).itemsize)
    cparams = pltpu.CompilerParams(
        dimension_semantics=("parallel", "parallel", "arbitrary"),
        vmem_limit_bytes=VMEM_LIMIT_BYTES)

    in_specs = [
        pl.BlockSpec((tm, tk), lambda i, j, k: (i, k)),
        pl.BlockSpec((tk, tn), lambda i, j, k: (k, j)),
    ]
    inputs = [patches, w_mat]
    if bias is not None:
        in_specs.append(pl.BlockSpec((1, tn), lambda i, j, k: (0, j)))
        inputs.append(bias.reshape(1, Np).astype(jnp.float32))

    if want_stats:
        assert bias is None and not tanh
        y, stats = pl.pallas_call(
            functools.partial(_mm_stats_kernel, k_steps=gk),
            grid=(gm, gn, gk),
            in_specs=in_specs,
            out_specs=(pl.BlockSpec((tm, tn), lambda i, j, k: (i, j)),
                       pl.BlockSpec((8, tn), lambda i, j, k: (i, j))),
            out_shape=(jax.ShapeDtypeStruct((Mp, Np), out_dtype),
                       jax.ShapeDtypeStruct((gm * 8, Np), jnp.float32)),
            scratch_shapes=[pltpu.VMEM((tm, tn), jnp.float32)],
            compiler_params=cparams,
            cost_estimate=cost,
        )(*inputs)
        return y, stats

    assert bias is not None and tanh
    y = pl.pallas_call(
        functools.partial(_mm_bias_tanh_kernel, k_steps=gk),
        grid=(gm, gn, gk),
        in_specs=in_specs,
        out_specs=pl.BlockSpec((tm, tn), lambda i, j, k: (i, j)),
        out_shape=jax.ShapeDtypeStruct((Mp, Np), out_dtype),
        scratch_shapes=[pltpu.VMEM((tm, tn), jnp.float32)],
        compiler_params=cparams,
        cost_estimate=cost,
    )(*inputs)
    return y, None


def bn_apply(x_flat, scale, shift, *, relu=False, res_flat=None,
             out_dtype=jnp.bfloat16):
    """Tiled affine BN apply: y = x*scale + shift (+res | relu)."""
    Mp, Cp = x_flat.shape
    tm = _pick_tile(Mp, MAX_TM, SUBLANE)
    tc = _pick_tile(Cp, MAX_TC_BN, LANE)
    grid = (Mp // tm, Cp // tc)
    cparams = pltpu.CompilerParams(
        dimension_semantics=("parallel", "parallel"),
        vmem_limit_bytes=VMEM_LIMIT_BYTES)
    sc = scale.reshape(1, Cp).astype(jnp.float32)
    sh = shift.reshape(1, Cp).astype(jnp.float32)
    x_spec = pl.BlockSpec((tm, tc), lambda i, j: (i, j))
    v_spec = pl.BlockSpec((1, tc), lambda i, j: (0, j))
    out_shape = jax.ShapeDtypeStruct((Mp, Cp), out_dtype)
    if res_flat is None:
        return pl.pallas_call(
            functools.partial(_bn_apply_kernel, relu=relu),
            grid=grid,
            in_specs=[x_spec, v_spec, v_spec],
            out_specs=x_spec,
            out_shape=out_shape,
            compiler_params=cparams,
        )(x_flat, sc, sh)
    return pl.pallas_call(
        _bn_apply_res_kernel,
        grid=grid,
        in_specs=[x_spec, x_spec, v_spec, v_spec],
        out_specs=x_spec,
        out_shape=out_shape,
        compiler_params=cparams,
    )(x_flat, res_flat, sc, sh)


def _bn_scale_shift(stats, gamma_p, beta_p, count):
    """Reduce fused per-tile stats to per-channel scale/shift (tiny JAX ops)."""
    st = stats.reshape(-1, 8, stats.shape[-1])
    s = jnp.sum(st[:, 0, :], axis=0)
    ss = jnp.sum(st[:, 1, :], axis=0)
    mean = s / count
    var = jnp.maximum(ss / count - mean * mean, 0.0)   # biased var, guard >= 0
    inv = jax.lax.rsqrt(var + EPS)
    scale = gamma_p * inv
    shift = beta_p - mean * scale
    return scale, shift


# ----------------------------------------------------------------------------
# Plain-JAX glue: im2col + conv wrappers
# ----------------------------------------------------------------------------
def _extract_patches(x, kh, kw, stride):
    """x: (N,H,W,C) already padded -> (N*Ho*Wo, kh*kw*C) ordered (di, dj, c)."""
    N, H, W, C = x.shape
    Ho = (H - kh) // stride + 1
    Wo = (W - kw) // stride + 1
    cols = []
    for di in range(kh):
        for dj in range(kw):
            cols.append(x[:, di:di + (Ho - 1) * stride + 1:stride,
                            dj:dj + (Wo - 1) * stride + 1:stride, :])
    patches = jnp.concatenate(cols, axis=-1)
    return patches.reshape(N * Ho * Wo, kh * kw * C), (N, Ho, Wo)


def conv2d(x_nhwc, w, *, stride=1, padding=0, pad_mode="zero",
           bias=None, tanh=False, want_stats=True, out_dtype=jnp.bfloat16):
    """x_nhwc: (N,H,W,C) bf16 (C may be lane-padded); w: (Cout, Cin, kh, kw) f32.

    Returns (y_flat (Mp, cpad(Cout)), (N, Ho, Wo, M), stats-or-None).
    """
    cout, cin_w, kh, kw = w.shape
    assert x_nhwc.shape[-1] >= cin_w
    if x_nhwc.shape[-1] > cin_w:       # drop zero-padded channels before im2col
        x_nhwc = x_nhwc[..., :cin_w]
    if padding > 0:
        mode = "reflect" if pad_mode == "reflect" else "constant"
        x_nhwc = jnp.pad(
            x_nhwc, ((0, 0), (padding, padding), (padding, padding), (0, 0)),
            mode=mode)
    patches, (N, Ho, Wo) = _extract_patches(x_nhwc, kh, kw, stride)
    M = N * Ho * Wo

    np_out = _cpad(cout)
    w_hwio = jnp.transpose(w, (2, 3, 1, 0))                     # (kh,kw,Cin,Cout)
    w_hwio = jnp.pad(w_hwio, ((0, 0), (0, 0), (0, 0), (0, np_out - cout)))
    w_mat = w_hwio.reshape(kh * kw * cin_w, np_out).astype(jnp.bfloat16)
    bias_p = jnp.pad(bias, (0, np_out - cout)) if bias is not None else None

    y, stats = matmul_conv(patches.astype(jnp.bfloat16), w_mat,
                           bias=bias_p, tanh=tanh, want_stats=want_stats,
                           out_dtype=out_dtype)
    return y, (N, Ho, Wo, M), stats


def conv_bn_act(x_nhwc, w, gamma, beta, *, stride=1, padding=0,
                pad_mode="zero", relu=True, res_nhwc=None):
    """Conv (no bias) + training-mode BatchNorm (+ReLU | +residual-add)."""
    y, (N, Ho, Wo, M), stats = conv2d(
        x_nhwc, w, stride=stride, padding=padding, pad_mode=pad_mode,
        want_stats=True)
    Cp = y.shape[1]
    gamma_p = jnp.pad(gamma, (0, Cp - gamma.shape[0]))
    beta_p = jnp.pad(beta, (0, Cp - beta.shape[0]))
    scale, shift = _bn_scale_shift(stats, gamma_p, beta_p, M)

    res_flat = None
    if res_nhwc is not None:
        res_flat = res_nhwc.reshape(M, Cp)
        if y.shape[0] != M:
            res_flat = jnp.pad(res_flat, ((0, y.shape[0] - M), (0, 0)))
    out = bn_apply(y, scale, shift, relu=relu, res_flat=res_flat)
    return out[:M].reshape(N, Ho, Wo, Cp)


def conv_transpose_bn_relu(x_nhwc, w_t, gamma, beta):
    """ConvTranspose2d(k=3, s=2, p=1, op=1) + BN + ReLU via the stride^2
    sub-filter decomposition (no zero-dilated input, ~4x less MXU work)."""
    cin_w, cout, kh, kw = w_t.shape
    assert kh == 3 and kw == 3
    N, H, W, _ = x_nhwc.shape
    wf = jnp.transpose(w_t, (1, 0, 2, 3))          # forward layout (cout,cin,ky,kx)

    # Parity sub-kernels (derived from out[o] = sum_{2i-1+k=o} x[i] w[k]):
    w_ee = wf[:, :, 1:2, 1:2]                                               # 1x1
    w_eo = jnp.stack([wf[:, :, 1, 2], wf[:, :, 1, 0]], axis=-1)[:, :, None, :]   # 1x2
    w_oe = jnp.stack([wf[:, :, 2, 1], wf[:, :, 0, 1]], axis=-1)[:, :, :, None]   # 2x1
    w_oo = jnp.stack(
        [jnp.stack([wf[:, :, 2, 2], wf[:, :, 2, 0]], axis=-1),
         jnp.stack([wf[:, :, 0, 2], wf[:, :, 0, 0]], axis=-1)], axis=-2)          # 2x2

    x_r = jnp.pad(x_nhwc, ((0, 0), (0, 0), (0, 1), (0, 0)))     # +1 col right
    x_b = jnp.pad(x_nhwc, ((0, 0), (0, 1), (0, 0), (0, 0)))     # +1 row bottom
    x_rb = jnp.pad(x_nhwc, ((0, 0), (0, 1), (0, 1), (0, 0)))

    y_ee, _, st_ee = conv2d(x_nhwc, w_ee, want_stats=True)
    y_eo, _, st_eo = conv2d(x_r, w_eo, want_stats=True)
    y_oe, _, st_oe = conv2d(x_b, w_oe, want_stats=True)
    y_oo, _, st_oo = conv2d(x_rb, w_oo, want_stats=True)

    Cp = y_ee.shape[1]
    M_sub = N * H * W
    count = 4 * M_sub                                   # true output element rows
    stats = jnp.concatenate([st_ee, st_eo, st_oe, st_oo], axis=0)
    gamma_p = jnp.pad(gamma, (0, Cp - gamma.shape[0]))
    beta_p = jnp.pad(beta, (0, Cp - beta.shape[0]))
    scale, shift = _bn_scale_shift(stats, gamma_p, beta_p, count)

    subs = []
    for y in (y_ee, y_eo, y_oe, y_oo):
        o = bn_apply(y, scale, shift, relu=True)
        subs.append(o[:M_sub].reshape(N, H, W, Cp))
    y_ee, y_eo, y_oe, y_oo = subs

    # Interleave parities: out[n, 2i+py, 2j+px, c].
    top = jnp.stack([y_ee, y_eo], axis=3)               # (N, H, W, 2, C)
    bot = jnp.stack([y_oe, y_oo], axis=3)
    full = jnp.stack([top, bot], axis=2)                # (N, H, 2, W, 2, C)
    return full.reshape(N, 2 * H, 2 * W, Cp)


# ----------------------------------------------------------------------------
# Parameters (deterministic synthetic init, PyTorch layouts) and forward pass
# ----------------------------------------------------------------------------
def init_params(key, input_nc, output_nc, ngf, n_blocks):
    params = {}

    def conv_w(key, cout, cin, k):
        return jax.random.normal(key, (cout, cin, k, k), jnp.float32) * 0.05

    def bn(key, c):
        kg, kb = jax.random.split(key)
        return (1.0 + 0.01 * jax.random.normal(kg, (c,), jnp.float32),
                0.01 * jax.random.normal(kb, (c,), jnp.float32))

    keys = iter(jax.random.split(key, 64))
    params["c0_w"] = conv_w(next(keys), ngf, input_nc, 7)      # bias=False (BN)
    params["bn0"] = bn(next(keys), ngf)
    for i in range(2):
        mult = 2 ** i
        params[f"down{i}_w"] = conv_w(next(keys), ngf * mult * 2, ngf * mult, 3)
        params[f"down{i}_bn"] = bn(next(keys), ngf * mult * 2)
    d = ngf * 4
    for b in range(n_blocks):
        params[f"blk{b}_w1"] = conv_w(next(keys), d, d, 3)
        params[f"blk{b}_bn1"] = bn(next(keys), d)
        params[f"blk{b}_w2"] = conv_w(next(keys), d, d, 3)
        params[f"blk{b}_bn2"] = bn(next(keys), d)
    for i in range(2):
        mult = 2 ** (2 - i)
        cin, cout = ngf * mult, ngf * mult // 2
        params[f"up{i}_w"] = jax.random.normal(
            next(keys), (cin, cout, 3, 3), jnp.float32) * 0.05  # ConvTranspose layout
        params[f"up{i}_bn"] = bn(next(keys), cout)
    params["cf_w"] = conv_w(next(keys), output_nc, ngf, 7)
    params["cf_b"] = 0.01 * jax.random.normal(next(keys), (output_nc,),
                                              jnp.float32)
    return params


def resnet_generator_forward(x_nchw, params, n_blocks):
    x = jnp.transpose(x_nchw, (0, 2, 3, 1)).astype(jnp.bfloat16)   # -> NHWC

    # ReflectionPad2d(3) + Conv7x7 + BN + ReLU
    h = conv_bn_act(x, params["c0_w"], *params["bn0"],
                    stride=1, padding=3, pad_mode="reflect", relu=True)

    # Two stride-2 downsampling convs
    for i in range(2):
        h = conv_bn_act(h, params[f"down{i}_w"], *params[f"down{i}_bn"],
                        stride=2, padding=1, pad_mode="zero", relu=True)

    # Resnet blocks (reflect padding, use_dropout=False)
    for b in range(n_blocks):
        res = h
        t = conv_bn_act(h, params[f"blk{b}_w1"], *params[f"blk{b}_bn1"],
                        stride=1, padding=1, pad_mode="reflect", relu=True)
        h = conv_bn_act(t, params[f"blk{b}_w2"], *params[f"blk{b}_bn2"],
                        stride=1, padding=1, pad_mode="reflect", relu=False,
                        res_nhwc=res)

    # Two stride-2 transposed convs (sub-filter decomposition)
    for i in range(2):
        h = conv_transpose_bn_relu(h, params[f"up{i}_w"], *params[f"up{i}_bn"])

    # ReflectionPad2d(3) + Conv7x7 (+bias) + Tanh (fused in matmul epilogue)
    output_nc = params["cf_w"].shape[0]
    y, (N, Ho, Wo, M), _ = conv2d(
        h, params["cf_w"], stride=1, padding=3, pad_mode="reflect",
        bias=params["cf_b"], tanh=True, want_stats=False,
        out_dtype=jnp.float32)
    y = y[:M, :output_nc].reshape(N, Ho, Wo, output_nc)
    return jnp.transpose(y, (0, 3, 1, 2))                          # -> NCHW


# ----------------------------------------------------------------------------
if __name__ == "__main__":
    # Small, shape-consistent config: input_nc=3, output_nc=3, ngf=8, n_blocks=2
    BATCH, INPUT_NC, OUTPUT_NC, NGF, N_BLOCKS, HW = 2, 3, 3, 8, 2, 16

    key = jax.random.PRNGKey(0)
    k_in, k_par = jax.random.split(key)
    x = jax.random.normal(k_in, (BATCH, INPUT_NC, HW, HW), jnp.float32)
    params = init_params(k_par, INPUT_NC, OUTPUT_NC, NGF, N_BLOCKS)

    fwd = jax.jit(functools.partial(resnet_generator_forward,
                                    n_blocks=N_BLOCKS))
    out = fwd(x, params)
    jax.block_until_ready(out)

    assert out.shape == (BATCH, OUTPUT_NC, HW, HW), out.shape
    assert bool(jnp.all(jnp.isfinite(out)))
    assert bool(jnp.all(jnp.abs(out) <= 1.0 + 1e-3))   # tanh output range
    print("KERNEL_OK")
</pallas_src>

<mosaic_0001>
module attributes {stable_mosaic.version = 11 : i64} {
  func.func @_mm_stats_kernel(%arg0: i32, %arg1: i32, %arg2: i32, %arg3: memref<256x256xbf16, #tpu.memory_space<vmem>>, %arg4: memref<256x128xbf16, #tpu.memory_space<vmem>>, %arg5: memref<256x128xbf16, #tpu.memory_space<vmem>>, %arg6: memref<8x128xf32, #tpu.memory_space<vmem>>, %arg7: memref<256x128xf32, #tpu.memory_space<vmem>>) attributes {dimension_semantics = [#tpu.dimension_semantics<parallel>, #tpu.dimension_semantics<parallel>, #tpu.dimension_semantics<arbitrary>], iteration_bounds = array<i64: 2, 1, 1>, scalar_prefetch = 0 : i64, scratch_operands = 1 : i64, tpu.core_type = #tpu.core_type<tc>, window_params = [{transform_indices = @transform_0, window_bounds = array<i64: 256, 256>}, {transform_indices = @transform_1, window_bounds = array<i64: 256, 128>}, {transform_indices = @transform_2, window_bounds = array<i64: 256, 128>}, {transform_indices = @transform_3, window_bounds = array<i64: 8, 128>}]} {
    %c0_i32 = arith.constant 0 : i32
    %0 = arith.cmpi eq, %arg2, %c0_i32 : i32
    %1 = arith.extui %0 : i1 to i32
    %c0_i32_0 = arith.constant 0 : i32
    %2 = arith.cmpi ne, %1, %c0_i32_0 : i32
    scf.if %2 {
      %cst_10 = arith.constant 0.000000e+00 : f32
      %12 = vector.broadcast %cst_10 : f32 to vector<256x128xf32>
      %c0_11 = arith.constant 0 : index
      %c0_12 = arith.constant 0 : index
      %13 = vector.load %arg7[%c0_11, %c0_12] : memref<256x128xf32, #tpu.memory_space<vmem>>, vector<256x128xf32>
      tpu.vector_store %arg7[%c0_11, %c0_12], %12 {strides = array<i32>} : memref<256x128xf32, #tpu.memory_space<vmem>>, vector<256x128xf32>,
    } else {
    }
    %c0 = arith.constant 0 : index
    %c0_1 = arith.constant 0 : index
    %3 = vector.load %arg7[%c0, %c0_1] : memref<256x128xf32, #tpu.memory_space<vmem>>, vector<256x128xf32>
    %c0_2 = arith.constant 0 : index
    %c0_3 = arith.constant 0 : index
    %4 = vector.load %arg3[%c0_2, %c0_3] : memref<256x256xbf16, #tpu.memory_space<vmem>>, vector<256x256xbf16>
    %c0_4 = arith.constant 0 : index
    %c0_5 = arith.constant 0 : index
    %5 = vector.load %arg4[%c0_4, %c0_5] : memref<256x128xbf16, #tpu.memory_space<vmem>>, vector<256x128xbf16>
    %cst = arith.constant dense<0.000000e+00> : vector<256x128xf32>
    %6 = tpu.matmul %4, %5, %cst {dimension_numbers = #tpu.dot_dimension_numbers<[1], [0], [0], [1], [0, 0, 1, 1], [], []>} : vector<256x256xbf16>, vector<256x128xbf16>, vector<256x128xf32> -> vector<256x128xf32>
    %7 = arith.addf %3, %6 : vector<256x128xf32>
    %c0_6 = arith.constant 0 : index
    %c0_7 = arith.constant 0 : index
    %8 = vector.load %arg7[%c0_6, %c0_7] : memref<256x128xf32, #tpu.memory_space<vmem>>, vector<256x128xf32>
    tpu.vector_store %arg7[%c0_6, %c0_7], %7 {strides = array<i32>} : memref<256x128xf32, #tpu.memory_space<vmem>>, vector<256x128xf32>,
    %c0_i32_8 = arith.constant 0 : i32
    %9 = arith.cmpi eq, %arg2, %c0_i32_8 : i32
    %10 = arith.extui %9 : i1 to i32
    %c0_i32_9 = arith.constant 0 : i32
    %11 = arith.cmpi ne, %10, %c0_i32_9 : i32
    scf.if %11 {
      %c0_10 = arith.constant 0 : index
      %c0_11 = arith.constant 0 : index
      %12 = vector.load %arg7[%c0_10, %c0_11] : memref<256x128xf32, #tpu.memory_space<vmem>>, vector<256x128xf32>
      %13 = arith.truncf %12 : vector<256x128xf32> to vector<256x128xbf16>
      %c0_12 = arith.constant 0 : index
      %c0_13 = arith.constant 0 : index
      %14 = vector.load %arg5[%c0_12, %c0_13] : memref<256x128xbf16, #tpu.memory_space<vmem>>, vector<256x128xbf16>
      tpu.vector_store %arg5[%c0_12, %c0_13], %13 {strides = array<i32>} : memref<256x128xbf16, #tpu.memory_space<vmem>>, vector<256x128xbf16>,
      %cst_14 = arith.constant dense<0.000000e+00> : vector<128xf32>
      %15 = vector.multi_reduction <add>, %12, %cst_14 [0] : vector<256x128xf32> to vector<128xf32>
      %16 = vector.shape_cast %15 : vector<128xf32> to vector<1x128xf32>
      %17 = arith.mulf %12, %12 : vector<256x128xf32>
      %cst_15 = arith.constant dense<0.000000e+00> : vector<128xf32>
      %18 = vector.multi_reduction <add>, %17, %cst_15 [0] : vector<256x128xf32> to vector<128xf32>
      %19 = vector.shape_cast %18 : vector<128xf32> to vector<1x128xf32>
      %20 = tpu.iota {dimensions = array<i32: 0>} : vector<8x128xi32>
      %c0_i32_16 = arith.constant 0 : i32
      %21 = vector.broadcast %c0_i32_16 : i32 to vector<8x128xi32>
      %22 = arith.cmpi eq, %20, %21 : vector<8x128xi32>
      %c1_i32 = arith.constant 1 : i32
      %23 = vector.broadcast %c1_i32 : i32 to vector<8x128xi32>
      %24 = arith.cmpi eq, %20, %23 : vector<8x128xi32>
      %cst_17 = arith.constant 0.000000e+00 : f32
      %25 = vector.shape_cast %19 : vector<1x128xf32> to vector<1x128xf32>
      %26 = vector.broadcast %25 : vector<1x128xf32> to vector<8x128xf32>
      %27 = vector.broadcast %cst_17 : f32 to vector<8x128xf32>
      %28 = arith.select %24, %26, %27 : vector<8x128xi1>, vector<8x128xf32>
      %29 = vector.shape_cast %16 : vector<1x128xf32> to vector<1x128xf32>
      %30 = vector.broadcast %29 : vector<1x128xf32> to vector<8x128xf32>
      %31 = arith.select %22, %30, %28 : vector<8x128xi1>, vector<8x128xf32>
      %c0_18 = arith.constant 0 : index
      %c0_19 = arith.constant 0 : index
      %32 = vector.load %arg6[%c0_18, %c0_19] : memref<8x128xf32, #tpu.memory_space<vmem>>, vector<8x128xf32>
      tpu.vector_store %arg6[%c0_18, %c0_19], %31 {strides = array<i32>} : memref<8x128xf32, #tpu.memory_space<vmem>>, vector<8x128xf32>,
    } else {
    }
    return
  }
  func.func @transform_0(%arg0: i32, %arg1: i32, %arg2: i32) -> (i32, i32) {
    %c0_i32 = arith.constant 0 : i32
    return %arg0, %arg2 : i32, i32
  }
  func.func @transform_1(%arg0: i32, %arg1: i32, %arg2: i32) -> (i32, i32) {
    %c0_i32 = arith.constant 0 : i32
    return %arg2, %arg1 : i32, i32
  }
  func.func @transform_2(%arg0: i32, %arg1: i32, %arg2: i32) -> (i32, i32) {
    %c0_i32 = arith.constant 0 : i32
    return %arg0, %arg1 : i32, i32
  }
  func.func @transform_3(%arg0: i32, %arg1: i32, %arg2: i32) -> (i32, i32) {
    %c0_i32 = arith.constant 0 : i32
    return %arg0, %arg1 : i32, i32
  }
}

module attributes {stable_mosaic.version = 11 : i64} {
  func.func @_bn_apply_kernel(%arg0: i32, %arg1: i32, %arg2: memref<256x128xbf16, #tpu.memory_space<vmem>>, %arg3: memref<1x128xf32, #tpu.memory_space<vmem>>, %arg4: memref<1x128xf32, #tpu.memory_space<vmem>>, %arg5: memref<256x128xbf16, #tpu.memory_space<vmem>>) attributes {dimension_semantics = [#tpu.dimension_semantics<parallel>, #tpu.dimension_semantics<parallel>], iteration_bounds = array<i64: 2, 1>, scalar_prefetch = 0 : i64, scratch_operands = 0 : i64, tpu.core_type = #tpu.core_type<tc>, window_params = [{transform_indices = @transform_0, window_bounds = array<i64: 256, 128>}, {transform_indices = @transform_1, window_bounds = array<i64: 1, 128>}, {transform_indices = @transform_2, window_bounds = array<i64: 1, 128>}, {transform_indices = @transform_3, window_bounds = array<i64: 256, 128>}]} {
    %c0 = arith.constant 0 : index
    %c0_0 = arith.constant 0 : index
    %0 = vector.load %arg2[%c0, %c0_0] : memref<256x128xbf16, #tpu.memory_space<vmem>>, vector<256x128xbf16>
    %1 = arith.extf %0 : vector<256x128xbf16> to vector<256x128xf32>
    %c0_1 = arith.constant 0 : index
    %c0_2 = arith.constant 0 : index
    %2 = vector.load %arg3[%c0_1, %c0_2] : memref<1x128xf32, #tpu.memory_space<vmem>>, vector<1x128xf32>
    %3 = vector.broadcast %2 : vector<1x128xf32> to vector<256x128xf32>
    %4 = arith.mulf %1, %3 : vector<256x128xf32>
    %c0_3 = arith.constant 0 : index
    %c0_4 = arith.constant 0 : index
    %5 = vector.load %arg4[%c0_3, %c0_4] : memref<1x128xf32, #tpu.memory_space<vmem>>, vector<1x128xf32>
    %6 = vector.broadcast %5 : vector<1x128xf32> to vector<256x128xf32>
    %7 = arith.addf %4, %6 : vector<256x128xf32>
    %cst = arith.constant 0.000000e+00 : f32
    %8 = vector.broadcast %cst : f32 to vector<256x128xf32>
    %9 = arith.maximumf %7, %8 : vector<256x128xf32>
    %10 = arith.truncf %9 : vector<256x128xf32> to vector<256x128xbf16>
    %c0_5 = arith.constant 0 : index
    %c0_6 = arith.constant 0 : index
    %11 = vector.load %arg5[%c0_5, %c0_6] : memref<256x128xbf16, #tpu.memory_space<vmem>>, vector<256x128xbf16>
    tpu.vector_store %arg5[%c0_5, %c0_6], %10 {strides = array<i32>} : memref<256x128xbf16, #tpu.memory_space<vmem>>, vector<256x128xbf16>,
    return
  }
  func.func @transform_0(%arg0: i32, %arg1: i32) -> (i32, i32) {
    %c0_i32 = arith.constant 0 : i32
    return %arg0, %arg1 : i32, i32
  }
  func.func @transform_1(%arg0: i32, %arg1: i32) -> (i32, i32) {
    %c0_i32 = arith.constant 0 : i32
    %c0_i32_0 = arith.constant 0 : i32
    return %c0_i32, %arg1 : i32, i32
  }
  func.func @transform_2(%arg0: i32, %arg1: i32) -> (i32, i32) {
    %c0_i32 = arith.constant 0 : i32
    %c0_i32_0 = arith.constant 0 : i32
    return %c0_i32, %arg1 : i32, i32
  }
  func.func @transform_3(%arg0: i32, %arg1: i32) -> (i32, i32) {
    %c0_i32 = arith.constant 0 : i32
    return %arg0, %arg1 : i32, i32
  }
}

module attributes {stable_mosaic.version = 11 : i64} {
  func.func @_bn_apply_kernel(%arg0: i32, %arg1: i32, %arg2: memref<128x128xbf16, #tpu.memory_space<vmem>>, %arg3: memref<1x128xf32, #tpu.memory_space<vmem>>, %arg4: memref<1x128xf32, #tpu.memory_space<vmem>>, %arg5: memref<128x128xbf16, #tpu.memory_space<vmem>>) attributes {dimension_semantics = [#tpu.dimension_semantics<parallel>, #tpu.dimension_semantics<parallel>], iteration_bounds = array<i64: 1, 1>, scalar_prefetch = 0 : i64, scratch_operands = 0 : i64, tpu.core_type = #tpu.core_type<tc>, window_params = [{transform_indices = @transform_0, window_bounds = array<i64: 128, 128>}, {transform_indices = @transform_1, window_bounds = array<i64: 1, 128>}, {transform_indices = @transform_2, window_bounds = array<i64: 1, 128>}, {transform_indices = @transform_3, window_bounds = array<i64: 128, 128>}]} {
    %c0 = arith.constant 0 : index
    %c0_0 = arith.constant 0 : index
    %0 = vector.load %arg2[%c0, %c0_0] : memref<128x128xbf16, #tpu.memory_space<vmem>>, vector<128x128xbf16>
    %1 = arith.extf %0 : vector<128x128xbf16> to vector<128x128xf32>
    %c0_1 = arith.constant 0 : index
    %c0_2 = arith.constant 0 : index
    %2 = vector.load %arg3[%c0_1, %c0_2] : memref<1x128xf32, #tpu.memory_space<vmem>>, vector<1x128xf32>
    %3 = vector.broadcast %2 : vector<1x128xf32> to vector<128x128xf32>
    %4 = arith.mulf %1, %3 : vector<128x128xf32>
    %c0_3 = arith.constant 0 : index
    %c0_4 = arith.constant 0 : index
    %5 = vector.load %arg4[%c0_3, %c0_4] : memref<1x128xf32, #tpu.memory_space<vmem>>, vector<1x128xf32>
    %6 = vector.broadcast %5 : vector<1x128xf32> to vector<128x128xf32>
    %7 = arith.addf %4, %6 : vector<128x128xf32>
    %cst = arith.constant 0.000000e+00 : f32
    %8 = vector.broadcast %cst : f32 to vector<128x128xf32>
    %9 = arith.maximumf %7, %8 : vector<128x128xf32>
    %10 = arith.truncf %9 : vector<128x128xf32> to vector<128x128xbf16>
    %c0_5 = arith.constant 0 : index
    %c0_6 = arith.constant 0 : index
    %11 = vector.load %arg5[%c0_5, %c0_6] : memref<128x128xbf16, #tpu.memory_space<vmem>>, vector<128x128xbf16>
    tpu.vector_store %arg5[%c0_5, %c0_6], %10 {strides = array<i32>} : memref<128x128xbf16, #tpu.memory_space<vmem>>, vector<128x128xbf16>,
    return
  }
  func.func @transform_0(%arg0: i32, %arg1: i32) -> (i32, i32) {
    %c0_i32 = arith.constant 0 : i32
    return %arg0, %arg1 : i32, i32
  }
  func.func @transform_1(%arg0: i32, %arg1: i32) -> (i32, i32) {
    %c0_i32 = arith.constant 0 : i32
    %c0_i32_0 = arith.constant 0 : i32
    return %c0_i32, %arg1 : i32, i32
  }
  func.func @transform_2(%arg0: i32, %arg1: i32) -> (i32, i32) {
    %c0_i32 = arith.constant 0 : i32
    %c0_i32_0 = arith.constant 0 : i32
    return %c0_i32, %arg1 : i32, i32
  }
  func.func @transform_3(%arg0: i32, %arg1: i32) -> (i32, i32) {
    %c0_i32 = arith.constant 0 : i32
    return %arg0, %arg1 : i32, i32
  }
}

module attributes {stable_mosaic.version = 11 : i64} {
  func.func @_mm_stats_kernel(%arg0: i32, %arg1: i32, %arg2: i32, %arg3: memref<128x128xbf16, #tpu.memory_space<vmem>>, %arg4: memref<128x128xbf16, #tpu.memory_space<vmem>>, %arg5: memref<128x128xbf16, #tpu.memory_space<vmem>>, %arg6: memref<8x128xf32, #tpu.memory_space<vmem>>, %arg7: memref<128x128xf32, #tpu.memory_space<vmem>>) attributes {dimension_semantics = [#tpu.dimension_semantics<parallel>, #tpu.dimension_semantics<parallel>, #tpu.dimension_semantics<arbitrary>], iteration_bounds = array<i64: 1, 1, 1>, scalar_prefetch = 0 : i64, scratch_operands = 1 : i64, tpu.core_type = #tpu.core_type<tc>, window_params = [{transform_indices = @transform_0, window_bounds = array<i64: 128, 128>}, {transform_indices = @transform_1, window_bounds = array<i64: 128, 128>}, {transform_indices = @transform_2, window_bounds = array<i64: 128, 128>}, {transform_indices = @transform_3, window_bounds = array<i64: 8, 128>}]} {
    %c0_i32 = arith.constant 0 : i32
    %0 = arith.cmpi eq, %arg2, %c0_i32 : i32
    %1 = arith.extui %0 : i1 to i32
    %c0_i32_0 = arith.constant 0 : i32
    %2 = arith.cmpi ne, %1, %c0_i32_0 : i32
    scf.if %2 {
      %cst_10 = arith.constant 0.000000e+00 : f32
      %12 = vector.broadcast %cst_10 : f32 to vector<128x128xf32>
      %c0_11 = arith.constant 0 : index
      %c0_12 = arith.constant 0 : index
      %13 = vector.load %arg7[%c0_11, %c0_12] : memref<128x128xf32, #tpu.memory_space<vmem>>, vector<128x128xf32>
      tpu.vector_store %arg7[%c0_11, %c0_12], %12 {strides = array<i32>} : memref<128x128xf32, #tpu.memory_space<vmem>>, vector<128x128xf32>,
    } else {
    }
    %c0 = arith.constant 0 : index
    %c0_1 = arith.constant 0 : index
    %3 = vector.load %arg7[%c0, %c0_1] : memref<128x128xf32, #tpu.memory_space<vmem>>, vector<128x128xf32>
    %c0_2 = arith.constant 0 : index
    %c0_3 = arith.constant 0 : index
    %4 = vector.load %arg3[%c0_2, %c0_3] : memref<128x128xbf16, #tpu.memory_space<vmem>>, vector<128x128xbf16>
    %c0_4 = arith.constant 0 : index
    %c0_5 = arith.constant 0 : index
    %5 = vector.load %arg4[%c0_4, %c0_5] : memref<128x128xbf16, #tpu.memory_space<vmem>>, vector<128x128xbf16>
    %cst = arith.constant dense<0.000000e+00> : vector<128x128xf32>
    %6 = tpu.matmul %4, %5, %cst {dimension_numbers = #tpu.dot_dimension_numbers<[1], [0], [0], [1], [0, 0, 1, 1], [], []>} : vector<128x128xbf16>, vector<128x128xbf16>, vector<128x128xf32> -> vector<128x128xf32>
    %7 = arith.addf %3, %6 : vector<128x128xf32>
    %c0_6 = arith.constant 0 : index
    %c0_7 = arith.constant 0 : index
    %8 = vector.load %arg7[%c0_6, %c0_7] : memref<128x128xf32, #tpu.memory_space<vmem>>, vector<128x128xf32>
    tpu.vector_store %arg7[%c0_6, %c0_7], %7 {strides = array<i32>} : memref<128x128xf32, #tpu.memory_space<vmem>>, vector<128x128xf32>,
    %c0_i32_8 = arith.constant 0 : i32
    %9 = arith.cmpi eq, %arg2, %c0_i32_8 : i32
    %10 = arith.extui %9 : i1 to i32
    %c0_i32_9 = arith.constant 0 : i32
    %11 = arith.cmpi ne, %10, %c0_i32_9 : i32
    scf.if %11 {
      %c0_10 = arith.constant 0 : index
      %c0_11 = arith.constant 0 : index
      %12 = vector.load %arg7[%c0_10, %c0_11] : memref<128x128xf32, #tpu.memory_space<vmem>>, vector<128x128xf32>
      %13 = arith.truncf %12 : vector<128x128xf32> to vector<128x128xbf16>
      %c0_12 = arith.constant 0 : index
      %c0_13 = arith.constant 0 : index
      %14 = vector.load %arg5[%c0_12, %c0_13] : memref<128x128xbf16, #tpu.memory_space<vmem>>, vector<128x128xbf16>
      tpu.vector_store %arg5[%c0_12, %c0_13], %13 {strides = array<i32>} : memref<128x128xbf16, #tpu.memory_space<vmem>>, vector<128x128xbf16>,
      %cst_14 = arith.constant dense<0.000000e+00> : vector<128xf32>
      %15 = vector.multi_reduction <add>, %12, %cst_14 [0] : vector<128x128xf32> to vector<128xf32>
      %16 = vector.shape_cast %15 : vector<128xf32> to vector<1x128xf32>
      %17 = arith.mulf %12, %12 : vector<128x128xf32>
      %cst_15 = arith.constant dense<0.000000e+00> : vector<128xf32>
      %18 = vector.multi_reduction <add>, %17, %cst_15 [0] : vector<128x128xf32> to vector<128xf32>
      %19 = vector.shape_cast %18 : vector<128xf32> to vector<1x128xf32>
      %20 = tpu.iota {dimensions = array<i32: 0>} : vector<8x128xi32>
      %c0_i32_16 = arith.constant 0 : i32
      %21 = vector.broadcast %c0_i32_16 : i32 to vector<8x128xi32>
      %22 = arith.cmpi eq, %20, %21 : vector<8x128xi32>
      %c1_i32 = arith.constant 1 : i32
      %23 = vector.broadcast %c1_i32 : i32 to vector<8x128xi32>
      %24 = arith.cmpi eq, %20, %23 : vector<8x128xi32>
      %cst_17 = arith.constant 0.000000e+00 : f32
      %25 = vector.shape_cast %19 : vector<1x128xf32> to vector<1x128xf32>
      %26 = vector.broadcast %25 : vector<1x128xf32> to vector<8x128xf32>
      %27 = vector.broadcast %cst_17 : f32 to vector<8x128xf32>
      %28 = arith.select %24, %26, %27 : vector<8x128xi1>, vector<8x128xf32>
      %29 = vector.shape_cast %16 : vector<1x128xf32> to vector<1x128xf32>
      %30 = vector.broadcast %29 : vector<1x128xf32> to vector<8x128xf32>
      %31 = arith.select %22, %30, %28 : vector<8x128xi1>, vector<8x128xf32>
      %c0_18 = arith.constant 0 : index
      %c0_19 = arith.constant 0 : index
      %32 = vector.load %arg6[%c0_18, %c0_19] : memref<8x128xf32, #tpu.memory_space<vmem>>, vector<8x128xf32>
      tpu.vector_store %arg6[%c0_18, %c0_19], %31 {strides = array<i32>} : memref<8x128xf32, #tpu.memory_space<vmem>>, vector<8x128xf32>,
    } else {
    }
    return
  }
  func.func @transform_0(%arg0: i32, %arg1: i32, %arg2: i32) -> (i32, i32) {
    %c0_i32 = arith.constant 0 : i32
    return %arg0, %arg2 : i32, i32
  }
  func.func @transform_1(%arg0: i32, %arg1: i32, %arg2: i32) -> (i32, i32) {
    %c0_i32 = arith.constant 0 : i32
    return %arg2, %arg1 : i32, i32
  }
  func.func @transform_2(%arg0: i32, %arg1: i32, %arg2: i32) -> (i32, i32) {
    %c0_i32 = arith.constant 0 : i32
    return %arg0, %arg1 : i32, i32
  }
  func.func @transform_3(%arg0: i32, %arg1: i32, %arg2: i32) -> (i32, i32) {
    %c0_i32 = arith.constant 0 : i32
    return %arg0, %arg1 : i32, i32
  }
}

module attributes {stable_mosaic.version = 11 : i64} {
  func.func @_bn_apply_kernel(%arg0: i32, %arg1: i32, %arg2: memref<32x128xbf16, #tpu.memory_space<vmem>>, %arg3: memref<1x128xf32, #tpu.memory_space<vmem>>, %arg4: memref<1x128xf32, #tpu.memory_space<vmem>>, %arg5: memref<32x128xbf16, #tpu.memory_space<vmem>>) attributes {dimension_semantics = [#tpu.dimension_semantics<parallel>, #tpu.dimension_semantics<parallel>], iteration_bounds = array<i64: 1, 1>, scalar_prefetch = 0 : i64, scratch_operands = 0 : i64, tpu.core_type = #tpu.core_type<tc>, window_params = [{transform_indices = @transform_0, window_bounds = array<i64: 32, 128>}, {transform_indices = @transform_1, window_bounds = array<i64: 1, 128>}, {transform_indices = @transform_2, window_bounds = array<i64: 1, 128>}, {transform_indices = @transform_3, window_bounds = array<i64: 32, 128>}]} {
    %c0 = arith.constant 0 : index
    %c0_0 = arith.constant 0 : index
    %0 = vector.load %arg2[%c0, %c0_0] : memref<32x128xbf16, #tpu.memory_space<vmem>>, vector<32x128xbf16>
    %1 = arith.extf %0 : vector<32x128xbf16> to vector<32x128xf32>
    %c0_1 = arith.constant 0 : index
    %c0_2 = arith.constant 0 : index
    %2 = vector.load %arg3[%c0_1, %c0_2] : memref<1x128xf32, #tpu.memory_space<vmem>>, vector<1x128xf32>
    %3 = vector.broadcast %2 : vector<1x128xf32> to vector<32x128xf32>
    %4 = arith.mulf %1, %3 : vector<32x128xf32>
    %c0_3 = arith.constant 0 : index
    %c0_4 = arith.constant 0 : index
    %5 = vector.load %arg4[%c0_3, %c0_4] : memref<1x128xf32, #tpu.memory_space<vmem>>, vector<1x128xf32>
    %6 = vector.broadcast %5 : vector<1x128xf32> to vector<32x128xf32>
    %7 = arith.addf %4, %6 : vector<32x128xf32>
    %cst = arith.constant 0.000000e+00 : f32
    %8 = vector.broadcast %cst : f32 to vector<32x128xf32>
    %9 = arith.maximumf %7, %8 : vector<32x128xf32>
    %10 = arith.truncf %9 : vector<32x128xf32> to vector<32x128xbf16>
    %c0_5 = arith.constant 0 : index
    %c0_6 = arith.constant 0 : index
    %11 = vector.load %arg5[%c0_5, %c0_6] : memref<32x128xbf16, #tpu.memory_space<vmem>>, vector<32x128xbf16>
    tpu.vector_store %arg5[%c0_5, %c0_6], %10 {strides = array<i32>} : memref<32x128xbf16, #tpu.memory_space<vmem>>, vector<32x128xbf16>,
    return
  }
  func.func @transform_0(%arg0: i32, %arg1: i32) -> (i32, i32) {
    %c0_i32 = arith.constant 0 : i32
    return %arg0, %arg1 : i32, i32
  }
  func.func @transform_1(%arg0: i32, %arg1: i32) -> (i32, i32) {
    %c0_i32 = arith.constant 0 : i32
    %c0_i32_0 = arith.constant 0 : i32
    return %c0_i32, %arg1 : i32, i32
  }
  func.func @transform_2(%arg0: i32, %arg1: i32) -> (i32, i32) {
    %c0_i32 = arith.constant 0 : i32
    %c0_i32_0 = arith.constant 0 : i32
    return %c0_i32, %arg1 : i32, i32
  }
  func.func @transform_3(%arg0: i32, %arg1: i32) -> (i32, i32) {
    %c0_i32 = arith.constant 0 : i32
    return %arg0, %arg1 : i32, i32
  }
}

module attributes {stable_mosaic.version = 11 : i64} {
  func.func @_mm_stats_kernel(%arg0: i32, %arg1: i32, %arg2: i32, %arg3: memref<32x256xbf16, #tpu.memory_space<vmem>>, %arg4: memref<256x128xbf16, #tpu.memory_space<vmem>>, %arg5: memref<32x128xbf16, #tpu.memory_space<vmem>>, %arg6: memref<8x128xf32, #tpu.memory_space<vmem>>, %arg7: memref<32x128xf32, #tpu.memory_space<vmem>>) attributes {dimension_semantics = [#tpu.dimension_semantics<parallel>, #tpu.dimension_semantics<parallel>, #tpu.dimension_semantics<arbitrary>], iteration_bounds = array<i64: 1, 1, 1>, scalar_prefetch = 0 : i64, scratch_operands = 1 : i64, tpu.core_type = #tpu.core_type<tc>, window_params = [{transform_indices = @transform_0, window_bounds = array<i64: 32, 256>}, {transform_indices = @transform_1, window_bounds = array<i64: 256, 128>}, {transform_indices = @transform_2, window_bounds = array<i64: 32, 128>}, {transform_indices = @transform_3, window_bounds = array<i64: 8, 128>}]} {
    %c0_i32 = arith.constant 0 : i32
    %0 = arith.cmpi eq, %arg2, %c0_i32 : i32
    %1 = arith.extui %0 : i1 to i32
    %c0_i32_0 = arith.constant 0 : i32
    %2 = arith.cmpi ne, %1, %c0_i32_0 : i32
    scf.if %2 {
      %cst_10 = arith.constant 0.000000e+00 : f32
      %12 = vector.broadcast %cst_10 : f32 to vector<32x128xf32>
      %c0_11 = arith.constant 0 : index
      %c0_12 = arith.constant 0 : index
      %13 = vector.load %arg7[%c0_11, %c0_12] : memref<32x128xf32, #tpu.memory_space<vmem>>, vector<32x128xf32>
      tpu.vector_store %arg7[%c0_11, %c0_12], %12 {strides = array<i32>} : memref<32x128xf32, #tpu.memory_space<vmem>>, vector<32x128xf32>,
    } else {
    }
    %c0 = arith.constant 0 : index
    %c0_1 = arith.constant 0 : index
    %3 = vector.load %arg7[%c0, %c0_1] : memref<32x128xf32, #tpu.memory_space<vmem>>, vector<32x128xf32>
    %c0_2 = arith.constant 0 : index
    %c0_3 = arith.constant 0 : index
    %4 = vector.load %arg3[%c0_2, %c0_3] : memref<32x256xbf16, #tpu.memory_space<vmem>>, vector<32x256xbf16>
    %c0_4 = arith.constant 0 : index
    %c0_5 = arith.constant 0 : index
    %5 = vector.load %arg4[%c0_4, %c0_5] : memref<256x128xbf16, #tpu.memory_space<vmem>>, vector<256x128xbf16>
    %cst = arith.constant dense<0.000000e+00> : vector<32x128xf32>
    %6 = tpu.matmul %4, %5, %cst {dimension_numbers = #tpu.dot_dimension_numbers<[1], [0], [0], [1], [0, 0, 1, 1], [], []>} : vector<32x256xbf16>, vector<256x128xbf16>, vector<32x128xf32> -> vector<32x128xf32>
    %7 = arith.addf %3, %6 : vector<32x128xf32>
    %c0_6 = arith.constant 0 : index
    %c0_7 = arith.constant 0 : index
    %8 = vector.load %arg7[%c0_6, %c0_7] : memref<32x128xf32, #tpu.memory_space<vmem>>, vector<32x128xf32>
    tpu.vector_store %arg7[%c0_6, %c0_7], %7 {strides = array<i32>} : memref<32x128xf32, #tpu.memory_space<vmem>>, vector<32x128xf32>,
    %c0_i32_8 = arith.constant 0 : i32
    %9 = arith.cmpi eq, %arg2, %c0_i32_8 : i32
    %10 = arith.extui %9 : i1 to i32
    %c0_i32_9 = arith.constant 0 : i32
    %11 = arith.cmpi ne, %10, %c0_i32_9 : i32
    scf.if %11 {
      %c0_10 = arith.constant 0 : index
      %c0_11 = arith.constant 0 : index
      %12 = vector.load %arg7[%c0_10, %c0_11] : memref<32x128xf32, #tpu.memory_space<vmem>>, vector<32x128xf32>
      %13 = arith.truncf %12 : vector<32x128xf32> to vector<32x128xbf16>
      %c0_12 = arith.constant 0 : index
      %c0_13 = arith.constant 0 : index
      %14 = vector.load %arg5[%c0_12, %c0_13] : memref<32x128xbf16, #tpu.memory_space<vmem>>, vector<32x128xbf16>
      tpu.vector_store %arg5[%c0_12, %c0_13], %13 {strides = array<i32>} : memref<32x128xbf16, #tpu.memory_space<vmem>>, vector<32x128xbf16>,
      %cst_14 = arith.constant dense<0.000000e+00> : vector<128xf32>
      %15 = vector.multi_reduction <add>, %12, %cst_14 [0] : vector<32x128xf32> to vector<128xf32>
      %16 = vector.shape_cast %15 : vector<128xf32> to vector<1x128xf32>
      %17 = arith.mulf %12, %12 : vector<32x128xf32>
      %cst_15 = arith.constant dense<0.000000e+00> : vector<128xf32>
      %18 = vector.multi_reduction <add>, %17, %cst_15 [0] : vector<32x128xf32> to vector<128xf32>
      %19 = vector.shape_cast %18 : vector<128xf32> to vector<1x128xf32>
      %20 = tpu.iota {dimensions = array<i32: 0>} : vector<8x128xi32>
      %c0_i32_16 = arith.constant 0 : i32
      %21 = vector.broadcast %c0_i32_16 : i32 to vector<8x128xi32>
      %22 = arith.cmpi eq, %20, %21 : vector<8x128xi32>
      %c1_i32 = arith.constant 1 : i32
      %23 = vector.broadcast %c1_i32 : i32 to vector<8x128xi32>
      %24 = arith.cmpi eq, %20, %23 : vector<8x128xi32>
      %cst_17 = arith.constant 0.000000e+00 : f32
      %25 = vector.shape_cast %19 : vector<1x128xf32> to vector<1x128xf32>
      %26 = vector.broadcast %25 : vector<1x128xf32> to vector<8x128xf32>
      %27 = vector.broadcast %cst_17 : f32 to vector<8x128xf32>
      %28 = arith.select %24, %26, %27 : vector<8x128xi1>, vector<8x128xf32>
      %29 = vector.shape_cast %16 : vector<1x128xf32> to vector<1x128xf32>
      %30 = vector.broadcast %29 : vector<1x128xf32> to vector<8x128xf32>
      %31 = arith.select %22, %30, %28 : vector<8x128xi1>, vector<8x128xf32>
      %c0_18 = arith.constant 0 : index
      %c0_19 = arith.constant 0 : index
      %32 = vector.load %arg6[%c0_18, %c0_19] : memref<8x128xf32, #tpu.memory_space<vmem>>, vector<8x128xf32>
      tpu.vector_store %arg6[%c0_18, %c0_19], %31 {strides = array<i32>} : memref<8x128xf32, #tpu.memory_space<vmem>>, vector<8x128xf32>,
    } else {
    }
    return
  }
  func.func @transform_0(%arg0: i32, %arg1: i32, %arg2: i32) -> (i32, i32) {
    %c0_i32 = arith.constant 0 : i32
    return %arg0, %arg2 : i32, i32
  }
  func.func @transform_1(%arg0: i32, %arg1: i32, %arg2: i32) -> (i32, i32) {
    %c0_i32 = arith.constant 0 : i32
    return %arg2, %arg1 : i32, i32
  }
  func.func @transform_2(%arg0: i32, %arg1: i32, %arg2: i32) -> (i32, i32) {
    %c0_i32 = arith.constant 0 : i32
    return %arg0, %arg1 : i32, i32
  }
  func.func @transform_3(%arg0: i32, %arg1: i32, %arg2: i32) -> (i32, i32) {
    %c0_i32 = arith.constant 0 : i32
    return %arg0, %arg1 : i32, i32
  }
}

module attributes {stable_mosaic.version = 11 : i64} {
  func.func @_bn_apply_res_kernel(%arg0: i32, %arg1: i32, %arg2: memref<32x128xbf16, #tpu.memory_space<vmem>>, %arg3: memref<32x128xbf16, #tpu.memory_space<vmem>>, %arg4: memref<1x128xf32, #tpu.memory_space<vmem>>, %arg5: memref<1x128xf32, #tpu.memory_space<vmem>>, %arg6: memref<32x128xbf16, #tpu.memory_space<vmem>>) attributes {dimension_semantics = [#tpu.dimension_semantics<parallel>, #tpu.dimension_semantics<parallel>], iteration_bounds = array<i64: 1, 1>, scalar_prefetch = 0 : i64, scratch_operands = 0 : i64, tpu.core_type = #tpu.core_type<tc>, window_params = [{transform_indices = @transform_0, window_bounds = array<i64: 32, 128>}, {transform_indices = @transform_1, window_bounds = array<i64: 32, 128>}, {transform_indices = @transform_2, window_bounds = array<i64: 1, 128>}, {transform_indices = @transform_3, window_bounds = array<i64: 1, 128>}, {transform_indices = @transform_4, window_bounds = array<i64: 32, 128>}]} {
    %c0 = arith.constant 0 : index
    %c0_0 = arith.constant 0 : index
    %0 = vector.load %arg2[%c0, %c0_0] : memref<32x128xbf16, #tpu.memory_space<vmem>>, vector<32x128xbf16>
    %1 = arith.extf %0 : vector<32x128xbf16> to vector<32x128xf32>
    %c0_1 = arith.constant 0 : index
    %c0_2 = arith.constant 0 : index
    %2 = vector.load %arg4[%c0_1, %c0_2] : memref<1x128xf32, #tpu.memory_space<vmem>>, vector<1x128xf32>
    %3 = vector.broadcast %2 : vector<1x128xf32> to vector<32x128xf32>
    %4 = arith.mulf %1, %3 : vector<32x128xf32>
    %c0_3 = arith.constant 0 : index
    %c0_4 = arith.constant 0 : index
    %5 = vector.load %arg5[%c0_3, %c0_4] : memref<1x128xf32, #tpu.memory_space<vmem>>, vector<1x128xf32>
    %6 = vector.broadcast %5 : vector<1x128xf32> to vector<32x128xf32>
    %7 = arith.addf %4, %6 : vector<32x128xf32>
    %c0_5 = arith.constant 0 : index
    %c0_6 = arith.constant 0 : index
    %8 = vector.load %arg3[%c0_5, %c0_6] : memref<32x128xbf16, #tpu.memory_space<vmem>>, vector<32x128xbf16>
    %9 = arith.extf %8 : vector<32x128xbf16> to vector<32x128xf32>
    %10 = arith.addf %9, %7 : vector<32x128xf32>
    %11 = arith.truncf %10 : vector<32x128xf32> to vector<32x128xbf16>
    %c0_7 = arith.constant 0 : index
    %c0_8 = arith.constant 0 : index
    %12 = vector.load %arg6[%c0_7, %c0_8] : memref<32x128xbf16, #tpu.memory_space<vmem>>, vector<32x128xbf16>
    tpu.vector_store %arg6[%c0_7, %c0_8], %11 {strides = array<i32>} : memref<32x128xbf16, #tpu.memory_space<vmem>>, vector<32x128xbf16>,
    return
  }
  func.func @transform_0(%arg0: i32, %arg1: i32) -> (i32, i32) {
    %c0_i32 = arith.constant 0 : i32
    return %arg0, %arg1 : i32, i32
  }
  func.func @transform_1(%arg0: i32, %arg1: i32) -> (i32, i32) {
    %c0_i32 = arith.constant 0 : i32
    return %arg0, %arg1 : i32, i32
  }
  func.func @transform_2(%arg0: i32, %arg1: i32) -> (i32, i32) {
    %c0_i32 = arith.constant 0 : i32
    %c0_i32_0 = arith.constant 0 : i32
    return %c0_i32, %arg1 : i32, i32
  }
  func.func @transform_3(%arg0: i32, %arg1: i32) -> (i32, i32) {
    %c0_i32 = arith.constant 0 : i32
    %c0_i32_0 = arith.constant 0 : i32
    return %c0_i32, %arg1 : i32, i32
  }
  func.func @transform_4(%arg0: i32, %arg1: i32) -> (i32, i32) {
    %c0_i32 = arith.constant 0 : i32
    return %arg0, %arg1 : i32, i32
  }
}

module attributes {stable_mosaic.version = 11 : i64} {
  func.func @_mm_stats_kernel(%arg0: i32, %arg1: i32, %arg2: i32, %arg3: memref<32x384xbf16, #tpu.memory_space<vmem>>, %arg4: memref<384x128xbf16, #tpu.memory_space<vmem>>, %arg5: memref<32x128xbf16, #tpu.memory_space<vmem>>, %arg6: memref<8x128xf32, #tpu.memory_space<vmem>>, %arg7: memref<32x128xf32, #tpu.memory_space<vmem>>) attributes {dimension_semantics = [#tpu.dimension_semantics<parallel>, #tpu.dimension_semantics<parallel>, #tpu.dimension_semantics<arbitrary>], iteration_bounds = array<i64: 1, 1, 1>, scalar_prefetch = 0 : i64, scratch_operands = 1 : i64, tpu.core_type = #tpu.core_type<tc>, window_params = [{transform_indices = @transform_0, window_bounds = array<i64: 32, 384>}, {transform_indices = @transform_1, window_bounds = array<i64: 384, 128>}, {transform_indices = @transform_2, window_bounds = array<i64: 32, 128>}, {transform_indices = @transform_3, window_bounds = array<i64: 8, 128>}]} {
    %c0_i32 = arith.constant 0 : i32
    %0 = arith.cmpi eq, %arg2, %c0_i32 : i32
    %1 = arith.extui %0 : i1 to i32
    %c0_i32_0 = arith.constant 0 : i32
    %2 = arith.cmpi ne, %1, %c0_i32_0 : i32
    scf.if %2 {
      %cst_10 = arith.constant 0.000000e+00 : f32
      %12 = vector.broadcast %cst_10 : f32 to vector<32x128xf32>
      %c0_11 = arith.constant 0 : index
      %c0_12 = arith.constant 0 : index
      %13 = vector.load %arg7[%c0_11, %c0_12] : memref<32x128xf32, #tpu.memory_space<vmem>>, vector<32x128xf32>
      tpu.vector_store %arg7[%c0_11, %c0_12], %12 {strides = array<i32>} : memref<32x128xf32, #tpu.memory_space<vmem>>, vector<32x128xf32>,
    } else {
    }
    %c0 = arith.constant 0 : index
    %c0_1 = arith.constant 0 : index
    %3 = vector.load %arg7[%c0, %c0_1] : memref<32x128xf32, #tpu.memory_space<vmem>>, vector<32x128xf32>
    %c0_2 = arith.constant 0 : index
    %c0_3 = arith.constant 0 : index
    %4 = vector.load %arg3[%c0_2, %c0_3] : memref<32x384xbf16, #tpu.memory_space<vmem>>, vector<32x384xbf16>
    %c0_4 = arith.constant 0 : index
    %c0_5 = arith.constant 0 : index
    %5 = vector.load %arg4[%c0_4, %c0_5] : memref<384x128xbf16, #tpu.memory_space<vmem>>, vector<384x128xbf16>
    %cst = arith.constant dense<0.000000e+00> : vector<32x128xf32>
    %6 = tpu.matmul %4, %5, %cst {dimension_numbers = #tpu.dot_dimension_numbers<[1], [0], [0], [1], [0, 0, 1, 1], [], []>} : vector<32x384xbf16>, vector<384x128xbf16>, vector<32x128xf32> -> vector<32x128xf32>
    %7 = arith.addf %3, %6 : vector<32x128xf32>
    %c0_6 = arith.constant 0 : index
    %c0_7 = arith.constant 0 : index
    %8 = vector.load %arg7[%c0_6, %c0_7] : memref<32x128xf32, #tpu.memory_space<vmem>>, vector<32x128xf32>
    tpu.vector_store %arg7[%c0_6, %c0_7], %7 {strides = array<i32>} : memref<32x128xf32, #tpu.memory_space<vmem>>, vector<32x128xf32>,
    %c0_i32_8 = arith.constant 0 : i32
    %9 = arith.cmpi eq, %arg2, %c0_i32_8 : i32
    %10 = arith.extui %9 : i1 to i32
    %c0_i32_9 = arith.constant 0 : i32
    %11 = arith.cmpi ne, %10, %c0_i32_9 : i32
    scf.if %11 {
      %c0_10 = arith.constant 0 : index
      %c0_11 = arith.constant 0 : index
      %12 = vector.load %arg7[%c0_10, %c0_11] : memref<32x128xf32, #tpu.memory_space<vmem>>, vector<32x128xf32>
      %13 = arith.truncf %12 : vector<32x128xf32> to vector<32x128xbf16>
      %c0_12 = arith.constant 0 : index
      %c0_13 = arith.constant 0 : index
      %14 = vector.load %arg5[%c0_12, %c0_13] : memref<32x128xbf16, #tpu.memory_space<vmem>>, vector<32x128xbf16>
      tpu.vector_store %arg5[%c0_12, %c0_13], %13 {strides = array<i32>} : memref<32x128xbf16, #tpu.memory_space<vmem>>, vector<32x128xbf16>,
      %cst_14 = arith.constant dense<0.000000e+00> : vector<128xf32>
      %15 = vector.multi_reduction <add>, %12, %cst_14 [0] : vector<32x128xf32> to vector<128xf32>
      %16 = vector.shape_cast %15 : vector<128xf32> to vector<1x128xf32>
      %17 = arith.mulf %12, %12 : vector<32x128xf32>
      %cst_15 = arith.constant dense<0.000000e+00> : vector<128xf32>
      %18 = vector.multi_reduction <add>, %17, %cst_15 [0] : vector<32x128xf32> to vector<128xf32>
      %19 = vector.shape_cast %18 : vector<128xf32> to vector<1x128xf32>
      %20 = tpu.iota {dimensions = array<i32: 0>} : vector<8x128xi32>
      %c0_i32_16 = arith.constant 0 : i32
      %21 = vector.broadcast %c0_i32_16 : i32 to vector<8x128xi32>
      %22 = arith.cmpi eq, %20, %21 : vector<8x128xi32>
      %c1_i32 = arith.constant 1 : i32
      %23 = vector.broadcast %c1_i32 : i32 to vector<8x128xi32>
      %24 = arith.cmpi eq, %20, %23 : vector<8x128xi32>
      %cst_17 = arith.constant 0.000000e+00 : f32
      %25 = vector.shape_cast %19 : vector<1x128xf32> to vector<1x128xf32>
      %26 = vector.broadcast %25 : vector<1x128xf32> to vector<8x128xf32>
      %27 = vector.broadcast %cst_17 : f32 to vector<8x128xf32>
      %28 = arith.select %24, %26, %27 : vector<8x128xi1>, vector<8x128xf32>
      %29 = vector.shape_cast %16 : vector<1x128xf32> to vector<1x128xf32>
      %30 = vector.broadcast %29 : vector<1x128xf32> to vector<8x128xf32>
      %31 = arith.select %22, %30, %28 : vector<8x128xi1>, vector<8x128xf32>
      %c0_18 = arith.constant 0 : index
      %c0_19 = arith.constant 0 : index
      %32 = vector.load %arg6[%c0_18, %c0_19] : memref<8x128xf32, #tpu.memory_space<vmem>>, vector<8x128xf32>
      tpu.vector_store %arg6[%c0_18, %c0_19], %31 {strides = array<i32>} : memref<8x128xf32, #tpu.memory_space<vmem>>, vector<8x128xf32>,
    } else {
    }
    return
  }
  func.func @transform_0(%arg0: i32, %arg1: i32, %arg2: i32) -> (i32, i32) {
    %c0_i32 = arith.constant 0 : i32
    return %arg0, %arg2 : i32, i32
  }
  func.func @transform_1(%arg0: i32, %arg1: i32, %arg2: i32) -> (i32, i32) {
    %c0_i32 = arith.constant 0 : i32
    return %arg2, %arg1 : i32, i32
  }
  func.func @transform_2(%arg0: i32, %arg1: i32, %arg2: i32) -> (i32, i32) {
    %c0_i32 = arith.constant 0 : i32
    return %arg0, %arg1 : i32, i32
  }
  func.func @transform_3(%arg0: i32, %arg1: i32, %arg2: i32) -> (i32, i32) {
    %c0_i32 = arith.constant 0 : i32
    return %arg0, %arg1 : i32, i32
  }
}

module attributes {stable_mosaic.version = 11 : i64} {
  func.func @_mm_stats_kernel(%arg0: i32, %arg1: i32, %arg2: i32, %arg3: memref<32x128xbf16, #tpu.memory_space<vmem>>, %arg4: memref<128x128xbf16, #tpu.memory_space<vmem>>, %arg5: memref<32x128xbf16, #tpu.memory_space<vmem>>, %arg6: memref<8x128xf32, #tpu.memory_space<vmem>>, %arg7: memref<32x128xf32, #tpu.memory_space<vmem>>) attributes {dimension_semantics = [#tpu.dimension_semantics<parallel>, #tpu.dimension_semantics<parallel>, #tpu.dimension_semantics<arbitrary>], iteration_bounds = array<i64: 1, 1, 1>, scalar_prefetch = 0 : i64, scratch_operands = 1 : i64, tpu.core_type = #tpu.core_type<tc>, window_params = [{transform_indices = @transform_0, window_bounds = array<i64: 32, 128>}, {transform_indices = @transform_1, window_bounds = array<i64: 128, 128>}, {transform_indices = @transform_2, window_bounds = array<i64: 32, 128>}, {transform_indices = @transform_3, window_bounds = array<i64: 8, 128>}]} {
    %c0_i32 = arith.constant 0 : i32
    %0 = arith.cmpi eq, %arg2, %c0_i32 : i32
    %1 = arith.extui %0 : i1 to i32
    %c0_i32_0 = arith.constant 0 : i32
    %2 = arith.cmpi ne, %1, %c0_i32_0 : i32
    scf.if %2 {
      %cst_10 = arith.constant 0.000000e+00 : f32
      %12 = vector.broadcast %cst_10 : f32 to vector<32x128xf32>
      %c0_11 = arith.constant 0 : index
      %c0_12 = arith.constant 0 : index
      %13 = vector.load %arg7[%c0_11, %c0_12] : memref<32x128xf32, #tpu.memory_space<vmem>>, vector<32x128xf32>
      tpu.vector_store %arg7[%c0_11, %c0_12], %12 {strides = array<i32>} : memref<32x128xf32, #tpu.memory_space<vmem>>, vector<32x128xf32>,
    } else {
    }
    %c0 = arith.constant 0 : index
    %c0_1 = arith.constant 0 : index
    %3 = vector.load %arg7[%c0, %c0_1] : memref<32x128xf32, #tpu.memory_space<vmem>>, vector<32x128xf32>
    %c0_2 = arith.constant 0 : index
    %c0_3 = arith.constant 0 : index
    %4 = vector.load %arg3[%c0_2, %c0_3] : memref<32x128xbf16, #tpu.memory_space<vmem>>, vector<32x128xbf16>
    %c0_4 = arith.constant 0 : index
    %c0_5 = arith.constant 0 : index
    %5 = vector.load %arg4[%c0_4, %c0_5] : memref<128x128xbf16, #tpu.memory_space<vmem>>, vector<128x128xbf16>
    %cst = arith.constant dense<0.000000e+00> : vector<32x128xf32>
    %6 = tpu.matmul %4, %5, %cst {dimension_numbers = #tpu.dot_dimension_numbers<[1], [0], [0], [1], [0, 0, 1, 1], [], []>} : vector<32x128xbf16>, vector<128x128xbf16>, vector<32x128xf32> -> vector<32x128xf32>
    %7 = arith.addf %3, %6 : vector<32x128xf32>
    %c0_6 = arith.constant 0 : index
    %c0_7 = arith.constant 0 : index
    %8 = vector.load %arg7[%c0_6, %c0_7] : memref<32x128xf32, #tpu.memory_space<vmem>>, vector<32x128xf32>
    tpu.vector_store %arg7[%c0_6, %c0_7], %7 {strides = array<i32>} : memref<32x128xf32, #tpu.memory_space<vmem>>, vector<32x128xf32>,
    %c0_i32_8 = arith.constant 0 : i32
    %9 = arith.cmpi eq, %arg2, %c0_i32_8 : i32
    %10 = arith.extui %9 : i1 to i32
    %c0_i32_9 = arith.constant 0 : i32
    %11 = arith.cmpi ne, %10, %c0_i32_9 : i32
    scf.if %11 {
      %c0_10 = arith.constant 0 : index
      %c0_11 = arith.constant 0 : index
      %12 = vector.load %arg7[%c0_10, %c0_11] : memref<32x128xf32, #tpu.memory_space<vmem>>, vector<32x128xf32>
      %13 = arith.truncf %12 : vector<32x128xf32> to vector<32x128xbf16>
      %c0_12 = arith.constant 0 : index
      %c0_13 = arith.constant 0 : index
      %14 = vector.load %arg5[%c0_12, %c0_13] : memref<32x128xbf16, #tpu.memory_space<vmem>>, vector<32x128xbf16>
      tpu.vector_store %arg5[%c0_12, %c0_13], %13 {strides = array<i32>} : memref<32x128xbf16, #tpu.memory_space<vmem>>, vector<32x128xbf16>,
      %cst_14 = arith.constant dense<0.000000e+00> : vector<128xf32>
      %15 = vector.multi_reduction <add>, %12, %cst_14 [0] : vector<32x128xf32> to vector<128xf32>
      %16 = vector.shape_cast %15 : vector<128xf32> to vector<1x128xf32>
      %17 = arith.mulf %12, %12 : vector<32x128xf32>
      %cst_15 = arith.constant dense<0.000000e+00> : vector<128xf32>
      %18 = vector.multi_reduction <add>, %17, %cst_15 [0] : vector<32x128xf32> to vector<128xf32>
      %19 = vector.shape_cast %18 : vector<128xf32> to vector<1x128xf32>
      %20 = tpu.iota {dimensions = array<i32: 0>} : vector<8x128xi32>
      %c0_i32_16 = arith.constant 0 : i32
      %21 = vector.broadcast %c0_i32_16 : i32 to vector<8x128xi32>
      %22 = arith.cmpi eq, %20, %21 : vector<8x128xi32>
      %c1_i32 = arith.constant 1 : i32
      %23 = vector.broadcast %c1_i32 : i32 to vector<8x128xi32>
      %24 = arith.cmpi eq, %20, %23 : vector<8x128xi32>
      %cst_17 = arith.constant 0.000000e+00 : f32
      %25 = vector.shape_cast %19 : vector<1x128xf32> to vector<1x128xf32>
      %26 = vector.broadcast %25 : vector<1x128xf32> to vector<8x128xf32>
      %27 = vector.broadcast %cst_17 : f32 to vector<8x128xf32>
      %28 = arith.select %24, %26, %27 : vector<8x128xi1>, vector<8x128xf32>
      %29 = vector.shape_cast %16 : vector<1x128xf32> to vector<1x128xf32>
      %30 = vector.broadcast %29 : vector<1x128xf32> to vector<8x128xf32>
      %31 = arith.select %22, %30, %28 : vector<8x128xi1>, vector<8x128xf32>
      %c0_18 = arith.constant 0 : index
      %c0_19 = arith.constant 0 : index
      %32 = vector.load %arg6[%c0_18, %c0_19] : memref<8x128xf32, #tpu.memory_space<vmem>>, vector<8x128xf32>
      tpu.vector_store %arg6[%c0_18, %c0_19], %31 {strides = array<i32>} : memref<8x128xf32, #tpu.memory_space<vmem>>, vector<8x128xf32>,
    } else {
    }
    return
  }
  func.func @transform_0(%arg0: i32, %arg1: i32, %arg2: i32) -> (i32, i32) {
    %c0_i32 = arith.constant 0 : i32
    return %arg0, %arg2 : i32, i32
  }
  func.func @transform_1(%arg0: i32, %arg1: i32, %arg2: i32) -> (i32, i32) {
    %c0_i32 = arith.constant 0 : i32
    return %arg2, %arg1 : i32, i32
  }
  func.func @transform_2(%arg0: i32, %arg1: i32, %arg2: i32) -> (i32, i32) {
    %c0_i32 = arith.constant 0 : i32
    return %arg0, %arg1 : i32, i32
  }
  func.func @transform_3(%arg0: i32, %arg1: i32, %arg2: i32) -> (i32, i32) {
    %c0_i32 = arith.constant 0 : i32
    return %arg0, %arg1 : i32, i32
  }
}

module attributes {stable_mosaic.version = 11 : i64} {
  func.func @_mm_bias_tanh_kernel(%arg0: i32, %arg1: i32, %arg2: i32, %arg3: memref<256x512xbf16, #tpu.memory_space<vmem>>, %arg4: memref<512x128xbf16, #tpu.memory_space<vmem>>, %arg5: memref<1x128xf32, #tpu.memory_space<vmem>>, %arg6: memref<256x128xf32, #tpu.memory_space<vmem>>, %arg7: memref<256x128xf32, #tpu.memory_space<vmem>>) attributes {dimension_semantics = [#tpu.dimension_semantics<parallel>, #tpu.dimension_semantics<parallel>, #tpu.dimension_semantics<arbitrary>], iteration_bounds = array<i64: 2, 1, 1>, scalar_prefetch = 0 : i64, scratch_operands = 1 : i64, tpu.core_type = #tpu.core_type<tc>, window_params = [{transform_indices = @transform_0, window_bounds = array<i64: 256, 512>}, {transform_indices = @transform_1, window_bounds = array<i64: 512, 128>}, {transform_indices = @transform_2, window_bounds = array<i64: 1, 128>}, {transform_indices = @transform_3, window_bounds = array<i64: 256, 128>}]} {
    %c0_i32 = arith.constant 0 : i32
    %0 = arith.cmpi eq, %arg2, %c0_i32 : i32
    %1 = arith.extui %0 : i1 to i32
    %c0_i32_0 = arith.constant 0 : i32
    %2 = arith.cmpi ne, %1, %c0_i32_0 : i32
    scf.if %2 {
      %cst_10 = arith.constant 0.000000e+00 : f32
      %12 = vector.broadcast %cst_10 : f32 to vector<256x128xf32>
      %c0_11 = arith.constant 0 : index
      %c0_12 = arith.constant 0 : index
      %13 = vector.load %arg7[%c0_11, %c0_12] : memref<256x128xf32, #tpu.memory_space<vmem>>, vector<256x128xf32>
      tpu.vector_store %arg7[%c0_11, %c0_12], %12 {strides = array<i32>} : memref<256x128xf32, #tpu.memory_space<vmem>>, vector<256x128xf32>,
    } else {
    }
    %c0 = arith.constant 0 : index
    %c0_1 = arith.constant 0 : index
    %3 = vector.load %arg7[%c0, %c0_1] : memref<256x128xf32, #tpu.memory_space<vmem>>, vector<256x128xf32>
    %c0_2 = arith.constant 0 : index
    %c0_3 = arith.constant 0 : index
    %4 = vector.load %arg3[%c0_2, %c0_3] : memref<256x512xbf16, #tpu.memory_space<vmem>>, vector<256x512xbf16>
    %c0_4 = arith.constant 0 : index
    %c0_5 = arith.constant 0 : index
    %5 = vector.load %arg4[%c0_4, %c0_5] : memref<512x128xbf16, #tpu.memory_space<vmem>>, vector<512x128xbf16>
    %cst = arith.constant dense<0.000000e+00> : vector<256x128xf32>
    %6 = tpu.matmul %4, %5, %cst {dimension_numbers = #tpu.dot_dimension_numbers<[1], [0], [0], [1], [0, 0, 1, 1], [], []>} : vector<256x512xbf16>, vector<512x128xbf16>, vector<256x128xf32> -> vector<256x128xf32>
    %7 = arith.addf %3, %6 : vector<256x128xf32>
    %c0_6 = arith.constant 0 : index
    %c0_7 = arith.constant 0 : index
    %8 = vector.load %arg7[%c0_6, %c0_7] : memref<256x128xf32, #tpu.memory_space<vmem>>, vector<256x128xf32>
    tpu.vector_store %arg7[%c0_6, %c0_7], %7 {strides = array<i32>} : memref<256x128xf32, #tpu.memory_space<vmem>>, vector<256x128xf32>,
    %c0_i32_8 = arith.constant 0 : i32
    %9 = arith.cmpi eq, %arg2, %c0_i32_8 : i32
    %10 = arith.extui %9 : i1 to i32
    %c0_i32_9 = arith.constant 0 : i32
    %11 = arith.cmpi ne, %10, %c0_i32_9 : i32
    scf.if %11 {
      %c0_10 = arith.constant 0 : index
      %c0_11 = arith.constant 0 : index
      %12 = vector.load %arg7[%c0_10, %c0_11] : memref<256x128xf32, #tpu.memory_space<vmem>>, vector<256x128xf32>
      %c0_12 = arith.constant 0 : index
      %c0_13 = arith.constant 0 : index
      %13 = vector.load %arg5[%c0_12, %c0_13] : memref<1x128xf32, #tpu.memory_space<vmem>>, vector<1x128xf32>
      %14 = vector.broadcast %13 : vector<1x128xf32> to vector<256x128xf32>
      %15 = arith.addf %12, %14 : vector<256x128xf32>
      %16 = math.tanh %15 : vector<256x128xf32>
      %c0_14 = arith.constant 0 : index
      %c0_15 = arith.constant 0 : index
      %17 = vector.load %arg6[%c0_14, %c0_15] : memref<256x128xf32, #tpu.memory_space<vmem>>, vector<256x128xf32>
      tpu.vector_store %arg6[%c0_14, %c0_15], %16 {strides = array<i32>} : memref<256x128xf32, #tpu.memory_space<vmem>>, vector<256x128xf32>,
    } else {
    }
    return
  }
  func.func @transform_0(%arg0: i32, %arg1: i32, %arg2: i32) -> (i32, i32) {
    %c0_i32 = arith.constant 0 : i32
    return %arg0, %arg2 : i32, i32
  }
  func.func @transform_1(%arg0: i32, %arg1: i32, %arg2: i32) -> (i32, i32) {
    %c0_i32 = arith.constant 0 : i32
    return %arg2, %arg1 : i32, i32
  }
  func.func @transform_2(%arg0: i32, %arg1: i32, %arg2: i32) -> (i32, i32) {
    %c0_i32 = arith.constant 0 : i32
    %c0_i32_0 = arith.constant 0 : i32
    return %c0_i32, %arg1 : i32, i32
  }
  func.func @transform_3(%arg0: i32, %arg1: i32, %arg2: i32) -> (i32, i32) {
    %c0_i32 = arith.constant 0 : i32
    return %arg0, %arg1 : i32, i32
  }
}

</mosaic_0001>

<llo_original>
// kernel: resnet_generator_forward.32
$region0: #{resnet_generator_forward.32}
  #allocation0 [shape = 'u32[]', space=smem, size = 0x4, offset = 0x4, fixed_abs, tag = 'smem constant byte address 0x4 - core index']
  #allocation1 [shape = 'u32[72,128]{1,0:T(1,128)}', space=vmem, size = 0x9000, scoped, tag = 'internal scratch']
  %s0 = inlined_call_operand.vmem [shape: bf16[512,128], index: 0, kind: input, shape index: {}]
  %s1 = inlined_call_operand.vmem [shape: f32[1,128], index: 1, kind: input, shape index: {}]
  %s2 = inlined_call_operand.vmem [shape: f32[1,128], index: 2, kind: input, shape index: {}]
  %s3 = inlined_call_operand.vmem [shape: bf16[512,128], index: 3, kind: output, shape index: {}]
  %s4 = sld [smem:[#allocation0]]
  $region45: #{resnet_generator_forward.32} parent=0
    _
  %s6 = ssub.s32 1, %s4
  %s7 = scalar_select 0, %s6, %s4
  loop: start=0, step=1, limit=4
  $region2: #{resnet_generator_forward.32} parent=0 // loop_pre_header
    _
  $region3: #{resnet_generator_forward.32} parent=0 // loop_header
    %s9 = sphi 0, %s13
    %p10 = scmp.ge.s32.totalorder %s9, 4
    %s16 = sphi 0, %s28
    %s17 = sphi 0, %s24
    %s18 = sphi 0, %s16
    %s19 = sphi 0, %s17
    %s20 = sphi 0, %s18
    %s21 = sphi 0, %s19
    %s33 = sphi 0, %s35
    %s36 = sphi 0, %s33
    %s37 = sphi 0, %s36
    %s53 = sphi 0, %s37
    %s59 = sphi 0, %s61
    %s62 = sphi 0, %s59
    %s63 = sphi 0, %s62
    %s79 = sphi 0, %s63
    %s85 = sphi 0, %s87
    %s88 = sphi 0, %s85
    %s89 = sphi 0, %s88
    %s105 = sphi 0, %s89
    %s113 = sphi 0, %s115
    %s116 = sphi 0, %s113
    %s117 = sphi 0, %s116
    %s133 = sphi 0, %s117
  $region4: #{resnet_generator_forward.32} parent=0 // loop_header_branch
    %12 = sbr.rel (%p10) target = $region8
  $region5: #{resnet_generator_forward.32} parent=0 // loop_body
    %s14 = ssub.s32 %s9, 1
    %s15 = ssub.s32 %s9, 2
    %s22 = sadd.s32 1, %s17
    %p23 = scmp.ge.s32.totalorder %s22, 1
    %s24 = scalar_select %p23, 0, %s22
    %s25 = sadd.s32 1, %s16
    %s26 = scalar_select %p23, %s25, %s16
    %p27 = scmp.ge.s32.totalorder %s26, 2
    %s28 = scalar_select %p27, 0, %s26
    %s29 = ssub.s32 %s16, %s28
    %s30 = ssub.s32 %s17, %s24
    %s31 = sor.u32 %s29, %s30
    %p32 = scmp.eq.s32.totalorder %s31, 0
    %s34 = sadd.s32 %s33, 1
    %s35 = scalar_select %p32, %s33, %s34
    %p38 = pneg %p32
    %p39 = scmp.eq.s32.totalorder %s9, 1
    %p40 = por %p38, %p39
    %p41 = scmp.ne.s32.totalorder %s33, %s36
    %p42 = scmp.eq.s32.totalorder %s9, 0
    %p43 = por %p41, %p42
    %p44 = scmp.ne.s32.totalorder %s33, %s36
    %p45 = scmp.eq.s32.totalorder %s14, 1
    %p46 = por %p44, %p45
    %p47 = scmp.ne.s32.totalorder %s36, %s37
    %p48 = scmp.eq.s32.totalorder %s14, 0
    %p49 = por %p47, %p48
    %p50 = scmp.ne.s32.totalorder %s36, %s37
    %p51 = scmp.eq.s32.totalorder %s15, 1
    %p52 = por %p50, %p51
    %p54 = scmp.ne.s32.totalorder %s37, %s53
    %p55 = scmp.eq.s32.totalorder %s15, 0
    %p56 = por %p54, %p55
    %s57 = ssub.s32 %s17, %s24
    %p58 = scmp.eq.s32.totalorder %s57, 0
    %s60 = sadd.s32 %s59, 1
    %s61 = scalar_select %p58, %s59, %s60
    %p64 = pneg %p58
    %p65 = scmp.eq.s32.totalorder %s9, 1
    %p66 = por %p64, %p65
    %p67 = scmp.ne.s32.totalorder %s59, %s62
    %p68 = scmp.eq.s32.totalorder %s9, 0
    %p69 = por %p67, %p68
    %p70 = scmp.ne.s32.totalorder %s59, %s62
    %p71 = scmp.eq.s32.totalorder %s14, 1
    %p72 = por %p70, %p71
    %p73 = scmp.ne.s32.totalorder %s62, %s63
    %p74 = scmp.eq.s32.totalorder %s14, 0
    %p75 = por %p73, %p74
    %p76 = scmp.ne.s32.totalorder %s62, %s63
    %p77 = scmp.eq.s32.totalorder %s15, 1
    %p78 = por %p76, %p77
    %p80 = scmp.ne.s32.totalorder %s63, %s79
    %p81 = scmp.eq.s32.totalorder %s15, 0
    %p82 = por %p80, %p81
    %s83 = ssub.s32 %s17, %s24
    %p84 = scmp.eq.s32.totalorder %s83, 0
    %s86 = sadd.s32 %s85, 1
    %s87 = scalar_select %p84, %s85, %s86
    %p90 = pneg %p84
    %p91 = scmp.eq.s32.totalorder %s9, 1
    %p92 = por %p90, %p91
    %p93 = scmp.ne.s32.totalorder %s85, %s88
    %p94 = scmp.eq.s32.totalorder %s9, 0
    %p95 = por %p93, %p94
    %p96 = scmp.ne.s32.totalorder %s85, %s88
    %p97 = scmp.eq.s32.totalorder %s14, 1
    %p98 = por %p96, %p97
    %p99 = scmp.ne.s32.totalorder %s88, %s89
    %p100 = scmp.eq.s32.totalorder %s14, 0
    %p101 = por %p99, %p100
    %p102 = scmp.ne.s32.totalorder %s88, %s89
    %p103 = scmp.eq.s32.totalorder %s15, 1
    %p104 = por %p102, %p103
    %p106 = scmp.ne.s32.totalorder %s89, %s105
    %p107 = scmp.eq.s32.totalorder %s15, 0
    %p108 = por %p106, %p107
    %s109 = ssub.s32 %s16, %s28
    %s110 = ssub.s32 %s17, %s24
    %s111 = sor.u32 %s109, %s110
    %p112 = scmp.eq.s32.totalorder %s111, 0
    %s114 = sadd.s32 %s113, 1
    %s115 = scalar_select %p112, %s113, %s114
    %p118 = pneg %p112
    %p119 = scmp.eq.s32.totalorder %s9, 1
    %p120 = por %p118, %p119
    %p121 = scmp.ne.s32.totalorder %s113, %s116
    %p122 = scmp.eq.s32.totalorder %s9, 0
    %p123 = por %p121, %p122
    %p124 = scmp.ne.s32.totalorder %s113, %s116
    %p125 = scmp.eq.s32.totalorder %s14, 1
    %p126 = por %p124, %p125
    %p127 = scmp.ne.s32.totalorder %s116, %s117
    %p128 = scmp.eq.s32.totalorder %s14, 0
    %p129 = por %p127, %p128
    %p130 = scmp.ne.s32.totalorder %s116, %s117
    %p131 = scmp.eq.s32.totalorder %s15, 1
    %p132 = por %p130, %p131
    %p134 = scmp.ne.s32.totalorder %s117, %s133
    %p135 = scmp.eq.s32.totalorder %s15, 0
    %p136 = por %p134, %p135
    %p137 = scmp.le.s32.totalorder 1, %s9
    %p138 = scmp.lt.s32.totalorder %s9, 3
    %p139 = pnand %p137, %p138
    %p140 = pneg %p139
    // Predicated region
    $region9: #{resnet_generator_forward.32} parent=5 // pred_check
      _
    $region10: #{resnet_generator_forward.32} parent=5 // pred_check_branch
      %142 = sbr.rel (%p139) target = $region12
    $region11: #{resnet_generator_forward.32} parent=5 // pred_region
      %s143 = ssub.s32 %s9, 1
      // Predicated region
      $region13: #{resnet_generator_forward.32} parent=11 // pred_check
        %p144 = pneg %p75
      $region14: #{resnet_generator_forward.32} parent=11 // pred_check_branch
        %146 = sbr.rel (%p144) target = $region16
      $region15: #{resnet_generator_forward.32} parent=11 // pred_region
        %p147 = scmp.lt.s32.totalorder %s19, 0
        %s148 = scalar_select %p147, %s19, 0
        %s149 = scalar_lea.vmem %s1, %s148
      $region16: #{resnet_generator_forward.32} parent=11 // pred_fallthru
        _
      // Predicated region
      $region17: #{resnet_generator_forward.32} parent=11 // pred_check
        %p150 = pneg %p101
      $region18: #{resnet_generator_forward.32} parent=11 // pred_check_branch
        %152 = sbr.rel (%p150) target = $region20
      $region19: #{resnet_generator_forward.32} parent=11 // pred_region
        %p153 = scmp.lt.s32.totalorder %s19, 0
        %s154 = scalar_select %p153, %s19, 0
        %s155 = scalar_lea.vmem %s2, %s154
      $region20: #{resnet_generator_forward.32} parent=11 // pred_fallthru
        _
    $region12: #{resnet_generator_forward.32} parent=5 // pred_fallthru
      _
    %p156 = scmp.lt.s32.totalorder %s9, 2
    // Predicated region
    $region21: #{resnet_generator_forward.32} parent=5 // pred_check
      %p157 = pneg %p156
    $region22: #{resnet_generator_forward.32} parent=5 // pred_check_branch
      %159 = sbr.rel (%p157) target = $region24
    $region23: #{resnet_generator_forward.32} parent=5 // pred_region
      // Predicated region
      $region25: #{resnet_generator_forward.32} parent=23 // pred_check
        %p160 = pneg %p43
      $region26: #{resnet_generator_forward.32} parent=23 // pred_check_branch
        %162 = sbr.rel (%p160) target = $region28
      $region27: #{resnet_generator_forward.32} parent=23 // pred_region
        %s163 = smul.u32 32, %s16
        %p164 = scmp.lt.s32.totalorder %s163, 63
        %s165 = scalar_select %p164, %s163, 63
        %p166 = scmp.lt.s32.totalorder %s17, 0
        %s167 = scalar_select %p166, %s17, 0
        %s168 = sadd.s32 %s167, %s165
        %s169 = smul.addr %s168, 4
        %s170 = scalar_lea.vmem %s0, %s169
        %s171 = smul.u32 32, %s16
      $region28: #{resnet_generator_forward.32} parent=23 // pred_fallthru
        _
    $region24: #{resnet_generator_forward.32} parent=5 // pred_fallthru
      _
    %p172 = scmp.le.s32.totalorder 1, %s9
    %p173 = scmp.lt.s32.totalorder %s9, 3
    %p174 = pnand %p172, %p173
    %p175 = pneg %p174
    // Predicated region
    $region29: #{resnet_generator_forward.32} parent=5 // pred_check
      _
    $region30: #{resnet_generator_forward.32} parent=5 // pred_check_branch
      %177 = sbr.rel (%p174) target = $region32
    $region31: #{resnet_generator_forward.32} parent=5 // pred_region
      %s178 = ssub.s32 %s9, 1
      %s179 = smul.u32 32, %s18
      %p180 = scmp.lt.s32.totalorder %s179, 63
      %s181 = scalar_select %p180, %s179, 63
      %p182 = scmp.lt.s32.totalorder %s19, 0
      %s183 = scalar_select %p182, %s19, 0
      %s184 = sadd.s32 %s183, %s181
      %s185 = smul.addr %s184, 4
      %s186 = scalar_lea.vmem %s0, %s185
      %p187 = pneg %p49
      %p188 = pneg %p46
      %p189 = scmp.lt.s32.totalorder %s19, 0
      %s190 = scalar_select %p189, %s19, 0
      %s191 = scalar_lea.vmem %s1, %s190
      %p192 = pneg %p75
      %p193 = pneg %p72
      %p194 = scmp.lt.s32.totalorder %s19, 0
      %s195 = scalar_select %p194, %s19, 0
      %s196 = scalar_lea.vmem %s2, %s195
      %p197 = pneg %p101
      %p198 = pneg %p98
      %p199 = pneg %p129
      %p200 = pneg %p126
      %s201 = smul.u32 32, %s18
      %p202 = scmp.lt.s32.totalorder %s201, 63
      %s203 = scalar_select %p202, %s201, 63
      %p204 = scmp.lt.s32.totalorder %s19, 0
      %s205 = scalar_select %p204, %s19, 0
      %s206 = sadd.s32 %s205, %s203
      %s207 = smul.addr %s206, 4
      %s208 = scalar_lea.vmem %s3, %s207
      %s209 = smul.u32 32, %s18
      %p210 = scmp.lt.s32.totalorder %s209, 63
      %s211 = scalar_select %p210, %s209, 63
      %p212 = scmp.lt.s32.totalorder %s19, 0
      %s213 = scalar_select %p212, %s19, 0
      %s214 = sadd.s32 %s213, %s211
      %s215 = smul.addr %s214, 4
      %s216 = scalar_lea.vmem %s0, %s215
      %s217 = smul.u32 32, %s18
      %p218 = scmp.lt.s32.totalorder %s19, 0
      %s219 = scalar_select %p218, %s19, 0
      %s220 = scalar_lea.vmem %s1, %s219
      %p221 = scmp.lt.s32.totalorder %s19, 0
      %s222 = scalar_select %p221, %s19, 0
      %s223 = scalar_lea.vmem %s2, %s222
      %s224 = smul.u32 32, %s18
      %p225 = scmp.lt.s32.totalorder %s224, 63
      %s226 = scalar_select %p225, %s224, 63
      %p227 = scmp.lt.s32.totalorder %s19, 0
      %s228 = scalar_select %p227, %s19, 0
      %s229 = sadd.s32 %s228, %s226
      %s230 = smul.addr %s229, 4
      %s231 = scalar_lea.vmem %s3, %s230
      %s232 = smul.u32 32, %s18
      %v233 = vld [vmem:[%s216] sm:$0xf]
      %v234 = vld [vmem:[%s216 + $0x4] sm:$0xf]
      %v235 = vld [vmem:[%s216 + $0x8] sm:$0xf]
      %v236 = vld [vmem:[%s216 + $0xc] sm:$0xf]
      %v237 = vld [vmem:[%s216 + $0x10] sm:$0xf]
      %v238 = vld [vmem:[%s216 + $0x14] sm:$0xf]
      %v239 = vld [vmem:[%s216 + $0x18] sm:$0xf]
      %v240 = vld [vmem:[%s216 + $0x1c] sm:$0xf]
      %v241 = vld [vmem:[%s216 + $0x20] sm:$0xf]
      %v242 = vld [vmem:[%s216 + $0x24] sm:$0xf]
      %v243 = vld [vmem:[%s216 + $0x28] sm:$0xf]
      %v244 = vld [vmem:[%s216 + $0x2c] sm:$0xf]
      %v245 = vld [vmem:[%s216 + $0x30] sm:$0xf]
      %v246 = vld [vmem:[%s216 + $0x34] sm:$0xf]
      %v247 = vld [vmem:[%s216 + $0x38] sm:$0xf]
      %v248 = vld [vmem:[%s216 + $0x3c] sm:$0xf]
      %v249 = vld [vmem:[%s216 + $0x40] sm:$0xf]
      %v250 = vld [vmem:[%s216 + $0x44] sm:$0xf]
      %v251 = vld [vmem:[%s216 + $0x48] sm:$0xf]
      %v252 = vld [vmem:[%s216 + $0x4c] sm:$0xf]
      %v253 = vld [vmem:[%s216 + $0x50] sm:$0xf]
      %v254 = vld [vmem:[%s216 + $0x54] sm:$0xf]
      %v255 = vld [vmem:[%s216 + $0x58] sm:$0xf]
      %v256 = vld [vmem:[%s216 + $0x5c] sm:$0xf]
      %v257 = vld [vmem:[%s216 + $0x60] sm:$0xf]
      %v258 = vld [vmem:[%s216 + $0x64] sm:$0xf]
      %v259 = vld [vmem:[%s216 + $0x68] sm:$0xf]
      %v260 = vld [vmem:[%s216 + $0x6c] sm:$0xf]
      %v261 = vld [vmem:[%s216 + $0x70] sm:$0xf]
      %v262 = vld [vmem:[%s216 + $0x74] sm:$0xf]
      %v263 = vld [vmem:[%s216 + $0x78] sm:$0xf]
      %v264 = vld [vmem:[%s216 + $0x7c] sm:$0xf]
      %v265 = vunpack.c.l.bf16 %v233
      %v266 = vunpack.c.l.bf16 %v234
      %v267 = vunpack.c.l.bf16 %v235
      %v268 = vunpack.c.l.bf16 %v236
      %v269 = vunpack.c.l.bf16 %v237
      %v270 = vunpack.c.l.bf16 %v238
      %v271 = vunpack.c.l.bf16 %v239
      %v272 = vunpack.c.l.bf16 %v240
      %v273 = vunpack.c.l.bf16 %v241
      %v274 = vunpack.c.l.bf16 %v242
      %v275 = vunpack.c.l.bf16 %v243
      %v276 = vunpack.c.l.bf16 %v244
      %v277 = vunpack.c.l.bf16 %v245
      %v278 = vunpack.c.l.bf16 %v246
      %v279 = vunpack.c.l.bf16 %v247
      %v280 = vunpack.c.l.bf16 %v248
      %v281 = vunpack.c.l.bf16 %v249
      %v282 = vunpack.c.l.bf16 %v250
      %v283 = vunpack.c.l.bf16 %v251
      %v284 = vunpack.c.l.bf16 %v252
      %v285 = vunpack.c.l.bf16 %v253
      %v286 = vunpack.c.l.bf16 %v254
      %v287 = vunpack.c.l.bf16 %v255
      %v288 = vunpack.c.l.bf16 %v256
      %v289 = vunpack.c.l.bf16 %v257
      %v290 = vunpack.c.l.bf16 %v258
      %v291 = vunpack.c.l.bf16 %v259
      %v292 = vunpack.c.l.bf16 %v260
      %v293 = vunpack.c.l.bf16 %v261
      %v294 = vunpack.c.l.bf16 %v262
      %v295 = vunpack.c.l.bf16 %v263
      %v296 = vunpack.c.l.bf16 %v264
      %v297 = vld [vmem:[%s220] sm:$0x1]
      %v299 = vperm.slane %v297, 0
      %v301 = vmul.f32 %v265, %v299
      %v302 = vmul.f32 %v266, %v299
      %v303 = vmul.f32 %v267, %v299
      %v304 = vmul.f32 %v268, %v299
      %v305 = vmul.f32 %v269, %v299
      %v306 = vmul.f32 %v270, %v299
      %v307 = vmul.f32 %v271, %v299
      %v308 = vmul.f32 %v272, %v299
      %v309 = vmul.f32 %v273, %v299
      %v310 = vmul.f32 %v274, %v299
      %v311 = vmul.f32 %v275, %v299
      %v312 = vmul.f32 %v276, %v299
      %v313 = vmul.f32 %v277, %v299
      %v314 = vmul.f32 %v278, %v299
      %v315 = vmul.f32 %v279, %v299
      %v316 = vmul.f32 %v280, %v299
      %v317 = vmul.f32 %v281, %v299
      %v318 = vmul.f32 %v282, %v299
      %v319 = vmul.f32 %v283, %v299
      %v320 = vmul.f32 %v284, %v299
      %v321 = vmul.f32 %v285, %v299
      %v322 = vmul.f32 %v286, %v299
      %v323 = vmul.f32 %v287, %v299
      %v324 = vmul.f32 %v288, %v299
      %v325 = vmul.f32 %v289, %v299
      %v326 = vmul.f32 %v290, %v299
      %v327 = vmul.f32 %v291, %v299
      %v328 = vmul.f32 %v292, %v299
      %v329 = vmul.f32 %v293, %v299
      %v330 = vmul.f32 %v294, %v299
      %v331 = vmul.f32 %v295, %v299
      %v332 = vmul.f32 %v296, %v299
      %v333 = vld [vmem:[%s223] sm:$0x1]
      %v335 = vperm.slane %v333, 0
      %v337 = vadd.f32 %v301, %v335
      %v338 = vadd.f32 %v302, %v335
      %v339 = vadd.f32 %v303, %v335
      %v340 = vadd.f32 %v304, %v335
      %v341 = vadd.f32 %v305, %v335
      %v342 = vadd.f32 %v306, %v335
      %v343 = vadd.f32 %v307, %v335
      %v344 = vadd.f32 %v308, %v335
      %v345 = vadd.f32 %v309, %v335
      %v346 = vadd.f32 %v310, %v335
      %v347 = vadd.f32 %v311, %v335
      %v348 = vadd.f32 %v312, %v335
      %v349 = vadd.f32 %v313, %v335
      %v350 = vadd.f32 %v314, %v335
      %v351 = vadd.f32 %v315, %v335
      %v352 = vadd.f32 %v316, %v335
      %v353 = vadd.f32 %v317, %v335
      %v354 = vadd.f32 %v318, %v335
      %v355 = vadd.f32 %v319, %v335
      %v356 = vadd.f32 %v320, %v335
      %v357 = vadd.f32 %v321, %v335
      %v358 = vadd.f32 %v322, %v335
      %v359 = vadd.f32 %v323, %v335
      %v360 = vadd.f32 %v324, %v335
      %v361 = vadd.f32 %v325, %v335
      %v362 = vadd.f32 %v326, %v335
      %v363 = vadd.f32 %v327, %v335
      %v364 = vadd.f32 %v328, %v335
      %v365 = vadd.f32 %v329, %v335
      %v366 = vadd.f32 %v330, %v335
      %v367 = vadd.f32 %v331, %v335
      %v368 = vadd.f32 %v332, %v335
      %v369 = vmax.f32 %v337, 0.0
      %v370 = vmax.f32 %v338, 0.0
      %v371 = vmax.f32 %v339, 0.0
      %v372 = vmax.f32 %v340, 0.0
      %v373 = vmax.f32 %v341, 0.0
      %v374 = vmax.f32 %v342, 0.0
      %v375 = vmax.f32 %v343, 0.0
      %v376 = vmax.f32 %v344, 0.0
      %v377 = vmax.f32 %v345, 0.0
      %v378 = vmax.f32 %v346, 0.0
      %v379 = vmax.f32 %v347, 0.0
      %v380 = vmax.f32 %v348, 0.0
      %v381 = vmax.f32 %v349, 0.0
      %v382 = vmax.f32 %v350, 0.0
      %v383 = vmax.f32 %v351, 0.0
      %v384 = vmax.f32 %v352, 0.0
      %v385 = vmax.f32 %v353, 0.0
      %v386 = vmax.f32 %v354, 0.0
      %v387 = vmax.f32 %v355, 0.0
      %v388 = vmax.f32 %v356, 0.0
      %v389 = vmax.f32 %v357, 0.0
      %v390 = vmax.f32 %v358, 0.0
      %v391 = vmax.f32 %v359, 0.0
      %v392 = vmax.f32 %v360, 0.0
      %v393 = vmax.f32 %v361, 0.0
      %v394 = vmax.f32 %v362, 0.0
      %v395 = vmax.f32 %v363, 0.0
      %v396 = vmax.f32 %v364, 0.0
      %v397 = vmax.f32 %v365, 0.0
      %v398 = vmax.f32 %v366, 0.0
      %v399 = vmax.f32 %v367, 0.0
      %v400 = vmax.f32 %v368, 0.0
      %v401 = vpack.c.bf16 %v369, %v369
      %v402 = vpack.c.bf16 %v370, %v370
      %v403 = vpack.c.bf16 %v371, %v371
      %v404 = vpack.c.bf16 %v372, %v372
      %v405 = vpack.c.bf16 %v373, %v373
      %v406 = vpack.c.bf16 %v374, %v374
      %v407 = vpack.c.bf16 %v375, %v375
      %v408 = vpack.c.bf16 %v376, %v376
      %v409 = vpack.c.bf16 %v377, %v377
      %v410 = vpack.c.bf16 %v378, %v378
      %v411 = vpack.c.bf16 %v379, %v379
      %v412 = vpack.c.bf16 %v380, %v380
      %v413 = vpack.c.bf16 %v381, %v381
      %v414 = vpack.c.bf16 %v382, %v382
      %v415 = vpack.c.bf16 %v383, %v383
      %v416 = vpack.c.bf16 %v384, %v384
      %v417 = vpack.c.bf16 %v385, %v385
      %v418 = vpack.c.bf16 %v386, %v386
      %v419 = vpack.c.bf16 %v387, %v387
      %v420 = vpack.c.bf16 %v388, %v388
      %v421 = vpack.c.bf16 %v389, %v389
      %v422 = vpack.c.bf16 %v390, %v390
      %v423 = vpack.c.bf16 %v391, %v391
      %v424 = vpack.c.bf16 %v392, %v392
      %v425 = vpack.c.bf16 %v393, %v393
      %v426 = vpack.c.bf16 %v394, %v394
      %v427 = vpack.c.bf16 %v395, %v395
      %v428 = vpack.c.bf16 %v396, %v396
      %v429 = vpack.c.bf16 %v397, %v397
      %v430 = vpack.c.bf16 %v398, %v398
      %v431 = vpack.c.bf16 %v399, %v399
      %v432 = vpack.c.bf16 %v400, %v400
      %433 = vst [vmem:[%s231] sm:$0xf] %v401
      %434 = vst [vmem:[%s231 + $0x4] sm:$0xf] %v402
      %435 = vst [vmem:[%s231 + $0x8] sm:$0xf] %v403
      %436 = vst [vmem:[%s231 + $0xc] sm:$0xf] %v404
      %437 = vst [vmem:[%s231 + $0x10] sm:$0xf] %v405
      %438 = vst [vmem:[%s231 + $0x14] sm:$0xf] %v406
      %439 = vst [vmem:[%s231 + $0x18] sm:$0xf] %v407
      %440 = vst [vmem:[%s231 + $0x1c] sm:$0xf] %v408
      %441 = vst [vmem:[%s231 + $0x20] sm:$0xf] %v409
      %442 = vst [vmem:[%s231 + $0x24] sm:$0xf] %v410
      %443 = vst [vmem:[%s231 + $0x28] sm:$0xf] %v411
      %444 = vst [vmem:[%s231 + $0x2c] sm:$0xf] %v412
      %445 = vst [vmem:[%s231 + $0x30] sm:$0xf] %v413
      %446 = vst [vmem:[%s231 + $0x34] sm:$0xf] %v414
      %447 = vst [vmem:[%s231 + $0x38] sm:$0xf] %v415
      %448 = vst [vmem:[%s231 + $0x3c] sm:$0xf] %v416
      %449 = vst [vmem:[%s231 + $0x40] sm:$0xf] %v417
      %450 = vst [vmem:[%s231 + $0x44] sm:$0xf] %v418
      %451 = vst [vmem:[%s231 + $0x48] sm:$0xf] %v419
      %452 = vst [vmem:[%s231 + $0x4c] sm:$0xf] %v420
      %453 = vst [vmem:[%s231 + $0x50] sm:$0xf] %v421
      %454 = vst [vmem:[%s231 + $0x54] sm:$0xf] %v422
      %455 = vst [vmem:[%s231 + $0x58] sm:$0xf] %v423
      %456 = vst [vmem:[%s231 + $0x5c] sm:$0xf] %v424
      %457 = vst [vmem:[%s231 + $0x60] sm:$0xf] %v425
      %458 = vst [vmem:[%s231 + $0x64] sm:$0xf] %v426
      %459 = vst [vmem:[%s231 + $0x68] sm:$0xf] %v427
      %460 = vst [vmem:[%s231 + $0x6c] sm:$0xf] %v428
      %461 = vst [vmem:[%s231 + $0x70] sm:$0xf] %v429
      %462 = vst [vmem:[%s231 + $0x74] sm:$0xf] %v430
      %463 = vst [vmem:[%s231 + $0x78] sm:$0xf] %v431
      %464 = vst [vmem:[%s231 + $0x7c] sm:$0xf] %v432
      %s465 = smul.u32 32, %s18
      %p466 = scmp.lt.s32.totalorder %s465, 63
      %s467 = scalar_select %p466, %s465, 63
      %p468 = scmp.lt.s32.totalorder %s19, 0
      %s469 = scalar_select %p468, %s19, 0
      %s470 = sadd.s32 %s469, %s467
      %s471 = smul.addr %s470, 4
      %s472 = scalar_lea.vmem %s3, %s471
      // Predicated region
      $region33: #{resnet_generator_forward.32} parent=31 // pred_check
        %p473 = pneg %p126
      $region34: #{resnet_generator_forward.32} parent=31 // pred_check_branch
        %475 = sbr.rel (%p473) target = $region36
      $region35: #{resnet_generator_forward.32} parent=31 // pred_region
        %s476 = smul.u32 32, %s18
      $region36: #{resnet_generator_forward.32} parent=31 // pred_fallthru
        _
    $region32: #{resnet_generator_forward.32} parent=5 // pred_fallthru
      _
    %p477 = scmp.le.s32.totalorder 2, %s9
    // Predicated region
    $region37: #{resnet_generator_forward.32} parent=5 // pred_check
      %p478 = pneg %p477
    $region38: #{resnet_generator_forward.32} parent=5 // pred_check_branch
      %480 = sbr.rel (%p478) target = $region40
    $region39: #{resnet_generator_forward.32} parent=5 // pred_region
      %s481 = ssub.s32 %s9, 2
      // Predicated region
      $region41: #{resnet_generator_forward.32} parent=39 // pred_check
        %p482 = pneg %p132
      $region42: #{resnet_generator_forward.32} parent=39 // pred_check_branch
        %484 = sbr.rel (%p482) target = $region44
      $region43: #{resnet_generator_forward.32} parent=39 // pred_region
        %s485 = smul.u32 32, %s20
        %p486 = scmp.lt.s32.totalorder %s485, 63
        %s487 = scalar_select %p486, %s485, 63
        %p488 = scmp.lt.s32.totalorder %s21, 0
        %s489 = scalar_select %p488, %s21, 0
        %s490 = sadd.s32 %s489, %s487
        %s491 = smul.addr %s490, 4
        %s492 = scalar_lea.vmem %s3, %s491
      $region44: #{resnet_generator_forward.32} parent=39 // pred_fallthru
        _
    $region40: #{resnet_generator_forward.32} parent=5 // pred_fallthru
      _
  $region6: #{resnet_generator_forward.32} parent=0 // loop_footer
    %s13 = sadd.s32 1, %s9
  $region7: #{resnet_generator_forward.32} parent=0 // loop_footer_branch
    %8 = sbr.rel target = $region3
  $region8: #{resnet_generator_forward.32} parent=0 // loop_exit
    _

// kernel: resnet_generator_forward.31
$region0: #{resnet_generator_forward.31}
  #allocation0 [shape = 'u32[]', space=smem, size = 0x4, offset = 0x4, fixed_abs, tag = 'smem constant byte address 0x4 - core index']
  #allocation1 [shape = 'u32[72,128]{1,0:T(1,128)}', space=vmem, size = 0x9000, scoped, tag = 'internal scratch']
  #allocation2 [shape = 'f32[256,128]{1,0:T(8,128)}', space=vmem, size = 0x20000, scoped, tag = 'scratch operand']
  %s0 = inlined_call_operand.vmem [shape: bf16[512,256], index: 0, kind: input, shape index: {}]
  %s1 = inlined_call_operand.vmem [shape: bf16[256,128], index: 1, kind: input, shape index: {}]
  %s2 = inlined_call_operand.vmem [shape: bf16[512,128], index: 2, kind: output, shape index: {0}]
  %s3 = inlined_call_operand.vmem [shape: f32[16,128], index: 3, kind: output, shape index: {1}]
  %4 = xla_tuple %s2, %s3
  %s5 = sld [smem:[#allocation0]]
  $region57: #{resnet_generator_forward.31} parent=0
    _
  %s7 = ssub.s32 1, %s5
  %s8 = scalar_select 0, %s7, %s5
  loop: start=0, step=1, limit=4
  $region2: #{resnet_generator_forward.31} parent=0 // loop_pre_header
    _
  $region3: #{resnet_generator_forward.31} parent=0 // loop_header
    %s10 = sphi 0, %s14
    %p11 = scmp.ge.s32.totalorder %s10, 4
    %s17 = sphi 0, %s36
    %s18 = sphi 0, %s32
    %s19 = sphi 0, %s28
    %s20 = sphi 0, %s17
    %s21 = sphi 0, %s18
    %s22 = sphi 0, %s19
    %s23 = sphi 0, %s20
    %s24 = sphi 0, %s21
    %s25 = sphi 0, %s22
    %s41 = sphi 0, %s43
    %s44 = sphi 0, %s41
    %s45 = sphi 0, %s44
    %s61 = sphi 0, %s45
    %s69 = sphi 0, %s71
    %s72 = sphi 0, %s69
    %s73 = sphi 0, %s72
    %s89 = sphi 0, %s73
    %s97 = sphi 0, %s99
    %s100 = sphi 0, %s97
    %s101 = sphi 0, %s100
    %s117 = sphi 0, %s101
    %s125 = sphi 0, %s127
    %s128 = sphi 0, %s125
    %s129 = sphi 0, %s128
    %s145 = sphi 0, %s129
  $region4: #{resnet_generator_forward.31} parent=0 // loop_header_branch
    %13 = sbr.rel (%p11) target = $region8
  $region5: #{resnet_generator_forward.31} parent=0 // loop_body
    %s15 = ssub.s32 %s10, 1
    %s16 = ssub.s32 %s10, 2
    %s26 = sadd.s32 1, %s19
    %p27 = scmp.ge.s32.totalorder %s26, 1
    %s28 = scalar_select %p27, 0, %s26
    %s29 = sadd.s32 1, %s18
    %s30 = scalar_select %p27, %s29, %s18
    %p31 = scmp.ge.s32.totalorder %s30, 1
    %s32 = scalar_select %p31, 0, %s30
    %s33 = sadd.s32 1, %s17
    %s34 = scalar_select %p31, %s33, %s17
    %p35 = scmp.ge.s32.totalorder %s34, 2
    %s36 = scalar_select %p35, 0, %s34
    %s37 = ssub.s32 %s17, %s36
    %s38 = ssub.s32 %s19, %s28
    %s39 = sor.u32 %s37, %s38
    %p40 = scmp.eq.s32.totalorder %s39, 0
    %s42 = sadd.s32 %s41, 1
    %s43 = scalar_select %p40, %s41, %s42
    %p46 = pneg %p40
    %p47 = scmp.eq.s32.totalorder %s10, 1
    %p48 = por %p46, %p47
    %p49 = scmp.ne.s32.totalorder %s41, %s44
    %p50 = scmp.eq.s32.totalorder %s10, 0
    %p51 = por %p49, %p50
    %p52 = scmp.ne.s32.totalorder %s41, %s44
    %p53 = scmp.eq.s32.totalorder %s15, 1
    %p54 = por %p52, %p53
    %p55 = scmp.ne.s32.totalorder %s44, %s45
    %p56 = scmp.eq.s32.totalorder %s15, 0
    %p57 = por %p55, %p56
    %p58 = scmp.ne.s32.totalorder %s44, %s45
    %p59 = scmp.eq.s32.totalorder %s16, 1
    %p60 = por %p58, %p59
    %p62 = scmp.ne.s32.totalorder %s45, %s61
    %p63 = scmp.eq.s32.totalorder %s16, 0
    %p64 = por %p62, %p63
    %s65 = ssub.s32 %s19, %s28
    %s66 = ssub.s32 %s18, %s32
    %s67 = sor.u32 %s65, %s66
    %p68 = scmp.eq.s32.totalorder %s67, 0
    %s70 = sadd.s32 %s69, 1
    %s71 = scalar_select %p68, %s69, %s70
    %p74 = pneg %p68
    %p75 = scmp.eq.s32.totalorder %s10, 1
    %p76 = por %p74, %p75
    %p77 = scmp.ne.s32.totalorder %s69, %s72
    %p78 = scmp.eq.s32.totalorder %s10, 0
    %p79 = por %p77, %p78
    %p80 = scmp.ne.s32.totalorder %s69, %s72
    %p81 = scmp.eq.s32.totalorder %s15, 1
    %p82 = por %p80, %p81
    %p83 = scmp.ne.s32.totalorder %s72, %s73
    %p84 = scmp.eq.s32.totalorder %s15, 0
    %p85 = por %p83, %p84
    %p86 = scmp.ne.s32.totalorder %s72, %s73
    %p87 = scmp.eq.s32.totalorder %s16, 1
    %p88 = por %p86, %p87
    %p90 = scmp.ne.s32.totalorder %s73, %s89
    %p91 = scmp.eq.s32.totalorder %s16, 0
    %p92 = por %p90, %p91
    %s93 = ssub.s32 %s17, %s36
    %s94 = ssub.s32 %s18, %s32
    %s95 = sor.u32 %s93, %s94
    %p96 = scmp.eq.s32.totalorder %s95, 0
    %s98 = sadd.s32 %s97, 1
    %s99 = scalar_select %p96, %s97, %s98
    %p102 = pneg %p96
    %p103 = scmp.eq.s32.totalorder %s10, 1
    %p104 = por %p102, %p103
    %p105 = scmp.ne.s32.totalorder %s97, %s100
    %p106 = scmp.eq.s32.totalorder %s10, 0
    %p107 = por %p105, %p106
    %p108 = scmp.ne.s32.totalorder %s97, %s100
    %p109 = scmp.eq.s32.totalorder %s15, 1
    %p110 = por %p108, %p109
    %p111 = scmp.ne.s32.totalorder %s100, %s101
    %p112 = scmp.eq.s32.totalorder %s15, 0
    %p113 = por %p111, %p112
    %p114 = scmp.ne.s32.totalorder %s100, %s101
    %p115 = scmp.eq.s32.totalorder %s16, 1
    %p116 = por %p114, %p115
    %p118 = scmp.ne.s32.totalorder %s101, %s117
    %p119 = scmp.eq.s32.totalorder %s16, 0
    %p120 = por %p118, %p119
    %s121 = ssub.s32 %s17, %s36
    %s122 = ssub.s32 %s18, %s32
    %s123 = sor.u32 %s121, %s122
    %p124 = scmp.eq.s32.totalorder %s123, 0
    %s126 = sadd.s32 %s125, 1
    %s127 = scalar_select %p124, %s125, %s126
    %p130 = pneg %p124
    %p131 = scmp.eq.s32.totalorder %s10, 1
    %p132 = por %p130, %p131
    %p133 = scmp.ne.s32.totalorder %s125, %s128
    %p134 = scmp.eq.s32.totalorder %s10, 0
    %p135 = por %p133, %p134
    %p136 = scmp.ne.s32.totalorder %s125, %s128
    %p137 = scmp.eq.s32.totalorder %s15, 1
    %p138 = por %p136, %p137
    %p139 = scmp.ne.s32.totalorder %s128, %s129
    %p140 = scmp.eq.s32.totalorder %s15, 0
    %p141 = por %p139, %p140
    %p142 = scmp.ne.s32.totalorder %s128, %s129
    %p143 = scmp.eq.s32.totalorder %s16, 1
    %p144 = por %p142, %p143
    %p146 = scmp.ne.s32.totalorder %s129, %s145
    %p147 = scmp.eq.s32.totalorder %s16, 0
    %p148 = por %p146, %p147
    %p149 = scmp.le.s32.totalorder 1, %s10
    %p150 = scmp.lt.s32.totalorder %s10, 3
    %p151 = pnand %p149, %p150
    %p152 = pneg %p151
    // Predicated region
    $region9: #{resnet_generator_forward.31} parent=5 // pred_check
      _
    $region10: #{resnet_generator_forward.31} parent=5 // pred_check_branch
      %154 = sbr.rel (%p151) target = $region12
    $region11: #{resnet_generator_forward.31} parent=5 // pred_region
      %s155 = ssub.s32 %s10, 1
      // Predicated region
      $region13: #{resnet_generator_forward.31} parent=11 // pred_check
        %p156 = pneg %p85
      $region14: #{resnet_generator_forward.31} parent=11 // pred_check_branch
        %158 = sbr.rel (%p156) target = $region16
      $region15: #{resnet_generator_forward.31} parent=11 // pred_region
        %s159 = smul.u32 32, %s22
        %p160 = scmp.lt.s32.totalorder %s159, 31
        %s161 = scalar_select %p160, %s159, 31
        %p162 = scmp.lt.s32.totalorder %s21, 0
        %s163 = scalar_select %p162, %s21, 0
        %s164 = sadd.s32 %s163, %s161
        %s165 = smul.addr %s164, 4
        %s166 = scalar_lea.vmem %s1, %s165
        %s167 = smul.u32 32, %s22
      $region16: #{resnet_generator_forward.31} parent=11 // pred_fallthru
        _
    $region12: #{resnet_generator_forward.31} parent=5 // pred_fallthru
      _
    %p168 = scmp.lt.s32.totalorder %s10, 2
    // Predicated region
    $region17: #{resnet_generator_forward.31} parent=5 // pred_check
      %p169 = pneg %p168
    $region18: #{resnet_generator_forward.31} parent=5 // pred_check_branch
      %171 = sbr.rel (%p169) target = $region20
    $region19: #{resnet_generator_forward.31} parent=5 // pred_region
      // Predicated region
      $region21: #{resnet_generator_forward.31} parent=19 // pred_check
        %p172 = pneg %p51
      $region22: #{resnet_generator_forward.31} parent=19 // pred_check_branch
        %174 = sbr.rel (%p172) target = $region24
      $region23: #{resnet_generator_forward.31} parent=19 // pred_region
        %s175 = smul.u32 32, %s17
        %s176 = smul.u32 2, %s19
        %p177 = scmp.lt.s32.totalorder %s175, 63
        %s178 = scalar_select %p177, %s175, 63
        %p179 = scmp.lt.s32.totalorder %s176, 1
        %s180 = scalar_select %p179, %s176, 1
        %s181 = smul.addr %s178, 2
        %s182 = sadd.s32 %s180, %s181
        %s183 = smul.addr %s182, 4
        %s184 = scalar_lea.vmem %s0, %s183
        %s185 = smul.u32 32, %s17
        %s186 = smul.u32 2, %s19
      $region24: #{resnet_generator_forward.31} parent=19 // pred_fallthru
        _
    $region20: #{resnet_generator_forward.31} parent=5 // pred_fallthru
      _
    %p187 = scmp.le.s32.totalorder 1, %s10
    %p188 = scmp.lt.s32.totalorder %s10, 3
    %p189 = pnand %p187, %p188
    %p190 = pneg %p189
    // Predicated region
    $region25: #{resnet_generator_forward.31} parent=5 // pred_check
      _
    $region26: #{resnet_generator_forward.31} parent=5 // pred_check_branch
      %192 = sbr.rel (%p189) target = $region28
    $region27: #{resnet_generator_forward.31} parent=5 // pred_region
      %s193 = ssub.s32 %s10, 1
      %s194 = smul.u32 32, %s20
      %s195 = smul.u32 2, %s22
      %p196 = scmp.lt.s32.totalorder %s194, 63
      %s197 = scalar_select %p196, %s194, 63
      %p198 = scmp.lt.s32.totalorder %s195, 1
      %s199 = scalar_select %p198, %s195, 1
      %s200 = smul.addr %s197, 2
      %s201 = sadd.s32 %s199, %s200
      %s202 = smul.addr %s201, 4
      %s203 = scalar_lea.vmem %s0, %s202
      %p204 = pneg %p57
      %p205 = pneg %p54
      %s206 = smul.u32 32, %s22
      %p207 = scmp.lt.s32.totalorder %s206, 31
      %s208 = scalar_select %p207, %s206, 31
      %p209 = scmp.lt.s32.totalorder %s21, 0
      %s210 = scalar_select %p209, %s21, 0
      %s211 = sadd.s32 %s210, %s208
      %s212 = smul.addr %s211, 4
      %s213 = scalar_lea.vmem %s1, %s212
      %p214 = pneg %p85
      %p215 = pneg %p82
      %p216 = pneg %p113
      %p217 = pneg %p110
      %s218 = smul.u32 32, %s20
      %p219 = scmp.lt.s32.totalorder %s218, 63
      %s220 = scalar_select %p219, %s218, 63
      %p221 = scmp.lt.s32.totalorder %s21, 0
      %s222 = scalar_select %p221, %s21, 0
      %s223 = sadd.s32 %s222, %s220
      %s224 = smul.addr %s223, 4
      %s225 = scalar_lea.vmem %s2, %s224
      %p226 = pneg %p141
      %p227 = pneg %p138
      %p228 = scmp.lt.s32.totalorder %s20, 1
      %s229 = scalar_select %p228, %s20, 1
      %p230 = scmp.lt.s32.totalorder %s21, 0
      %s231 = scalar_select %p230, %s21, 0
      %s232 = sadd.s32 %s231, %s229
      %s233 = smul.addr %s232, 8
      %s234 = scalar_lea.vmem %s3, %s233
      %s235 = smul.u32 32, %s20
      %s236 = smul.u32 2, %s22
      %p237 = scmp.lt.s32.totalorder %s235, 63
      %s238 = scalar_select %p237, %s235, 63
      %p239 = scmp.lt.s32.totalorder %s236, 1
      %s240 = scalar_select %p239, %s236, 1
      %s241 = smul.addr %s238, 2
      %s242 = sadd.s32 %s240, %s241
      %s243 = smul.addr %s242, 4
      %s244 = scalar_lea.vmem %s0, %s243
      %s245 = smul.u32 32, %s20
      %s246 = smul.u32 2, %s22
      %s247 = smul.u32 32, %s22
      %p248 = scmp.lt.s32.totalorder %s247, 31
      %s249 = scalar_select %p248, %s247, 31
      %p250 = scmp.lt.s32.totalorder %s21, 0
      %s251 = scalar_select %p250, %s21, 0
      %s252 = sadd.s32 %s251, %s249
      %s253 = smul.addr %s252, 4
      %s254 = scalar_lea.vmem %s1, %s253
      %s255 = smul.u32 32, %s22
      %s256 = smul.u32 32, %s20
      %p257 = scmp.lt.s32.totalorder %s256, 63
      %s258 = scalar_select %p257, %s256, 63
      %p259 = scmp.lt.s32.totalorder %s21, 0
      %s260 = scalar_select %p259, %s21, 0
      %s261 = sadd.s32 %s260, %s258
      %s262 = smul.addr %s261, 4
      %s263 = scalar_lea.vmem %s2, %s262
      %s264 = smul.u32 32, %s20
      %p265 = scmp.lt.s32.totalorder %s20, 1
      %s266 = scalar_select %p265, %s20, 1
      %p267 = scmp.lt.s32.totalorder %s21, 0
      %s268 = scalar_select %p267, %s21, 0
      %s269 = sadd.s32 %s268, %s266
      %s270 = smul.addr %s269, 8
      %s271 = scalar_lea.vmem %s3, %s270
      %p272 = scmp.eq.s32.totalorder %s22, 0
      // Predicated region
      $region29: #{resnet_generator_forward.31} parent=27 // pred_check
        %p273 = pneg %p272
      $region30: #{resnet_generator_forward.31} parent=27 // pred_check_branch
        %275 = sbr.rel (%p273) target = $region32
      $region31: #{resnet_generator_forward.31} parent=27 // pred_region
        %276 = vst [vmem:[#allocation2] sm:$0xff] 0.0
        %277 = vst [vmem:[#allocation2 + $0x8] sm:$0xff] 0.0
        %278 = vst [vmem:[#allocation2 + $0x10] sm:$0xff] 0.0
        %279 = vst [vmem:[#allocation2 + $0x18] sm:$0xff] 0.0
        %280 = vst [vmem:[#allocation2 + $0x20] sm:$0xff] 0.0
        %281 = vst [vmem:[#allocation2 + $0x28] sm:$0xff] 0.0
        %282 = vst [vmem:[#allocation2 + $0x30] sm:$0xff] 0.0
        %283 = vst [vmem:[#allocation2 + $0x38] sm:$0xff] 0.0
        %284 = vst [vmem:[#allocation2 + $0x40] sm:$0xff] 0.0
        %285 = vst [vmem:[#allocation2 + $0x48] sm:$0xff] 0.0
        %286 = vst [vmem:[#allocation2 + $0x50] sm:$0xff] 0.0
        %287 = vst [vmem:[#allocation2 + $0x58] sm:$0xff] 0.0
        %288 = vst [vmem:[#allocation2 + $0x60] sm:$0xff] 0.0
        %289 = vst [vmem:[#allocation2 + $0x68] sm:$0xff] 0.0
        %290 = vst [vmem:[#allocation2 + $0x70] sm:$0xff] 0.0
        %291 = vst [vmem:[#allocation2 + $0x78] sm:$0xff] 0.0
        %292 = vst [vmem:[#allocation2 + $0x80] sm:$0xff] 0.0
        %293 = vst [vmem:[#allocation2 + $0x88] sm:$0xff] 0.0
        %294 = vst [vmem:[#allocation2 + $0x90] sm:$0xff] 0.0
        %295 = vst [vmem:[#allocation2 + $0x98] sm:$0xff] 0.0
        %296 = vst [vmem:[#allocation2 + $0xa0] sm:$0xff] 0.0
        %297 = vst [vmem:[#allocation2 + $0xa8] sm:$0xff] 0.0
        %298 = vst [vmem:[#allocation2 + $0xb0] sm:$0xff] 0.0
        %299 = vst [vmem:[#allocation2 + $0xb8] sm:$0xff] 0.0
        %300 = vst [vmem:[#allocation2 + $0xc0] sm:$0xff] 0.0
        %301 = vst [vmem:[#allocation2 + $0xc8] sm:$0xff] 0.0
        %302 = vst [vmem:[#allocation2 + $0xd0] sm:$0xff] 0.0
        %303 = vst [vmem:[#allocation2 + $0xd8] sm:$0xff] 0.0
        %304 = vst [vmem:[#allocation2 + $0xe0] sm:$0xff] 0.0
        %305 = vst [vmem:[#allocation2 + $0xe8] sm:$0xff] 0.0
        %306 = vst [vmem:[#allocation2 + $0xf0] sm:$0xff] 0.0
        %307 = vst [vmem:[#allocation2 + $0xf8] sm:$0xff] 0.0
      $region32: #{resnet_generator_forward.31} parent=27 // pred_fallthru
        _
      %v308 = vld [vmem:[#allocation2] sm:$0xff]
      %v309 = vld [vmem:[#allocation2 + $0x8] sm:$0xff]
      %v310 = vld [vmem:[#allocation2 + $0x10] sm:$0xff]
      %v311 = vld [vmem:[#allocation2 + $0x18] sm:$0xff]
      %v312 = vld [vmem:[#allocation2 + $0x20] sm:$0xff]
      %v313 = vld [vmem:[#allocation2 + $0x28] sm:$0xff]
      %v314 = vld [vmem:[#allocation2 + $0x30] sm:$0xff]
      %v315 = vld [vmem:[#allocation2 + $0x38] sm:$0xff]
      %v316 = vld [vmem:[#allocation2 + $0x40] sm:$0xff]
      %v317 = vld [vmem:[#allocation2 + $0x48] sm:$0xff]
      %v318 = vld [vmem:[#allocation2 + $0x50] sm:$0xff]
      %v319 = vld [vmem:[#allocation2 + $0x58] sm:$0xff]
      %v320 = vld [vmem:[#allocation2 + $0x60] sm:$0xff]
      %v321 = vld [vmem:[#allocation2 + $0x68] sm:$0xff]
      %v322 = vld [vmem:[#allocation2 + $0x70] sm:$0xff]
      %v323 = vld [vmem:[#allocation2 + $0x78] sm:$0xff]
      %v324 = vld [vmem:[#allocation2 + $0x80] sm:$0xff]
      %v325 = vld [vmem:[#allocation2 + $0x88] sm:$0xff]
      %v326 = vld [vmem:[#allocation2 + $0x90] sm:$0xff]
      %v327 = vld [vmem:[#allocation2 + $0x98] sm:$0xff]
      %v328 = vld [vmem:[#allocation2 + $0xa0] sm:$0xff]
      %v329 = vld [vmem:[#allocation2 + $0xa8] sm:$0xff]
      %v330 = vld [vmem:[#allocation2 + $0xb0] sm:$0xff]
      %v331 = vld [vmem:[#allocation2 + $0xb8] sm:$0xff]
      %v332 = vld [vmem:[#allocation2 + $0xc0] sm:$0xff]
      %v333 = vld [vmem:[#allocation2 + $0xc8] sm:$0xff]
      %v334 = vld [vmem:[#allocation2 + $0xd0] sm:$0xff]
      %v335 = vld [vmem:[#allocation2 + $0xd8] sm:$0xff]
      %v336 = vld [vmem:[#allocation2 + $0xe0] sm:$0xff]
      %v337 = vld [vmem:[#allocation2 + $0xe8] sm:$0xff]
      %v338 = vld [vmem:[#allocation2 + $0xf0] sm:$0xff]
      %v339 = vld [vmem:[#allocation2 + $0xf8] sm:$0xff]
      %v340 = vld [vmem:[%s244] sm:$0xff]
      %v341 = vld [vmem:[%s244 + $0x8] sm:$0xff]
      %v342 = vld [vmem:[%s244 + $0x10] sm:$0xff]
      %v343 = vld [vmem:[%s244 + $0x18] sm:$0xff]
      %v344 = vld [vmem:[%s244 + $0x20] sm:$0xff]
      %v345 = vld [vmem:[%s244 + $0x28] sm:$0xff]
      %v346 = vld [vmem:[%s244 + $0x30] sm:$0xff]
      %v347 = vld [vmem:[%s244 + $0x38] sm:$0xff]
      %v348 = vld [vmem:[%s244 + $0x40] sm:$0xff]
      %v349 = vld [vmem:[%s244 + $0x48] sm:$0xff]
      %v350 = vld [vmem:[%s244 + $0x50] sm:$0xff]
      %v351 = vld [vmem:[%s244 + $0x58] sm:$0xff]
      %v352 = vld [vmem:[%s244 + $0x60] sm:$0xff]
      %v353 = vld [vmem:[%s244 + $0x68] sm:$0xff]
      %v354 = vld [vmem:[%s244 + $0x70] sm:$0xff]
      %v355 = vld [vmem:[%s244 + $0x78] sm:$0xff]
      %v356 = vld [vmem:[%s244 + $0x80] sm:$0xff]
      %v357 = vld [vmem:[%s244 + $0x88] sm:$0xff]
      %v358 = vld [vmem:[%s244 + $0x90] sm:$0xff]
      %v359 = vld [vmem:[%s244 + $0x98] sm:$0xff]
      %v360 = vld [vmem:[%s244 + $0xa0] sm:$0xff]
      %v361 = vld [vmem:[%s244 + $0xa8] sm:$0xff]
      %v362 = vld [vmem:[%s244 + $0xb0] sm:$0xff]
      %v363 = vld [vmem:[%s244 + $0xb8] sm:$0xff]
      %v364 = vld [vmem:[%s244 + $0xc0] sm:$0xff]
      %v365 = vld [vmem:[%s244 + $0xc8] sm:$0xff]
      %v366 = vld [vmem:[%s244 + $0xd0] sm:$0xff]
      %v367 = vld [vmem:[%s244 + $0xd8] sm:$0xff]
      %v368 = vld [vmem:[%s244 + $0xe0] sm:$0xff]
      %v369 = vld [vmem:[%s244 + $0xe8] sm:$0xff]
      %v370 = vld [vmem:[%s244 + $0xf0] sm:$0xff]
      %v371 = vld [vmem:[%s244 + $0xf8] sm:$0xff]
      %v372 = vld [vmem:[%s254] sm:$0xf]
      %v373 = vld [vmem:[%s254 + $0x4] sm:$0xf]
      %v374 = vld [vmem:[%s254 + $0x8] sm:$0xf]
      %v375 = vld [vmem:[%s254 + $0xc] sm:$0xf]
      %v376 = vld [vmem:[%s254 + $0x10] sm:$0xf]
      %v377 = vld [vmem:[%s254 + $0x14] sm:$0xf]
      %v378 = vld [vmem:[%s254 + $0x18] sm:$0xf]
      %v379 = vld [vmem:[%s254 + $0x1c] sm:$0xf]
      %v380 = vld [vmem:[%s254 + $0x20] sm:$0xf]
      %v381 = vld [vmem:[%s254 + $0x24] sm:$0xf]
      %v382 = vld [vmem:[%s254 + $0x28] sm:$0xf]
      %v383 = vld [vmem:[%s254 + $0x2c] sm:$0xf]
      %v384 = vld [vmem:[%s254 + $0x30] sm:$0xf]
      %v385 = vld [vmem:[%s254 + $0x34] sm:$0xf]
      %v386 = vld [vmem:[%s254 + $0x38] sm:$0xf]
      %v387 = vld [vmem:[%s254 + $0x3c] sm:$0xf]
      %v388 = vld [vmem:[%s254 + $0x40] sm:$0xf]
      %v389 = vld [vmem:[%s254 + $0x44] sm:$0xf]
      %v390 = vld [vmem:[%s254 + $0x48] sm:$0xf]
      %v391 = vld [vmem:[%s254 + $0x4c] sm:$0xf]
      %v392 = vld [vmem:[%s254 + $0x50] sm:$0xf]
      %v393 = vld [vmem:[%s254 + $0x54] sm:$0xf]
      %v394 = vld [vmem:[%s254 + $0x58] sm:$0xf]
      %v395 = vld [vmem:[%s254 + $0x5c] sm:$0xf]
      %v396 = vld [vmem:[%s254 + $0x60] sm:$0xf]
      %v397 = vld [vmem:[%s254 + $0x64] sm:$0xf]
      %v398 = vld [vmem:[%s254 + $0x68] sm:$0xf]
      %v399 = vld [vmem:[%s254 + $0x6c] sm:$0xf]
      %v400 = vld [vmem:[%s254 + $0x70] sm:$0xf]
      %v401 = vld [vmem:[%s254 + $0x74] sm:$0xf]
      %v402 = vld [vmem:[%s254 + $0x78] sm:$0xf]
      %v403 = vld [vmem:[%s254 + $0x7c] sm:$0xf]
      %v436 = vunpack.c.l.b16 %v340
      %v437 = vunpack.c.h.b16 %v340
      %v438 = vunpack.c.l.b16 %v341
      %v439 = vunpack.c.h.b16 %v341
      %v440 = vunpack.c.l.b16 %v342
      %v441 = vunpack.c.h.b16 %v342
      %v442 = vunpack.c.l.b16 %v343
      %v443 = vunpack.c.h.b16 %v343
      %v444 = vunpack.c.l.b16 %v344
      %v445 = vunpack.c.h.b16 %v344
      %v446 = vunpack.c.l.b16 %v345
      %v447 = vunpack.c.h.b16 %v345
      %v448 = vunpack.c.l.b16 %v346
      %v449 = vunpack.c.h.b16 %v346
      %v450 = vunpack.c.l.b16 %v347
      %v451 = vunpack.c.h.b16 %v347
      %v452 = vunpack.c.l.b16 %v348
      %v453 = vunpack.c.h.b16 %v348
      %v454 = vunpack.c.l.b16 %v349
      %v455 = vunpack.c.h.b16 %v349
      %v456 = vunpack.c.l.b16 %v350
      %v457 = vunpack.c.h.b16 %v350
      %v458 = vunpack.c.l.b16 %v351
      %v459 = vunpack.c.h.b16 %v351
      %v460 = vunpack.c.l.b16 %v352
      %v461 = vunpack.c.h.b16 %v352
      %v462 = vunpack.c.l.b16 %v353
      %v463 = vunpack.c.h.b16 %v353
      %v464 = vunpack.c.l.b16 %v354
      %v465 = vunpack.c.h.b16 %v354
      %v466 = vunpack.c.l.b16 %v355
      %v467 = vunpack.c.h.b16 %v355
      %v468 = vunpack.c.l.b16 %v356
      %v469 = vunpack.c.h.b16 %v356
      %v470 = vunpack.c.l.b16 %v357
      %v471 = vunpack.c.h.b16 %v357
      %v472 = vunpack.c.l.b16 %v358
      %v473 = vunpack.c.h.b16 %v358
      %v474 = vunpack.c.l.b16 %v359
      %v475 = vunpack.c.h.b16 %v359
      %v476 = vunpack.c.l.b16 %v360
      %v477 = vunpack.c.h.b16 %v360
      %v478 = vunpack.c.l.b16 %v361
      %v479 = vunpack.c.h.b16 %v361
      %v480 = vunpack.c.l.b16 %v362
      %v481 = vunpack.c.h.b16 %v362
      %v482 = vunpack.c.l.b16 %v363
      %v483 = vunpack.c.h.b16 %v363
      %v484 = vunpack.c.l.b16 %v364
      %v485 = vunpack.c.h.b16 %v364
      %v486 = vunpack.c.l.b16 %v365
      %v487 = vunpack.c.h.b16 %v365
      %v488 = vunpack.c.l.b16 %v366
      %v489 = vunpack.c.h.b16 %v366
      %v490 = vunpack.c.l.b16 %v367
      %v491 = vunpack.c.h.b16 %v367
      %v492 = vunpack.c.l.b16 %v368
      %v493 = vunpack.c.h.b16 %v368
      %v494 = vunpack.c.l.b16 %v369
      %v495 = vunpack.c.h.b16 %v369
      %v496 = vunpack.c.l.b16 %v370
      %v497 = vunpack.c.h.b16 %v370
      %v498 = vunpack.c.l.b16 %v371
      %v499 = vunpack.c.h.b16 %v371
      %v500 = vpack.c.b16 %v438, %v436
      %v501 = vpack.c.b16 %v439, %v437
      %v502 = vpack.c.b16 %v442, %v440
      %v503 = vpack.c.b16 %v443, %v441
      %v504 = vpack.c.b16 %v446, %v444
      %v505 = vpack.c.b16 %v447, %v445
      %v506 = vpack.c.b16 %v450, %v448
      %v507 = vpack.c.b16 %v451, %v449
      %v508 = vpack.c.b16 %v454, %v452
      %v509 = vpack.c.b16 %v455, %v453
      %v510 = vpack.c.b16 %v458, %v456
      %v511 = vpack.c.b16 %v459, %v457
      %v512 = vpack.c.b16 %v462, %v460
      %v513 = vpack.c.b16 %v463, %v461
      %v514 = vpack.c.b16 %v466, %v464
      %v515 = vpack.c.b16 %v467, %v465
      %v516 = vpack.c.b16 %v470, %v468
      %v517 = vpack.c.b16 %v471, %v469
      %v518 = vpack.c.b16 %v474, %v472
      %v519 = vpack.c.b16 %v475, %v473
      %v520 = vpack.c.b16 %v478, %v476
      %v521 = vpack.c.b16 %v479, %v477
      %v522 = vpack.c.b16 %v482, %v480
      %v523 = vpack.c.b16 %v483, %v481
      %v524 = vpack.c.b16 %v486, %v484
      %v525 = vpack.c.b16 %v487, %v485
      %v526 = vpack.c.b16 %v490, %v488
      %v527 = vpack.c.b16 %v491, %v489
      %v528 = vpack.c.b16 %v494, %v492
      %v529 = vpack.c.b16 %v495, %v493
      %v530 = vpack.c.b16 %v498, %v496
      %v531 = vpack.c.b16 %v499, %v497
      %v596 = vunpack.c.l.b16 %v372
      %v597 = vunpack.c.l.b16 %v373
      %v598 = vunpack.c.l.b16 %v374
      %v599 = vunpack.c.l.b16 %v375
      %v600 = vunpack.c.l.b16 %v376
      %v601 = vunpack.c.l.b16 %v377
      %v602 = vunpack.c.l.b16 %v378
      %v603 = vunpack.c.l.b16 %v379
      %v604 = vunpack.c.l.b16 %v380
      %v605 = vunpack.c.l.b16 %v381
      %v606 = vunpack.c.l.b16 %v382
      %v607 = vunpack.c.l.b16 %v383
      %v608 = vunpack.c.l.b16 %v384
      %v609 = vunpack.c.l.b16 %v385
      %v610 = vunpack.c.l.b16 %v386
      %v611 = vunpack.c.l.b16 %v387
      %v612 = vunpack.c.l.b16 %v388
      %v613 = vunpack.c.l.b16 %v389
      %v614 = vunpack.c.l.b16 %v390
      %v615 = vunpack.c.l.b16 %v391
      %v616 = vunpack.c.l.b16 %v392
      %v617 = vunpack.c.l.b16 %v393
      %v618 = vunpack.c.l.b16 %v394
      %v619 = vunpack.c.l.b16 %v395
      %v620 = vunpack.c.l.b16 %v396
      %v621 = vunpack.c.l.b16 %v397
      %v622 = vunpack.c.l.b16 %v398
      %v623 = vunpack.c.l.b16 %v399
      %v624 = vunpack.c.l.b16 %v400
      %v625 = vunpack.c.l.b16 %v401
      %v626 = vunpack.c.l.b16 %v402
      %v627 = vunpack.c.l.b16 %v403
      %v628 = vpack.c.b16 %v597, %v596
      %v629 = vpack.c.b16 %v599, %v598
      %v630 = vpack.c.b16 %v601, %v600
      %v631 = vpack.c.b16 %v603, %v602
      %v632 = vpack.c.b16 %v605, %v604
      %v633 = vpack.c.b16 %v607, %v606
      %v634 = vpack.c.b16 %v609, %v608
      %v635 = vpack.c.b16 %v611, %v610
      %v636 = vpack.c.b16 %v613, %v612
      %v637 = vpack.c.b16 %v615, %v614
      %v638 = vpack.c.b16 %v617, %v616
      %v639 = vpack.c.b16 %v619, %v618
      %v640 = vpack.c.b16 %v621, %v620
      %v641 = vpack.c.b16 %v623, %v622
      %v642 = vpack.c.b16 %v625, %v624
      %v643 = vpack.c.b16 %v627, %v626
      %660 = vmatpush.bf16.msra.mxu0 %v635
      %661 = vmatpush.bf16.msra.mxu0 %v634
      %662 = vmatpush.bf16.msra.mxu0 %v633
      %663 = vmatpush.bf16.msra.mxu0 %v632
      %664 = vmatpush.bf16.msra.mxu0 %v631
      %665 = vmatpush.bf16.msra.mxu0 %v630
      %666 = vmatpush.bf16.msra.mxu0 %v629
      %667 = vmatpush.bf16.msra.mxu0 %v628
      %668 = vmatmul.bf16.gmra.mxu0 %v500
      %v669 = vpop.f32.mrf.mxu0
      %v670 = vadd.f32 0.0, %v669
      %v671 = vpop.f32.mrf.mxu0
      %v672 = vadd.f32 0.0, %v671
      %673 = vmatmul.bf16.gmra.mxu0 %v502
      %v674 = vpop.f32.mrf.mxu0
      %v675 = vadd.f32 0.0, %v674
      %v676 = vpop.f32.mrf.mxu0
      %v677 = vadd.f32 0.0, %v676
      %678 = vmatmul.bf16.gmra.mxu0 %v504
      %v679 = vpop.f32.mrf.mxu0
      %v680 = vadd.f32 0.0, %v679
      %v681 = vpop.f32.mrf.mxu0
      %v682 = vadd.f32 0.0, %v681
      %683 = vmatmul.bf16.gmra.mxu0 %v506
      %v684 = vpop.f32.mrf.mxu0
      %v685 = vadd.f32 0.0, %v684
      %v686 = vpop.f32.mrf.mxu0
      %v687 = vadd.f32 0.0, %v686
      %688 = vmatmul.bf16.gmra.mxu0 %v508
      %v689 = vpop.f32.mrf.mxu0
      %v690 = vadd.f32 0.0, %v689
      %v691 = vpop.f32.mrf.mxu0
      %v692 = vadd.f32 0.0, %v691
      %693 = vmatmul.bf16.gmra.mxu0 %v510
      %v694 = vpop.f32.mrf.mxu0
      %v695 = vadd.f32 0.0, %v694
      %v696 = vpop.f32.mrf.mxu0
      %v697 = vadd.f32 0.0, %v696
      %698 = vmatmul.bf16.gmra.mxu0 %v512
      %v699 = vpop.f32.mrf.mxu0
      %v700 = vadd.f32 0.0, %v699
      %v701 = vpop.f32.mrf.mxu0
      %v702 = vadd.f32 0.0, %v701
      %703 = vmatmul.bf16.gmra.mxu0 %v514
      %v704 = vpop.f32.mrf.mxu0
      %v705 = vadd.f32 0.0, %v704
      %v706 = vpop.f32.mrf.mxu0
      %v707 = vadd.f32 0.0, %v706
      %708 = vmatmul.bf16.gmra.mxu0 %v516
      %v709 = vpop.f32.mrf.mxu0
      %v710 = vadd.f32 0.0, %v709
      %v711 = vpop.f32.mrf.mxu0
      %v712 = vadd.f32 0.0, %v711
      %713 = vmatmul.bf16.gmra.mxu0 %v518
      %v714 = vpop.f32.mrf.mxu0
      %v715 = vadd.f32 0.0, %v714
      %v716 = vpop.f32.mrf.mxu0
      %v717 = vadd.f32 0.0, %v716
      %718 = vmatmul.bf16.gmra.mxu0 %v520
      %v719 = vpop.f32.mrf.mxu0
      %v720 = vadd.f32 0.0, %v719
      %v721 = vpop.f32.mrf.mxu0
      %v722 = vadd.f32 0.0, %v721
      %723 = vmatmul.bf16.gmra.mxu0 %v522
      %v724 = vpop.f32.mrf.mxu0
      %v725 = vadd.f32 0.0, %v724
      %v726 = vpop.f32.mrf.mxu0
      %v727 = vadd.f32 0.0, %v726
      %728 = vmatmul.bf16.gmra.mxu0 %v524
      %v729 = vpop.f32.mrf.mxu0
      %v730 = vadd.f32 0.0, %v729
      %v731 = vpop.f32.mrf.mxu0
      %v732 = vadd.f32 0.0, %v731
      %733 = vmatmul.bf16.gmra.mxu0 %v526
      %v734 = vpop.f32.mrf.mxu0
      %v735 = vadd.f32 0.0, %v734
      %v736 = vpop.f32.mrf.mxu0
      %v737 = vadd.f32 0.0, %v736
      %738 = vmatmul.bf16.gmra.mxu0 %v528
      %v739 = vpop.f32.mrf.mxu0
      %v740 = vadd.f32 0.0, %v739
      %v741 = vpop.f32.mrf.mxu0
      %v742 = vadd.f32 0.0, %v741
      %743 = vmatmul.bf16.gmra.mxu0 %v530
      %v744 = vpop.f32.mrf.mxu0
      %v745 = vadd.f32 0.0, %v744
      %v746 = vpop.f32.mrf.mxu0
      %v747 = vadd.f32 0.0, %v746
      %748 = vdwg.mxu0
      %749 = vmatpush.bf16.msra.mxu0 %v643
      %750 = vmatpush.bf16.msra.mxu0 %v642
      %751 = vmatpush.bf16.msra.mxu0 %v641
      %752 = vmatpush.bf16.msra.mxu0 %v640
      %753 = vmatpush.bf16.msra.mxu0 %v639
      %754 = vmatpush.bf16.msra.mxu0 %v638
      %755 = vmatpush.bf16.msra.mxu0 %v637
      %756 = vmatpush.bf16.msra.mxu0 %v636
      %757 = vmatmul.bf16.gmra.mxu0 %v501
      %v758 = vpop.f32.mrf.mxu0
      %v759 = vadd.f32 %v670, %v758
      %v760 = vpop.f32.mrf.mxu0
      %v761 = vadd.f32 %v672, %v760
      %762 = vmatmul.bf16.gmra.mxu0 %v503
      %v763 = vpop.f32.mrf.mxu0
      %v764 = vadd.f32 %v675, %v763
      %v765 = vpop.f32.mrf.mxu0
      %v766 = vadd.f32 %v677, %v765
      %767 = vmatmul.bf16.gmra.mxu0 %v505
      %v768 = vpop.f32.mrf.mxu0
      %v769 = vadd.f32 %v680, %v768
      %v770 = vpop.f32.mrf.mxu0
      %v771 = vadd.f32 %v682, %v770
      %772 = vmatmul.bf16.gmra.mxu0 %v507
      %v773 = vpop.f32.mrf.mxu0
      %v774 = vadd.f32 %v685, %v773
      %v775 = vpop.f32.mrf.mxu0
      %v776 = vadd.f32 %v687, %v775
      %777 = vmatmul.bf16.gmra.mxu0 %v509
      %v778 = vpop.f32.mrf.mxu0
      %v779 = vadd.f32 %v690, %v778
      %v780 = vpop.f32.mrf.mxu0
      %v781 = vadd.f32 %v692, %v780
      %782 = vmatmul.bf16.gmra.mxu0 %v511
      %v783 = vpop.f32.mrf.mxu0
      %v784 = vadd.f32 %v695, %v783
      %v785 = vpop.f32.mrf.mxu0
      %v786 = vadd.f32 %v697, %v785
      %787 = vmatmul.bf16.gmra.mxu0 %v513
      %v788 = vpop.f32.mrf.mxu0
      %v789 = vadd.f32 %v700, %v788
      %v790 = vpop.f32.mrf.mxu0
      %v791 = vadd.f32 %v702, %v790
      %792 = vmatmul.bf16.gmra.mxu0 %v515
      %v793 = vpop.f32.mrf.mxu0
      %v794 = vadd.f32 %v705, %v793
      %v795 = vpop.f32.mrf.mxu0
      %v796 = vadd.f32 %v707, %v795
      %797 = vmatmul.bf16.gmra.mxu0 %v517
      %v798 = vpop.f32.mrf.mxu0
      %v799 = vadd.f32 %v710, %v798
      %v800 = vpop.f32.mrf.mxu0
      %v801 = vadd.f32 %v712, %v800
      %802 = vmatmul.bf16.gmra.mxu0 %v519
      %v803 = vpop.f32.mrf.mxu0
      %v804 = vadd.f32 %v715, %v803
      %v805 = vpop.f32.mrf.mxu0
      %v806 = vadd.f32 %v717, %v805
      %807 = vmatmul.bf16.gmra.mxu0 %v521
      %v808 = vpop.f32.mrf.mxu0
      %v809 = vadd.f32 %v720, %v808
      %v810 = vpop.f32.mrf.mxu0
      %v811 = vadd.f32 %v722, %v810
      %812 = vmatmul.bf16.gmra.mxu0 %v523
      %v813 = vpop.f32.mrf.mxu0
      %v814 = vadd.f32 %v725, %v813
      %v815 = vpop.f32.mrf.mxu0
      %v816 = vadd.f32 %v727, %v815
      %817 = vmatmul.bf16.gmra.mxu0 %v525
      %v818 = vpop.f32.mrf.mxu0
      %v819 = vadd.f32 %v730, %v818
      %v820 = vpop.f32.mrf.mxu0
      %v821 = vadd.f32 %v732, %v820
      %822 = vmatmul.bf16.gmra.mxu0 %v527
      %v823 = vpop.f32.mrf.mxu0
      %v824 = vadd.f32 %v735, %v823
      %v825 = vpop.f32.mrf.mxu0
      %v826 = vadd.f32 %v737, %v825
      %827 = vmatmul.bf16.gmra.mxu0 %v529
      %v828 = vpop.f32.mrf.mxu0
      %v829 = vadd.f32 %v740, %v828
      %v830 = vpop.f32.mrf.mxu0
      %v831 = vadd.f32 %v742, %v830
      %832 = vmatmul.bf16.gmra.mxu0 %v531
      %v833 = vpop.f32.mrf.mxu0
      %v834 = vadd.f32 %v745, %v833
      %v835 = vpop.f32.mrf.mxu0
      %v836 = vadd.f32 %v747, %v835
      %837 = vdwg.mxu0
      %v838 = vadd.f32 %v308, %v759
      %v839 = vadd.f32 %v309, %v761
      %v840 = vadd.f32 %v310, %v764
      %v841 = vadd.f32 %v311, %v766
      %v842 = vadd.f32 %v312, %v769
      %v843 = vadd.f32 %v313, %v771
      %v844 = vadd.f32 %v314, %v774
      %v845 = vadd.f32 %v315, %v776
      %v846 = vadd.f32 %v316, %v779
      %v847 = vadd.f32 %v317, %v781
      %v848 = vadd.f32 %v318, %v784
      %v849 = vadd.f32 %v319, %v786
      %v850 = vadd.f32 %v320, %v789
      %v851 = vadd.f32 %v321, %v791
      %v852 = vadd.f32 %v322, %v794
      %v853 = vadd.f32 %v323, %v796
      %v854 = vadd.f32 %v324, %v799
      %v855 = vadd.f32 %v325, %v801
      %v856 = vadd.f32 %v326, %v804
      %v857 = vadd.f32 %v327, %v806
      %v858 = vadd.f32 %v328, %v809
      %v859 = vadd.f32 %v329, %v811
      %v860 = vadd.f32 %v330, %v814
      %v861 = vadd.f32 %v331, %v816
      %v862 = vadd.f32 %v332, %v819
      %v863 = vadd.f32 %v333, %v821
      %v864 = vadd.f32 %v334, %v824
      %v865 = vadd.f32 %v335, %v826
      %v866 = vadd.f32 %v336, %v829
      %v867 = vadd.f32 %v337, %v831
      %v868 = vadd.f32 %v338, %v834
      %v869 = vadd.f32 %v339, %v836
      %870 = vst [vmem:[#allocation2] sm:$0xff] %v838
      %871 = vst [vmem:[#allocation2 + $0x8] sm:$0xff] %v839
      %872 = vst [vmem:[#allocation2 + $0x10] sm:$0xff] %v840
      %873 = vst [vmem:[#allocation2 + $0x18] sm:$0xff] %v841
      %874 = vst [vmem:[#allocation2 + $0x20] sm:$0xff] %v842
      %875 = vst [vmem:[#allocation2 + $0x28] sm:$0xff] %v843
      %876 = vst [vmem:[#allocation2 + $0x30] sm:$0xff] %v844
      %877 = vst [vmem:[#allocation2 + $0x38] sm:$0xff] %v845
      %878 = vst [vmem:[#allocation2 + $0x40] sm:$0xff] %v846
      %879 = vst [vmem:[#allocation2 + $0x48] sm:$0xff] %v847
      %880 = vst [vmem:[#allocation2 + $0x50] sm:$0xff] %v848
      %881 = vst [vmem:[#allocation2 + $0x58] sm:$0xff] %v849
      %882 = vst [vmem:[#allocation2 + $0x60] sm:$0xff] %v850
      %883 = vst [vmem:[#allocation2 + $0x68] sm:$0xff] %v851
      %884 = vst [vmem:[#allocation2 + $0x70] sm:$0xff] %v852
      %885 = vst [vmem:[#allocation2 + $0x78] sm:$0xff] %v853
      %886 = vst [vmem:[#allocation2 + $0x80] sm:$0xff] %v854
      %887 = vst [vmem:[#allocation2 + $0x88] sm:$0xff] %v855
      %888 = vst [vmem:[#allocation2 + $0x90] sm:$0xff] %v856
      %889 = vst [vmem:[#allocation2 + $0x98] sm:$0xff] %v857
      %890 = vst [vmem:[#allocation2 + $0xa0] sm:$0xff] %v858
      %891 = vst [vmem:[#allocation2 + $0xa8] sm:$0xff] %v859
      %892 = vst [vmem:[#allocation2 + $0xb0] sm:$0xff] %v860
      %893 = vst [vmem:[#allocation2 + $0xb8] sm:$0xff] %v861
      %894 = vst [vmem:[#allocation2 + $0xc0] sm:$0xff] %v862
      %895 = vst [vmem:[#allocation2 + $0xc8] sm:$0xff] %v863
      %896 = vst [vmem:[#allocation2 + $0xd0] sm:$0xff] %v864
      %897 = vst [vmem:[#allocation2 + $0xd8] sm:$0xff] %v865
      %898 = vst [vmem:[#allocation2 + $0xe0] sm:$0xff] %v866
      %899 = vst [vmem:[#allocation2 + $0xe8] sm:$0xff] %v867
      %900 = vst [vmem:[#allocation2 + $0xf0] sm:$0xff] %v868
      %901 = vst [vmem:[#allocation2 + $0xf8] sm:$0xff] %v869
      // Predicated region
      $region33: #{resnet_generator_forward.31} parent=27 // pred_check
        %p902 = pneg %p272
      $region34: #{resnet_generator_forward.31} parent=27 // pred_check_branch
        %904 = sbr.rel (%p902) target = $region36
      $region35: #{resnet_generator_forward.31} parent=27 // pred_region
        %v905 = vld [vmem:[#allocation2] sm:$0xff]
        %v906 = vld [vmem:[#allocation2 + $0x8] sm:$0xff]
        %v907 = vld [vmem:[#allocation2 + $0x10] sm:$0xff]
        %v908 = vld [vmem:[#allocation2 + $0x18] sm:$0xff]
        %v909 = vld [vmem:[#allocation2 + $0x20] sm:$0xff]
        %v910 = vld [vmem:[#allocation2 + $0x28] sm:$0xff]
        %v911 = vld [vmem:[#allocation2 + $0x30] sm:$0xff]
        %v912 = vld [vmem:[#allocation2 + $0x38] sm:$0xff]
        %v913 = vld [vmem:[#allocation2 + $0x40] sm:$0xff]
        %v914 = vld [vmem:[#allocation2 + $0x48] sm:$0xff]
        %v915 = vld [vmem:[#allocation2 + $0x50] sm:$0xff]
        %v916 = vld [vmem:[#allocation2 + $0x58] sm:$0xff]
        %v917 = vld [vmem:[#allocation2 + $0x60] sm:$0xff]
        %v918 = vld [vmem:[#allocation2 + $0x68] sm:$0xff]
        %v919 = vld [vmem:[#allocation2 + $0x70] sm:$0xff]
        %v920 = vld [vmem:[#allocation2 + $0x78] sm:$0xff]
        %v921 = vld [vmem:[#allocation2 + $0x80] sm:$0xff]
        %v922 = vld [vmem:[#allocation2 + $0x88] sm:$0xff]
        %v923 = vld [vmem:[#allocation2 + $0x90] sm:$0xff]
        %v924 = vld [vmem:[#allocation2 + $0x98] sm:$0xff]
        %v925 = vld [vmem:[#allocation2 + $0xa0] sm:$0xff]
        %v926 = vld [vmem:[#allocation2 + $0xa8] sm:$0xff]
        %v927 = vld [vmem:[#allocation2 + $0xb0] sm:$0xff]
        %v928 = vld [vmem:[#allocation2 + $0xb8] sm:$0xff]
        %v929 = vld [vmem:[#allocation2 + $0xc0] sm:$0xff]
        %v930 = vld [vmem:[#allocation2 + $0xc8] sm:$0xff]
        %v931 = vld [vmem:[#allocation2 + $0xd0] sm:$0xff]
        %v932 = vld [vmem:[#allocation2 + $0xd8] sm:$0xff]
        %v933 = vld [vmem:[#allocation2 + $0xe0] sm:$0xff]
        %v934 = vld [vmem:[#allocation2 + $0xe8] sm:$0xff]
        %v935 = vld [vmem:[#allocation2 + $0xf0] sm:$0xff]
        %v936 = vld [vmem:[#allocation2 + $0xf8] sm:$0xff]
        %v937 = vpack.c.bf16 %v905, %v905
        %v938 = vpack.c.bf16 %v906, %v906
        %v939 = vpack.c.bf16 %v907, %v907
        %v940 = vpack.c.bf16 %v908, %v908
        %v941 = vpack.c.bf16 %v909, %v909
        %v942 = vpack.c.bf16 %v910, %v910
        %v943 = vpack.c.bf16 %v911, %v911
        %v944 = vpack.c.bf16 %v912, %v912
        %v945 = vpack.c.bf16 %v913, %v913
        %v946 = vpack.c.bf16 %v914, %v914
        %v947 = vpack.c.bf16 %v915, %v915
        %v948 = vpack.c.bf16 %v916, %v916
        %v949 = vpack.c.bf16 %v917, %v917
        %v950 = vpack.c.bf16 %v918, %v918
        %v951 = vpack.c.bf16 %v919, %v919
        %v952 = vpack.c.bf16 %v920, %v920
        %v953 = vpack.c.bf16 %v921, %v921
        %v954 = vpack.c.bf16 %v922, %v922
        %v955 = vpack.c.bf16 %v923, %v923
        %v956 = vpack.c.bf16 %v924, %v924
        %v957 = vpack.c.bf16 %v925, %v925
        %v958 = vpack.c.bf16 %v926, %v926
        %v959 = vpack.c.bf16 %v927, %v927
        %v960 = vpack.c.bf16 %v928, %v928
        %v961 = vpack.c.bf16 %v929, %v929
        %v962 = vpack.c.bf16 %v930, %v930
        %v963 = vpack.c.bf16 %v931, %v931
        %v964 = vpack.c.bf16 %v932, %v932
        %v965 = vpack.c.bf16 %v933, %v933
        %v966 = vpack.c.bf16 %v934, %v934
        %v967 = vpack.c.bf16 %v935, %v935
        %v968 = vpack.c.bf16 %v936, %v936
        %969 = vst [vmem:[%s263] sm:$0xf] %v937
        %970 = vst [vmem:[%s263 + $0x4] sm:$0xf] %v938
        %971 = vst [vmem:[%s263 + $0x8] sm:$0xf] %v939
        %972 = vst [vmem:[%s263 + $0xc] sm:$0xf] %v940
        %973 = vst [vmem:[%s263 + $0x10] sm:$0xf] %v941
        %974 = vst [vmem:[%s263 + $0x14] sm:$0xf] %v942
        %975 = vst [vmem:[%s263 + $0x18] sm:$0xf] %v943
        %976 = vst [vmem:[%s263 + $0x1c] sm:$0xf] %v944
        %977 = vst [vmem:[%s263 + $0x20] sm:$0xf] %v945
        %978 = vst [vmem:[%s263 + $0x24] sm:$0xf] %v946
        %979 = vst [vmem:[%s263 + $0x28] sm:$0xf] %v947
        %980 = vst [vmem:[%s263 + $0x2c] sm:$0xf] %v948
        %981 = vst [vmem:[%s263 + $0x30] sm:$0xf] %v949
        %982 = vst [vmem:[%s263 + $0x34] sm:$0xf] %v950
        %983 = vst [vmem:[%s263 + $0x38] sm:$0xf] %v951
        %984 = vst [vmem:[%s263 + $0x3c] sm:$0xf] %v952
        %985 = vst [vmem:[%s263 + $0x40] sm:$0xf] %v953
        %986 = vst [vmem:[%s263 + $0x44] sm:$0xf] %v954
        %987 = vst [vmem:[%s263 + $0x48] sm:$0xf] %v955
        %988 = vst [vmem:[%s263 + $0x4c] sm:$0xf] %v956
        %989 = vst [vmem:[%s263 + $0x50] sm:$0xf] %v957
        %990 = vst [vmem:[%s263 + $0x54] sm:$0xf] %v958
        %991 = vst [vmem:[%s263 + $0x58] sm:$0xf] %v959
        %992 = vst [vmem:[%s263 + $0x5c] sm:$0xf] %v960
        %993 = vst [vmem:[%s263 + $0x60] sm:$0xf] %v961
        %994 = vst [vmem:[%s263 + $0x64] sm:$0xf] %v962
        %995 = vst [vmem:[%s263 + $0x68] sm:$0xf] %v963
        %996 = vst [vmem:[%s263 + $0x6c] sm:$0xf] %v964
        %997 = vst [vmem:[%s263 + $0x70] sm:$0xf] %v965
        %998 = vst [vmem:[%s263 + $0x74] sm:$0xf] %v966
        %999 = vst [vmem:[%s263 + $0x78] sm:$0xf] %v967
        %1000 = vst [vmem:[%s263 + $0x7c] sm:$0xf] %v968
        %v1001 = vadd.f32 %v905, %v906
        %v1002 = vadd.f32 %v1001, %v907
        %v1003 = vadd.f32 %v1002, %v908
        %v1004 = vadd.f32 %v1003, %v909
        %v1005 = vadd.f32 %v1004, %v910
        %v1006 = vadd.f32 %v1005, %v911
        %v1007 = vadd.f32 %v1006, %v912
        %v1008 = vadd.f32 %v1007, %v913
        %v1009 = vadd.f32 %v1008, %v914
        %v1010 = vadd.f32 %v1009, %v915
        %v1011 = vadd.f32 %v1010, %v916
        %v1012 = vadd.f32 %v1011, %v917
        %v1013 = vadd.f32 %v1012, %v918
        %v1014 = vadd.f32 %v1013, %v919
        %v1015 = vadd.f32 %v1014, %v920
        %v1016 = vadd.f32 %v1015, %v921
        %v1017 = vadd.f32 %v1016, %v922
        %v1018 = vadd.f32 %v1017, %v923
        %v1019 = vadd.f32 %v1018, %v924
        %v1020 = vadd.f32 %v1019, %v925
        %v1021 = vadd.f32 %v1020, %v926
        %v1022 = vadd.f32 %v1021, %v927
        %v1023 = vadd.f32 %v1022, %v928
        %v1024 = vadd.f32 %v1023, %v929
        %v1025 = vadd.f32 %v1024, %v930
        %v1026 = vadd.f32 %v1025, %v931
        %v1027 = vadd.f32 %v1026, %v932
        %v1028 = vadd.f32 %v1027, %v933
        %v1029 = vadd.f32 %v1028, %v934
        %v1030 = vadd.f32 %v1029, %v935
        %v1031 = vadd.f32 %v1030, %v936
        %v1032 = vrot.slane %v1031, 4
        %v1033 = vadd.f32 %v1031, %v1032
        %v1034 = vrot.slane %v1033, 2
        %v1035 = vadd.f32 %v1033, %v1034
        %v1036 = vrot.slane %v1035, 1
        %v1037 = vadd.f32 %v1035, %v1036
        %v1038 = vmul.f32 %v905, %v905
        %v1039 = vmul.f32 %v906, %v906
        %v1040 = vmul.f32 %v907, %v907
        %v1041 = vmul.f32 %v908, %v908
        %v1042 = vmul.f32 %v909, %v909
        %v1043 = vmul.f32 %v910, %v910
        %v1044 = vmul.f32 %v911, %v911
        %v1045 = vmul.f32 %v912, %v912
        %v1046 = vmul.f32 %v913, %v913
        %v1047 = vmul.f32 %v914, %v914
        %v1048 = vmul.f32 %v915, %v915
        %v1049 = vmul.f32 %v916, %v916
        %v1050 = vmul.f32 %v917, %v917
        %v1051 = vmul.f32 %v918, %v918
        %v1052 = vmul.f32 %v919, %v919
        %v1053 = vmul.f32 %v920, %v920
        %v1054 = vmul.f32 %v921, %v921
        %v1055 = vmul.f32 %v922, %v922
        %v1056 = vmul.f32 %v923, %v923
        %v1057 = vmul.f32 %v924, %v924
        %v1058 = vmul.f32 %v925, %v925
        %v1059 = vmul.f32 %v926, %v926
        %v1060 = vmul.f32 %v927, %v927
        %v1061 = vmul.f32 %v928, %v928
        %v1062 = vmul.f32 %v929, %v929
        %v1063 = vmul.f32 %v930, %v930
        %v1064 = vmul.f32 %v931, %v931
        %v1065 = vmul.f32 %v932, %v932
        %v1066 = vmul.f32 %v933, %v933
        %v1067 = vmul.f32 %v934, %v934
        %v1068 = vmul.f32 %v935, %v935
        %v1069 = vmul.f32 %v936, %v936
        %v1070 = vadd.f32 %v1038, %v1039
        %v1071 = vadd.f32 %v1070, %v1040
        %v1072 = vadd.f32 %v1071, %v1041
        %v1073 = vadd.f32 %v1072, %v1042
        %v1074 = vadd.f32 %v1073, %v1043
        %v1075 = vadd.f32 %v1074, %v1044
        %v1076 = vadd.f32 %v1075, %v1045
        %v1077 = vadd.f32 %v1076, %v1046
        %v1078 = vadd.f32 %v1077, %v1047
        %v1079 = vadd.f32 %v1078, %v1048
        %v1080 = vadd.f32 %v1079, %v1049
        %v1081 = vadd.f32 %v1080, %v1050
        %v1082 = vadd.f32 %v1081, %v1051
        %v1083 = vadd.f32 %v1082, %v1052
        %v1084 = vadd.f32 %v1083, %v1053
        %v1085 = vadd.f32 %v1084, %v1054
        %v1086 = vadd.f32 %v1085, %v1055
        %v1087 = vadd.f32 %v1086, %v1056
        %v1088 = vadd.f32 %v1087, %v1057
        %v1089 = vadd.f32 %v1088, %v1058
        %v1090 = vadd.f32 %v1089, %v1059
        %v1091 = vadd.f32 %v1090, %v1060
        %v1092 = vadd.f32 %v1091, %v1061
        %v1093 = vadd.f32 %v1092, %v1062
        %v1094 = vadd.f32 %v1093, %v1063
        %v1095 = vadd.f32 %v1094, %v1064
        %v1096 = vadd.f32 %v1095, %v1065
        %v1097 = vadd.f32 %v1096, %v1066
        %v1098 = vadd.f32 %v1097, %v1067
        %v1099 = vadd.f32 %v1098, %v1068
        %v1100 = vadd.f32 %v1099, %v1069
        %v1101 = vrot.slane %v1100, 4
        %v1102 = vadd.f32 %v1100, %v1101
        %v1103 = vrot.slane %v1102, 2
        %v1104 = vadd.f32 %v1102, %v1103
        %v1105 = vrot.slane %v1104, 1
        %v1106 = vadd.f32 %v1104, %v1105
        %v1107 = vlaneseq
        %v1108 = vshrl.u32 %v1107, 7
        %vm1109 = vcmp.eq.s32.totalorder %v1108, 0
        %vm1110 = vcmp.eq.s32.totalorder %v1108, 1
        %v1111 = vsel %vm1110, %v1106, 0.0
        %v1112 = vsel %vm1109, %v1037, %v1111
        %1113 = vst [vmem:[%s271] sm:$0xff] %v1112
      $region36: #{resnet_generator_forward.31} parent=27 // pred_fallthru
        _
      %s1114 = smul.u32 32, %s20
      %p1115 = scmp.lt.s32.totalorder %s1114, 63
      %s1116 = scalar_select %p1115, %s1114, 63
      %p1117 = scmp.lt.s32.totalorder %s21, 0
      %s1118 = scalar_select %p1117, %s21, 0
      %s1119 = sadd.s32 %s1118, %s1116
      %s1120 = smul.addr %s1119, 4
      %s1121 = scalar_lea.vmem %s2, %s1120
      %p1122 = scmp.lt.s32.totalorder %s20, 1
      %s1123 = scalar_select %p1122, %s20, 1
      %p1124 = scmp.lt.s32.totalorder %s21, 0
      %s1125 = scalar_select %p1124, %s21, 0
      %s1126 = sadd.s32 %s1125, %s1123
      %s1127 = smul.addr %s1126, 8
      %s1128 = scalar_lea.vmem %s3, %s1127
      // Predicated region
      $region37: #{resnet_generator_forward.31} parent=27 // pred_check
        %p1129 = pneg %p110
      $region38: #{resnet_generator_forward.31} parent=27 // pred_check_branch
        %1131 = sbr.rel (%p1129) target = $region40
      $region39: #{resnet_generator_forward.31} parent=27 // pred_region
        %s1132 = smul.u32 32, %s20
      $region40: #{resnet_generator_forward.31} parent=27 // pred_fallthru
        _
      // Predicated region
      $region41: #{resnet_generator_forward.31} parent=27 // pred_check
        %p1133 = pneg %p138
      $region42: #{resnet_generator_forward.31} parent=27 // pred_check_branch
        %1135 = sbr.rel (%p1133) target = $region44
      $region43: #{resnet_generator_forward.31} parent=27 // pred_region
        _
      $region44: #{resnet_generator_forward.31} parent=27 // pred_fallthru
        _
    $region28: #{resnet_generator_forward.31} parent=5 // pred_fallthru
      _
    %p1136 = scmp.le.s32.totalorder 2, %s10
    // Predicated region
    $region45: #{resnet_generator_forward.31} parent=5 // pred_check
      %p1137 = pneg %p1136
    $region46: #{resnet_generator_forward.31} parent=5 // pred_check_branch
      %1139 = sbr.rel (%p1137) target = $region48
    $region47: #{resnet_generator_forward.31} parent=5 // pred_region
      %s1140 = ssub.s32 %s10, 2
      // Predicated region
      $region49: #{resnet_generator_forward.31} parent=47 // pred_check
        %p1141 = pneg %p116
      $region50: #{resnet_generator_forward.31} parent=47 // pred_check_branch
        %1143 = sbr.rel (%p1141) target = $region52
      $region51: #{resnet_generator_forward.31} parent=47 // pred_region
        %s1144 = smul.u32 32, %s23
        %p1145 = scmp.lt.s32.totalorder %s1144, 63
        %s1146 = scalar_select %p1145, %s1144, 63
        %p1147 = scmp.lt.s32.totalorder %s24, 0
        %s1148 = scalar_select %p1147, %s24, 0
        %s1149 = sadd.s32 %s1148, %s1146
        %s1150 = smul.addr %s1149, 4
        %s1151 = scalar_lea.vmem %s2, %s1150
      $region52: #{resnet_generator_forward.31} parent=47 // pred_fallthru
        _
      // Predicated region
      $region53: #{resnet_generator_forward.31} parent=47 // pred_check
        %p1152 = pneg %p144
      $region54: #{resnet_generator_forward.31} parent=47 // pred_check_branch
        %1154 = sbr.rel (%p1152) target = $region56
      $region55: #{resnet_generator_forward.31} parent=47 // pred_region
        %p1155 = scmp.lt.s32.totalorder %s23, 1
        %s1156 = scalar_select %p1155, %s23, 1
        %p1157 = scmp.lt.s32.totalorder %s24, 0
        %s1158 = scalar_select %p1157, %s24, 0
        %s1159 = sadd.s32 %s1158, %s1156
        %s1160 = smul.addr %s1159, 8
        %s1161 = scalar_lea.vmem %s3, %s1160
      $region56: #{resnet_generator_forward.31} parent=47 // pred_fallthru
        _
    $region48: #{resnet_generator_forward.31} parent=5 // pred_fallthru
      _
  $region6: #{resnet_generator_forward.31} parent=0 // loop_footer
    %s14 = sadd.s32 1, %s10
  $region7: #{resnet_generator_forward.31} parent=0 // loop_footer_branch
    %9 = sbr.rel target = $region3
  $region8: #{resnet_generator_forward.31} parent=0 // loop_exit
    _

// kernel: resnet_generator_forward.34
$region0: #{resnet_generator_forward.34}
  #allocation0 [shape = 'u32[]', space=smem, size = 0x4, offset = 0x4, fixed_abs, tag = 'smem constant byte address 0x4 - core index']
  #allocation1 [shape = 'u32[72,128]{1,0:T(1,128)}', space=vmem, size = 0x9000, scoped, tag = 'internal scratch']
  %s0 = inlined_call_operand.vmem [shape: bf16[128,128], index: 0, kind: input, shape index: {}]
  %s1 = inlined_call_operand.vmem [shape: f32[1,128], index: 1, kind: input, shape index: {}]
  %s2 = inlined_call_operand.vmem [shape: f32[1,128], index: 2, kind: input, shape index: {}]
  %s3 = inlined_call_operand.vmem [shape: bf16[128,128], index: 3, kind: output, shape index: {}]
  %s4 = sld [smem:[#allocation0]]
  $region22: #{resnet_generator_forward.34} parent=0
    _
  %s6 = ssub.s32 1, %s4
  %s7 = scalar_select 0, %s6, %s4
  // Predicated region
  $region2: #{resnet_generator_forward.34} parent=0 // pred_check
    _
  $region3: #{resnet_generator_forward.34} parent=0 // pred_check_branch
    %9 = sbr.rel (0) target = $region5
  $region4: #{resnet_generator_forward.34} parent=0 // pred_region
    _
  $region5: #{resnet_generator_forward.34} parent=0 // pred_fallthru
    _
  // Predicated region
  $region6: #{resnet_generator_forward.34} parent=0 // pred_check
    _
  $region7: #{resnet_generator_forward.34} parent=0 // pred_check_branch
    %11 = sbr.rel (0) target = $region9
  $region8: #{resnet_generator_forward.34} parent=0 // pred_region
    _
  $region9: #{resnet_generator_forward.34} parent=0 // pred_fallthru
    _
  // Predicated region
  $region10: #{resnet_generator_forward.34} parent=0 // pred_check
    _
  $region11: #{resnet_generator_forward.34} parent=0 // pred_check_branch
    %13 = sbr.rel (0) target = $region13
  $region12: #{resnet_generator_forward.34} parent=0 // pred_region
    _
  $region13: #{resnet_generator_forward.34} parent=0 // pred_fallthru
    _
  %v14 = vld [vmem:[%s0] sm:$0xf]
  %v15 = vld [vmem:[%s0 + $0x4] sm:$0xf]
  %v16 = vld [vmem:[%s0 + $0x8] sm:$0xf]
  %v17 = vld [vmem:[%s0 + $0xc] sm:$0xf]
  %v18 = vld [vmem:[%s0 + $0x10] sm:$0xf]
  %v19 = vld [vmem:[%s0 + $0x14] sm:$0xf]
  %v20 = vld [vmem:[%s0 + $0x18] sm:$0xf]
  %v21 = vld [vmem:[%s0 + $0x1c] sm:$0xf]
  %v22 = vld [vmem:[%s0 + $0x20] sm:$0xf]
  %v23 = vld [vmem:[%s0 + $0x24] sm:$0xf]
  %v24 = vld [vmem:[%s0 + $0x28] sm:$0xf]
  %v25 = vld [vmem:[%s0 + $0x2c] sm:$0xf]
  %v26 = vld [vmem:[%s0 + $0x30] sm:$0xf]
  %v27 = vld [vmem:[%s0 + $0x34] sm:$0xf]
  %v28 = vld [vmem:[%s0 + $0x38] sm:$0xf]
  %v29 = vld [vmem:[%s0 + $0x3c] sm:$0xf]
  %v30 = vunpack.c.l.bf16 %v14
  %v31 = vunpack.c.l.bf16 %v15
  %v32 = vunpack.c.l.bf16 %v16
  %v33 = vunpack.c.l.bf16 %v17
  %v34 = vunpack.c.l.bf16 %v18
  %v35 = vunpack.c.l.bf16 %v19
  %v36 = vunpack.c.l.bf16 %v20
  %v37 = vunpack.c.l.bf16 %v21
  %v38 = vunpack.c.l.bf16 %v22
  %v39 = vunpack.c.l.bf16 %v23
  %v40 = vunpack.c.l.bf16 %v24
  %v41 = vunpack.c.l.bf16 %v25
  %v42 = vunpack.c.l.bf16 %v26
  %v43 = vunpack.c.l.bf16 %v27
  %v44 = vunpack.c.l.bf16 %v28
  %v45 = vunpack.c.l.bf16 %v29
  %v46 = vld [vmem:[%s1] sm:$0x1]
  %v48 = vperm.slane %v46, 0
  %v50 = vmul.f32 %v30, %v48
  %v51 = vmul.f32 %v31, %v48
  %v52 = vmul.f32 %v32, %v48
  %v53 = vmul.f32 %v33, %v48
  %v54 = vmul.f32 %v34, %v48
  %v55 = vmul.f32 %v35, %v48
  %v56 = vmul.f32 %v36, %v48
  %v57 = vmul.f32 %v37, %v48
  %v58 = vmul.f32 %v38, %v48
  %v59 = vmul.f32 %v39, %v48
  %v60 = vmul.f32 %v40, %v48
  %v61 = vmul.f32 %v41, %v48
  %v62 = vmul.f32 %v42, %v48
  %v63 = vmul.f32 %v43, %v48
  %v64 = vmul.f32 %v44, %v48
  %v65 = vmul.f32 %v45, %v48
  %v66 = vld [vmem:[%s2] sm:$0x1]
  %v68 = vperm.slane %v66, 0
  %v70 = vadd.f32 %v50, %v68
  %v71 = vadd.f32 %v51, %v68
  %v72 = vadd.f32 %v52, %v68
  %v73 = vadd.f32 %v53, %v68
  %v74 = vadd.f32 %v54, %v68
  %v75 = vadd.f32 %v55, %v68
  %v76 = vadd.f32 %v56, %v68
  %v77 = vadd.f32 %v57, %v68
  %v78 = vadd.f32 %v58, %v68
  %v79 = vadd.f32 %v59, %v68
  %v80 = vadd.f32 %v60, %v68
  %v81 = vadd.f32 %v61, %v68
  %v82 = vadd.f32 %v62, %v68
  %v83 = vadd.f32 %v63, %v68
  %v84 = vadd.f32 %v64, %v68
  %v85 = vadd.f32 %v65, %v68
  %v86 = vmax.f32 %v70, 0.0
  %v87 = vmax.f32 %v71, 0.0
  %v88 = vmax.f32 %v72, 0.0
  %v89 = vmax.f32 %v73, 0.0
  %v90 = vmax.f32 %v74, 0.0
  %v91 = vmax.f32 %v75, 0.0
  %v92 = vmax.f32 %v76, 0.0
  %v93 = vmax.f32 %v77, 0.0
  %v94 = vmax.f32 %v78, 0.0
  %v95 = vmax.f32 %v79, 0.0
  %v96 = vmax.f32 %v80, 0.0
  %v97 = vmax.f32 %v81, 0.0
  %v98 = vmax.f32 %v82, 0.0
  %v99 = vmax.f32 %v83, 0.0
  %v100 = vmax.f32 %v84, 0.0
  %v101 = vmax.f32 %v85, 0.0
  %v102 = vpack.c.bf16 %v86, %v86
  %v103 = vpack.c.bf16 %v87, %v87
  %v104 = vpack.c.bf16 %v88, %v88
  %v105 = vpack.c.bf16 %v89, %v89
  %v106 = vpack.c.bf16 %v90, %v90
  %v107 = vpack.c.bf16 %v91, %v91
  %v108 = vpack.c.bf16 %v92, %v92
  %v109 = vpack.c.bf16 %v93, %v93
  %v110 = vpack.c.bf16 %v94, %v94
  %v111 = vpack.c.bf16 %v95, %v95
  %v112 = vpack.c.bf16 %v96, %v96
  %v113 = vpack.c.bf16 %v97, %v97
  %v114 = vpack.c.bf16 %v98, %v98
  %v115 = vpack.c.bf16 %v99, %v99
  %v116 = vpack.c.bf16 %v100, %v100
  %v117 = vpack.c.bf16 %v101, %v101
  %118 = vst [vmem:[%s3] sm:$0xf] %v102
  %119 = vst [vmem:[%s3 + $0x4] sm:$0xf] %v103
  %120 = vst [vmem:[%s3 + $0x8] sm:$0xf] %v104
  %121 = vst [vmem:[%s3 + $0xc] sm:$0xf] %v105
  %122 = vst [vmem:[%s3 + $0x10] sm:$0xf] %v106
  %123 = vst [vmem:[%s3 + $0x14] sm:$0xf] %v107
  %124 = vst [vmem:[%s3 + $0x18] sm:$0xf] %v108
  %125 = vst [vmem:[%s3 + $0x1c] sm:$0xf] %v109
  %126 = vst [vmem:[%s3 + $0x20] sm:$0xf] %v110
  %127 = vst [vmem:[%s3 + $0x24] sm:$0xf] %v111
  %128 = vst [vmem:[%s3 + $0x28] sm:$0xf] %v112
  %129 = vst [vmem:[%s3 + $0x2c] sm:$0xf] %v113
  %130 = vst [vmem:[%s3 + $0x30] sm:$0xf] %v114
  %131 = vst [vmem:[%s3 + $0x34] sm:$0xf] %v115
  %132 = vst [vmem:[%s3 + $0x38] sm:$0xf] %v116
  %133 = vst [vmem:[%s3 + $0x3c] sm:$0xf] %v117
  // Predicated region
  $region14: #{resnet_generator_forward.34} parent=0 // pred_check
    _
  $region15: #{resnet_generator_forward.34} parent=0 // pred_check_branch
    %135 = sbr.rel (0) target = $region17
  $region16: #{resnet_generator_forward.34} parent=0 // pred_region
    _
  $region17: #{resnet_generator_forward.34} parent=0 // pred_fallthru
    _
  // Predicated region
  $region18: #{resnet_generator_forward.34} parent=0 // pred_check
    _
  $region19: #{resnet_generator_forward.34} parent=0 // pred_check_branch
    %137 = sbr.rel (0) target = $region21
  $region20: #{resnet_generator_forward.34} parent=0 // pred_region
    _
  $region21: #{resnet_generator_forward.34} parent=0 // pred_fallthru
    _

// kernel: resnet_generator_forward.33
$region0: #{resnet_generator_forward.33}
  #allocation0 [shape = 'u32[]', space=smem, size = 0x4, offset = 0x4, fixed_abs, tag = 'smem constant byte address 0x4 - core index']
  #allocation1 [shape = 'u32[72,128]{1,0:T(1,128)}', space=vmem, size = 0x9000, scoped, tag = 'internal scratch']
  #allocation2 [shape = 'f32[128,128]{1,0:T(8,128)}', space=vmem, size = 0x10000, scoped, tag = 'scratch operand']
  %s0 = inlined_call_operand.vmem [shape: bf16[128,128], index: 0, kind: input, shape index: {}]
  %s1 = inlined_call_operand.vmem [shape: bf16[128,128], index: 1, kind: input, shape index: {}]
  %s2 = inlined_call_operand.vmem [shape: bf16[128,128], index: 2, kind: output, shape index: {0}]
  %s3 = inlined_call_operand.vmem [shape: f32[8,128], index: 3, kind: output, shape index: {1}]
  %4 = xla_tuple %s2, %s3
  %s5 = sld [smem:[#allocation0]]
  $region34: #{resnet_generator_forward.33} parent=0
    _
  %s7 = ssub.s32 1, %s5
  %s8 = scalar_select 0, %s7, %s5
  // Predicated region
  $region2: #{resnet_generator_forward.33} parent=0 // pred_check
    _
  $region3: #{resnet_generator_forward.33} parent=0 // pred_check_branch
    %10 = sbr.rel (0) target = $region5
  $region4: #{resnet_generator_forward.33} parent=0 // pred_region
    _
  $region5: #{resnet_generator_forward.33} parent=0 // pred_fallthru
    _
  // Predicated region
  $region6: #{resnet_generator_forward.33} parent=0 // pred_check
    _
  $region7: #{resnet_generator_forward.33} parent=0 // pred_check_branch
    %12 = sbr.rel (0) target = $region9
  $region8: #{resnet_generator_forward.33} parent=0 // pred_region
    _
  $region9: #{resnet_generator_forward.33} parent=0 // pred_fallthru
    _
  %p13 = scmp.eq.s32.totalorder 0, 0
  // Predicated region
  $region10: #{resnet_generator_forward.33} parent=0 // pred_check
    %p14 = pneg %p13
  $region11: #{resnet_generator_forward.33} parent=0 // pred_check_branch
    %16 = sbr.rel (%p14) target = $region13
  $region12: #{resnet_generator_forward.33} parent=0 // pred_region
    %17 = vst [vmem:[#allocation2] sm:$0xff] 0.0
    %18 = vst [vmem:[#allocation2 + $0x8] sm:$0xff] 0.0
    %19 = vst [vmem:[#allocation2 + $0x10] sm:$0xff] 0.0
    %20 = vst [vmem:[#allocation2 + $0x18] sm:$0xff] 0.0
    %21 = vst [vmem:[#allocation2 + $0x20] sm:$0xff] 0.0
    %22 = vst [vmem:[#allocation2 + $0x28] sm:$0xff] 0.0
    %23 = vst [vmem:[#allocation2 + $0x30] sm:$0xff] 0.0
    %24 = vst [vmem:[#allocation2 + $0x38] sm:$0xff] 0.0
    %25 = vst [vmem:[#allocation2 + $0x40] sm:$0xff] 0.0
    %26 = vst [vmem:[#allocation2 + $0x48] sm:$0xff] 0.0
    %27 = vst [vmem:[#allocation2 + $0x50] sm:$0xff] 0.0
    %28 = vst [vmem:[#allocation2 + $0x58] sm:$0xff] 0.0
    %29 = vst [vmem:[#allocation2 + $0x60] sm:$0xff] 0.0
    %30 = vst [vmem:[#allocation2 + $0x68] sm:$0xff] 0.0
    %31 = vst [vmem:[#allocation2 + $0x70] sm:$0xff] 0.0
    %32 = vst [vmem:[#allocation2 + $0x78] sm:$0xff] 0.0
  $region13: #{resnet_generator_forward.33} parent=0 // pred_fallthru
    _
  %v33 = vld [vmem:[#allocation2] sm:$0xff]
  %v34 = vld [vmem:[#allocation2 + $0x8] sm:$0xff]
  %v35 = vld [vmem:[#allocation2 + $0x10] sm:$0xff]
  %v36 = vld [vmem:[#allocation2 + $0x18] sm:$0xff]
  %v37 = vld [vmem:[#allocation2 + $0x20] sm:$0xff]
  %v38 = vld [vmem:[#allocation2 + $0x28] sm:$0xff]
  %v39 = vld [vmem:[#allocation2 + $0x30] sm:$0xff]
  %v40 = vld [vmem:[#allocation2 + $0x38] sm:$0xff]
  %v41 = vld [vmem:[#allocation2 + $0x40] sm:$0xff]
  %v42 = vld [vmem:[#allocation2 + $0x48] sm:$0xff]
  %v43 = vld [vmem:[#allocation2 + $0x50] sm:$0xff]
  %v44 = vld [vmem:[#allocation2 + $0x58] sm:$0xff]
  %v45 = vld [vmem:[#allocation2 + $0x60] sm:$0xff]
  %v46 = vld [vmem:[#allocation2 + $0x68] sm:$0xff]
  %v47 = vld [vmem:[#allocation2 + $0x70] sm:$0xff]
  %v48 = vld [vmem:[#allocation2 + $0x78] sm:$0xff]
  %v49 = vld [vmem:[%s0] sm:$0xf]
  %v50 = vld [vmem:[%s0 + $0x4] sm:$0xf]
  %v51 = vld [vmem:[%s0 + $0x8] sm:$0xf]
  %v52 = vld [vmem:[%s0 + $0xc] sm:$0xf]
  %v53 = vld [vmem:[%s0 + $0x10] sm:$0xf]
  %v54 = vld [vmem:[%s0 + $0x14] sm:$0xf]
  %v55 = vld [vmem:[%s0 + $0x18] sm:$0xf]
  %v56 = vld [vmem:[%s0 + $0x1c] sm:$0xf]
  %v57 = vld [vmem:[%s0 + $0x20] sm:$0xf]
  %v58 = vld [vmem:[%s0 + $0x24] sm:$0xf]
  %v59 = vld [vmem:[%s0 + $0x28] sm:$0xf]
  %v60 = vld [vmem:[%s0 + $0x2c] sm:$0xf]
  %v61 = vld [vmem:[%s0 + $0x30] sm:$0xf]
  %v62 = vld [vmem:[%s0 + $0x34] sm:$0xf]
  %v63 = vld [vmem:[%s0 + $0x38] sm:$0xf]
  %v64 = vld [vmem:[%s0 + $0x3c] sm:$0xf]
  %v65 = vld [vmem:[%s1] sm:$0xf]
  %v66 = vld [vmem:[%s1 + $0x4] sm:$0xf]
  %v67 = vld [vmem:[%s1 + $0x8] sm:$0xf]
  %v68 = vld [vmem:[%s1 + $0xc] sm:$0xf]
  %v69 = vld [vmem:[%s1 + $0x10] sm:$0xf]
  %v70 = vld [vmem:[%s1 + $0x14] sm:$0xf]
  %v71 = vld [vmem:[%s1 + $0x18] sm:$0xf]
  %v72 = vld [vmem:[%s1 + $0x1c] sm:$0xf]
  %v73 = vld [vmem:[%s1 + $0x20] sm:$0xf]
  %v74 = vld [vmem:[%s1 + $0x24] sm:$0xf]
  %v75 = vld [vmem:[%s1 + $0x28] sm:$0xf]
  %v76 = vld [vmem:[%s1 + $0x2c] sm:$0xf]
  %v77 = vld [vmem:[%s1 + $0x30] sm:$0xf]
  %v78 = vld [vmem:[%s1 + $0x34] sm:$0xf]
  %v79 = vld [vmem:[%s1 + $0x38] sm:$0xf]
  %v80 = vld [vmem:[%s1 + $0x3c] sm:$0xf]
  %v97 = vunpack.c.l.b16 %v49
  %v98 = vunpack.c.l.b16 %v50
  %v99 = vunpack.c.l.b16 %v51
  %v100 = vunpack.c.l.b16 %v52
  %v101 = vunpack.c.l.b16 %v53
  %v102 = vunpack.c.l.b16 %v54
  %v103 = vunpack.c.l.b16 %v55
  %v104 = vunpack.c.l.b16 %v56
  %v105 = vunpack.c.l.b16 %v57
  %v106 = vunpack.c.l.b16 %v58
  %v107 = vunpack.c.l.b16 %v59
  %v108 = vunpack.c.l.b16 %v60
  %v109 = vunpack.c.l.b16 %v61
  %v110 = vunpack.c.l.b16 %v62
  %v111 = vunpack.c.l.b16 %v63
  %v112 = vunpack.c.l.b16 %v64
  %v113 = vpack.c.b16 %v98, %v97
  %v114 = vpack.c.b16 %v100, %v99
  %v115 = vpack.c.b16 %v102, %v101
  %v116 = vpack.c.b16 %v104, %v103
  %v117 = vpack.c.b16 %v106, %v105
  %v118 = vpack.c.b16 %v108, %v107
  %v119 = vpack.c.b16 %v110, %v109
  %v120 = vpack.c.b16 %v112, %v111
  %v145 = vunpack.c.l.b16 %v65
  %v146 = vunpack.c.l.b16 %v66
  %v147 = vunpack.c.l.b16 %v67
  %v148 = vunpack.c.l.b16 %v68
  %v149 = vunpack.c.l.b16 %v69
  %v150 = vunpack.c.l.b16 %v70
  %v151 = vunpack.c.l.b16 %v71
  %v152 = vunpack.c.l.b16 %v72
  %v153 = vunpack.c.l.b16 %v73
  %v154 = vunpack.c.l.b16 %v74
  %v155 = vunpack.c.l.b16 %v75
  %v156 = vunpack.c.l.b16 %v76
  %v157 = vunpack.c.l.b16 %v77
  %v158 = vunpack.c.l.b16 %v78
  %v159 = vunpack.c.l.b16 %v79
  %v160 = vunpack.c.l.b16 %v80
  %v161 = vpack.c.b16 %v146, %v145
  %v162 = vpack.c.b16 %v148, %v147
  %v163 = vpack.c.b16 %v150, %v149
  %v164 = vpack.c.b16 %v152, %v151
  %v165 = vpack.c.b16 %v154, %v153
  %v166 = vpack.c.b16 %v156, %v155
  %v167 = vpack.c.b16 %v158, %v157
  %v168 = vpack.c.b16 %v160, %v159
  %177 = vmatpush.bf16.msra.mxu0 %v168
  %178 = vmatpush.bf16.msra.mxu0 %v167
  %179 = vmatpush.bf16.msra.mxu0 %v166
  %180 = vmatpush.bf16.msra.mxu0 %v165
  %181 = vmatpush.bf16.msra.mxu0 %v164
  %182 = vmatpush.bf16.msra.mxu0 %v163
  %183 = vmatpush.bf16.msra.mxu0 %v162
  %184 = vmatpush.bf16.msra.mxu0 %v161
  %185 = vmatmul.bf16.gmra.mxu0 %v113
  %v186 = vpop.f32.mrf.mxu0
  %v187 = vadd.f32 0.0, %v186
  %v188 = vpop.f32.mrf.mxu0
  %v189 = vadd.f32 0.0, %v188
  %190 = vmatmul.bf16.gmra.mxu0 %v114
  %v191 = vpop.f32.mrf.mxu0
  %v192 = vadd.f32 0.0, %v191
  %v193 = vpop.f32.mrf.mxu0
  %v194 = vadd.f32 0.0, %v193
  %195 = vmatmul.bf16.gmra.mxu0 %v115
  %v196 = vpop.f32.mrf.mxu0
  %v197 = vadd.f32 0.0, %v196
  %v198 = vpop.f32.mrf.mxu0
  %v199 = vadd.f32 0.0, %v198
  %200 = vmatmul.bf16.gmra.mxu0 %v116
  %v201 = vpop.f32.mrf.mxu0
  %v202 = vadd.f32 0.0, %v201
  %v203 = vpop.f32.mrf.mxu0
  %v204 = vadd.f32 0.0, %v203
  %205 = vmatmul.bf16.gmra.mxu0 %v117
  %v206 = vpop.f32.mrf.mxu0
  %v207 = vadd.f32 0.0, %v206
  %v208 = vpop.f32.mrf.mxu0
  %v209 = vadd.f32 0.0, %v208
  %210 = vmatmul.bf16.gmra.mxu0 %v118
  %v211 = vpop.f32.mrf.mxu0
  %v212 = vadd.f32 0.0, %v211
  %v213 = vpop.f32.mrf.mxu0
  %v214 = vadd.f32 0.0, %v213
  %215 = vmatmul.bf16.gmra.mxu0 %v119
  %v216 = vpop.f32.mrf.mxu0
  %v217 = vadd.f32 0.0, %v216
  %v218 = vpop.f32.mrf.mxu0
  %v219 = vadd.f32 0.0, %v218
  %220 = vmatmul.bf16.gmra.mxu0 %v120
  %v221 = vpop.f32.mrf.mxu0
  %v222 = vadd.f32 0.0, %v221
  %v223 = vpop.f32.mrf.mxu0
  %v224 = vadd.f32 0.0, %v223
  %225 = vdwg.mxu0
  %v226 = vadd.f32 %v33, %v187
  %v227 = vadd.f32 %v34, %v189
  %v228 = vadd.f32 %v35, %v192
  %v229 = vadd.f32 %v36, %v194
  %v230 = vadd.f32 %v37, %v197
  %v231 = vadd.f32 %v38, %v199
  %v232 = vadd.f32 %v39, %v202
  %v233 = vadd.f32 %v40, %v204
  %v234 = vadd.f32 %v41, %v207
  %v235 = vadd.f32 %v42, %v209
  %v236 = vadd.f32 %v43, %v212
  %v237 = vadd.f32 %v44, %v214
  %v238 = vadd.f32 %v45, %v217
  %v239 = vadd.f32 %v46, %v219
  %v240 = vadd.f32 %v47, %v222
  %v241 = vadd.f32 %v48, %v224
  %242 = vst [vmem:[#allocation2] sm:$0xff] %v226
  %243 = vst [vmem:[#allocation2 + $0x8] sm:$0xff] %v227
  %244 = vst [vmem:[#allocation2 + $0x10] sm:$0xff] %v228
  %245 = vst [vmem:[#allocation2 + $0x18] sm:$0xff] %v229
  %246 = vst [vmem:[#allocation2 + $0x20] sm:$0xff] %v230
  %247 = vst [vmem:[#allocation2 + $0x28] sm:$0xff] %v231
  %248 = vst [vmem:[#allocation2 + $0x30] sm:$0xff] %v232
  %249 = vst [vmem:[#allocation2 + $0x38] sm:$0xff] %v233
  %250 = vst [vmem:[#allocation2 + $0x40] sm:$0xff] %v234
  %251 = vst [vmem:[#allocation2 + $0x48] sm:$0xff] %v235
  %252 = vst [vmem:[#allocation2 + $0x50] sm:$0xff] %v236
  %253 = vst [vmem:[#allocation2 + $0x58] sm:$0xff] %v237
  %254 = vst [vmem:[#allocation2 + $0x60] sm:$0xff] %v238
  %255 = vst [vmem:[#allocation2 + $0x68] sm:$0xff] %v239
  %256 = vst [vmem:[#allocation2 + $0x70] sm:$0xff] %v240
  %257 = vst [vmem:[#allocation2 + $0x78] sm:$0xff] %v241
  // Predicated region
  $region14: #{resnet_generator_forward.33} parent=0 // pred_check
    %p258 = pneg %p13
  $region15: #{resnet_generator_forward.33} parent=0 // pred_check_branch
    %260 = sbr.rel (%p258) target = $region17
  $region16: #{resnet_generator_forward.33} parent=0 // pred_region
    %v261 = vld [vmem:[#allocation2] sm:$0xff]
    %v262 = vld [vmem:[#allocation2 + $0x8] sm:$0xff]
    %v263 = vld [vmem:[#allocation2 + $0x10] sm:$0xff]
    %v264 = vld [vmem:[#allocation2 + $0x18] sm:$0xff]
    %v265 = vld [vmem:[#allocation2 + $0x20] sm:$0xff]
    %v266 = vld [vmem:[#allocation2 + $0x28] sm:$0xff]
    %v267 = vld [vmem:[#allocation2 + $0x30] sm:$0xff]
    %v268 = vld [vmem:[#allocation2 + $0x38] sm:$0xff]
    %v269 = vld [vmem:[#allocation2 + $0x40] sm:$0xff]
    %v270 = vld [vmem:[#allocation2 + $0x48] sm:$0xff]
    %v271 = vld [vmem:[#allocation2 + $0x50] sm:$0xff]
    %v272 = vld [vmem:[#allocation2 + $0x58] sm:$0xff]
    %v273 = vld [vmem:[#allocation2 + $0x60] sm:$0xff]
    %v274 = vld [vmem:[#allocation2 + $0x68] sm:$0xff]
    %v275 = vld [vmem:[#allocation2 + $0x70] sm:$0xff]
    %v276 = vld [vmem:[#allocation2 + $0x78] sm:$0xff]
    %v277 = vpack.c.bf16 %v261, %v261
    %v278 = vpack.c.bf16 %v262, %v262
    %v279 = vpack.c.bf16 %v263, %v263
    %v280 = vpack.c.bf16 %v264, %v264
    %v281 = vpack.c.bf16 %v265, %v265
    %v282 = vpack.c.bf16 %v266, %v266
    %v283 = vpack.c.bf16 %v267, %v267
    %v284 = vpack.c.bf16 %v268, %v268
    %v285 = vpack.c.bf16 %v269, %v269
    %v286 = vpack.c.bf16 %v270, %v270
    %v287 = vpack.c.bf16 %v271, %v271
    %v288 = vpack.c.bf16 %v272, %v272
    %v289 = vpack.c.bf16 %v273, %v273
    %v290 = vpack.c.bf16 %v274, %v274
    %v291 = vpack.c.bf16 %v275, %v275
    %v292 = vpack.c.bf16 %v276, %v276
    %293 = vst [vmem:[%s2] sm:$0xf] %v277
    %294 = vst [vmem:[%s2 + $0x4] sm:$0xf] %v278
    %295 = vst [vmem:[%s2 + $0x8] sm:$0xf] %v279
    %296 = vst [vmem:[%s2 + $0xc] sm:$0xf] %v280
    %297 = vst [vmem:[%s2 + $0x10] sm:$0xf] %v281
    %298 = vst [vmem:[%s2 + $0x14] sm:$0xf] %v282
    %299 = vst [vmem:[%s2 + $0x18] sm:$0xf] %v283
    %300 = vst [vmem:[%s2 + $0x1c] sm:$0xf] %v284
    %301 = vst [vmem:[%s2 + $0x20] sm:$0xf] %v285
    %302 = vst [vmem:[%s2 + $0x24] sm:$0xf] %v286
    %303 = vst [vmem:[%s2 + $0x28] sm:$0xf] %v287
    %304 = vst [vmem:[%s2 + $0x2c] sm:$0xf] %v288
    %305 = vst [vmem:[%s2 + $0x30] sm:$0xf] %v289
    %306 = vst [vmem:[%s2 + $0x34] sm:$0xf] %v290
    %307 = vst [vmem:[%s2 + $0x38] sm:$0xf] %v291
    %308 = vst [vmem:[%s2 + $0x3c] sm:$0xf] %v292
    %v309 = vadd.f32 %v261, %v262
    %v310 = vadd.f32 %v309, %v263
    %v311 = vadd.f32 %v310, %v264
    %v312 = vadd.f32 %v311, %v265
    %v313 = vadd.f32 %v312, %v266
    %v314 = vadd.f32 %v313, %v267
    %v315 = vadd.f32 %v314, %v268
    %v316 = vadd.f32 %v315, %v269
    %v317 = vadd.f32 %v316, %v270
    %v318 = vadd.f32 %v317, %v271
    %v319 = vadd.f32 %v318, %v272
    %v320 = vadd.f32 %v319, %v273
    %v321 = vadd.f32 %v320, %v274
    %v322 = vadd.f32 %v321, %v275
    %v323 = vadd.f32 %v322, %v276
    %v324 = vrot.slane %v323, 4
    %v325 = vadd.f32 %v323, %v324
    %v326 = vrot.slane %v325, 2
    %v327 = vadd.f32 %v325, %v326
    %v328 = vrot.slane %v327, 1
    %v329 = vadd.f32 %v327, %v328
    %v330 = vmul.f32 %v261, %v261
    %v331 = vmul.f32 %v262, %v262
    %v332 = vmul.f32 %v263, %v263
    %v333 = vmul.f32 %v264, %v264
    %v334 = vmul.f32 %v265, %v265
    %v335 = vmul.f32 %v266, %v266
    %v336 = vmul.f32 %v267, %v267
    %v337 = vmul.f32 %v268, %v268
    %v338 = vmul.f32 %v269, %v269
    %v339 = vmul.f32 %v270, %v270
    %v340 = vmul.f32 %v271, %v271
    %v341 = vmul.f32 %v272, %v272
    %v342 = vmul.f32 %v273, %v273
    %v343 = vmul.f32 %v274, %v274
    %v344 = vmul.f32 %v275, %v275
    %v345 = vmul.f32 %v276, %v276
    %v346 = vadd.f32 %v330, %v331
    %v347 = vadd.f32 %v346, %v332
    %v348 = vadd.f32 %v347, %v333
    %v349 = vadd.f32 %v348, %v334
    %v350 = vadd.f32 %v349, %v335
    %v351 = vadd.f32 %v350, %v336
    %v352 = vadd.f32 %v351, %v337
    %v353 = vadd.f32 %v352, %v338
    %v354 = vadd.f32 %v353, %v339
    %v355 = vadd.f32 %v354, %v340
    %v356 = vadd.f32 %v355, %v341
    %v357 = vadd.f32 %v356, %v342
    %v358 = vadd.f32 %v357, %v343
    %v359 = vadd.f32 %v358, %v344
    %v360 = vadd.f32 %v359, %v345
    %v361 = vrot.slane %v360, 4
    %v362 = vadd.f32 %v360, %v361
    %v363 = vrot.slane %v362, 2
    %v364 = vadd.f32 %v362, %v363
    %v365 = vrot.slane %v364, 1
    %v366 = vadd.f32 %v364, %v365
    %v367 = vlaneseq
    %v368 = vshrl.u32 %v367, 7
    %vm369 = vcmp.eq.s32.totalorder %v368, 0
    %vm370 = vcmp.eq.s32.totalorder %v368, 1
    %v371 = vsel %vm370, %v366, 0.0
    %v372 = vsel %vm369, %v329, %v371
    %373 = vst [vmem:[%s3] sm:$0xff] %v372
  $region17: #{resnet_generator_forward.33} parent=0 // pred_fallthru
    _
  // Predicated region
  $region18: #{resnet_generator_forward.33} parent=0 // pred_check
    _
  $region19: #{resnet_generator_forward.33} parent=0 // pred_check_branch
    %375 = sbr.rel (0) target = $region21
  $region20: #{resnet_generator_forward.33} parent=0 // pred_region
    _
  $region21: #{resnet_generator_forward.33} parent=0 // pred_fallthru
    _
  // Predicated region
  $region22: #{resnet_generator_forward.33} parent=0 // pred_check
    _
  $region23: #{resnet_generator_forward.33} parent=0 // pred_check_branch
    %377 = sbr.rel (0) target = $region25
  $region24: #{resnet_generator_forward.33} parent=0 // pred_region
    _
  $region25: #{resnet_generator_forward.33} parent=0 // pred_fallthru
    _
  // Predicated region
  $region26: #{resnet_generator_forward.33} parent=0 // pred_check
    _
  $region27: #{resnet_generator_forward.33} parent=0 // pred_check_branch
    %379 = sbr.rel (0) target = $region29
  $region28: #{resnet_generator_forward.33} parent=0 // pred_region
    _
  $region29: #{resnet_generator_forward.33} parent=0 // pred_fallthru
    _
  // Predicated region
  $region30: #{resnet_generator_forward.33} parent=0 // pred_check
    _
  $region31: #{resnet_generator_forward.33} parent=0 // pred_check_branch
    %381 = sbr.rel (0) target = $region33
  $region32: #{resnet_generator_forward.33} parent=0 // pred_region
    _
  $region33: #{resnet_generator_forward.33} parent=0 // pred_fallthru
    _

// kernel: resnet_generator_forward.36
$region0: #{resnet_generator_forward.36}
  #allocation0 [shape = 'u32[]', space=smem, size = 0x4, offset = 0x4, fixed_abs, tag = 'smem constant byte address 0x4 - core index']
  #allocation1 [shape = 'u32[72,128]{1,0:T(1,128)}', space=vmem, size = 0x9000, scoped, tag = 'internal scratch']
  %s0 = inlined_call_operand.vmem [shape: bf16[32,128], index: 0, kind: input, shape index: {}]
  %s1 = inlined_call_operand.vmem [shape: f32[1,128], index: 1, kind: input, shape index: {}]
  %s2 = inlined_call_operand.vmem [shape: f32[1,128], index: 2, kind: input, shape index: {}]
  %s3 = inlined_call_operand.vmem [shape: bf16[32,128], index: 3, kind: output, shape index: {}]
  %s4 = sld [smem:[#allocation0]]
  $region22: #{resnet_generator_forward.36} parent=0
    _
  %s6 = ssub.s32 1, %s4
  %s7 = scalar_select 0, %s6, %s4
  // Predicated region
  $region2: #{resnet_generator_forward.36} parent=0 // pred_check
    _
  $region3: #{resnet_generator_forward.36} parent=0 // pred_check_branch
    %9 = sbr.rel (0) target = $region5
  $region4: #{resnet_generator_forward.36} parent=0 // pred_region
    _
  $region5: #{resnet_generator_forward.36} parent=0 // pred_fallthru
    _
  // Predicated region
  $region6: #{resnet_generator_forward.36} parent=0 // pred_check
    _
  $region7: #{resnet_generator_forward.36} parent=0 // pred_check_branch
    %11 = sbr.rel (0) target = $region9
  $region8: #{resnet_generator_forward.36} parent=0 // pred_region
    _
  $region9: #{resnet_generator_forward.36} parent=0 // pred_fallthru
    _
  // Predicated region
  $region10: #{resnet_generator_forward.36} parent=0 // pred_check
    _
  $region11: #{resnet_generator_forward.36} parent=0 // pred_check_branch
    %13 = sbr.rel (0) target = $region13
  $region12: #{resnet_generator_forward.36} parent=0 // pred_region
    _
  $region13: #{resnet_generator_forward.36} parent=0 // pred_fallthru
    _
  %v14 = vld [vmem:[%s0] sm:$0xf]
  %v15 = vld [vmem:[%s0 + $0x4] sm:$0xf]
  %v16 = vld [vmem:[%s0 + $0x8] sm:$0xf]
  %v17 = vld [vmem:[%s0 + $0xc] sm:$0xf]
  %v18 = vunpack.c.l.bf16 %v14
  %v19 = vunpack.c.l.bf16 %v15
  %v20 = vunpack.c.l.bf16 %v16
  %v21 = vunpack.c.l.bf16 %v17
  %v22 = vld [vmem:[%s1] sm:$0x1]
  %v24 = vperm.slane %v22, 0
  %v26 = vmul.f32 %v18, %v24
  %v27 = vmul.f32 %v19, %v24
  %v28 = vmul.f32 %v20, %v24
  %v29 = vmul.f32 %v21, %v24
  %v30 = vld [vmem:[%s2] sm:$0x1]
  %v32 = vperm.slane %v30, 0
  %v34 = vadd.f32 %v26, %v32
  %v35 = vadd.f32 %v27, %v32
  %v36 = vadd.f32 %v28, %v32
  %v37 = vadd.f32 %v29, %v32
  %v38 = vmax.f32 %v34, 0.0
  %v39 = vmax.f32 %v35, 0.0
  %v40 = vmax.f32 %v36, 0.0
  %v41 = vmax.f32 %v37, 0.0
  %v42 = vpack.c.bf16 %v38, %v38
  %v43 = vpack.c.bf16 %v39, %v39
  %v44 = vpack.c.bf16 %v40, %v40
  %v45 = vpack.c.bf16 %v41, %v41
  %46 = vst [vmem:[%s3] sm:$0xf] %v42
  %47 = vst [vmem:[%s3 + $0x4] sm:$0xf] %v43
  %48 = vst [vmem:[%s3 + $0x8] sm:$0xf] %v44
  %49 = vst [vmem:[%s3 + $0xc] sm:$0xf] %v45
  // Predicated region
  $region14: #{resnet_generator_forward.36} parent=0 // pred_check
    _
  $region15: #{resnet_generator_forward.36} parent=0 // pred_check_branch
    %51 = sbr.rel (0) target = $region17
  $region16: #{resnet_generator_forward.36} parent=0 // pred_region
    _
  $region17: #{resnet_generator_forward.36} parent=0 // pred_fallthru
    _
  // Predicated region
  $region18: #{resnet_generator_forward.36} parent=0 // pred_check
    _
  $region19: #{resnet_generator_forward.36} parent=0 // pred_check_branch
    %53 = sbr.rel (0) target = $region21
  $region20: #{resnet_generator_forward.36} parent=0 // pred_region
    _
  $region21: #{resnet_generator_forward.36} parent=0 // pred_fallthru
    _

// kernel: resnet_generator_forward.35
$region0: #{resnet_generator_forward.35}
  #allocation0 [shape = 'u32[]', space=smem, size = 0x4, offset = 0x4, fixed_abs, tag = 'smem constant byte address 0x4 - core index']
  #allocation1 [shape = 'u32[72,128]{1,0:T(1,128)}', space=vmem, size = 0x9000, scoped, tag = 'internal scratch']
  #allocation2 [shape = 'f32[32,128]{1,0:T(8,128)}', space=vmem, size = 0x4000, scoped, tag = 'scratch operand']
  %s0 = inlined_call_operand.vmem [shape: bf16[32,256], index: 0, kind: input, shape index: {}]
  %s1 = inlined_call_operand.vmem [shape: bf16[256,128], index: 1, kind: input, shape index: {}]
  %s2 = inlined_call_operand.vmem [shape: bf16[32,128], index: 2, kind: output, shape index: {0}]
  %s3 = inlined_call_operand.vmem [shape: f32[8,128], index: 3, kind: output, shape index: {1}]
  %4 = xla_tuple %s2, %s3
  %s5 = sld [smem:[#allocation0]]
  $region34: #{resnet_generator_forward.35} parent=0
    _
  %s7 = ssub.s32 1, %s5
  %s8 = scalar_select 0, %s7, %s5
  // Predicated region
  $region2: #{resnet_generator_forward.35} parent=0 // pred_check
    _
  $region3: #{resnet_generator_forward.35} parent=0 // pred_check_branch
    %10 = sbr.rel (0) target = $region5
  $region4: #{resnet_generator_forward.35} parent=0 // pred_region
    _
  $region5: #{resnet_generator_forward.35} parent=0 // pred_fallthru
    _
  // Predicated region
  $region6: #{resnet_generator_forward.35} parent=0 // pred_check
    _
  $region7: #{resnet_generator_forward.35} parent=0 // pred_check_branch
    %12 = sbr.rel (0) target = $region9
  $region8: #{resnet_generator_forward.35} parent=0 // pred_region
    _
  $region9: #{resnet_generator_forward.35} parent=0 // pred_fallthru
    _
  %p13 = scmp.eq.s32.totalorder 0, 0
  // Predicated region
  $region10: #{resnet_generator_forward.35} parent=0 // pred_check
    %p14 = pneg %p13
  $region11: #{resnet_generator_forward.35} parent=0 // pred_check_branch
    %16 = sbr.rel (%p14) target = $region13
  $region12: #{resnet_generator_forward.35} parent=0 // pred_region
    %17 = vst [vmem:[#allocation2] sm:$0xff] 0.0
    %18 = vst [vmem:[#allocation2 + $0x8] sm:$0xff] 0.0
    %19 = vst [vmem:[#allocation2 + $0x10] sm:$0xff] 0.0
    %20 = vst [vmem:[#allocation2 + $0x18] sm:$0xff] 0.0
  $region13: #{resnet_generator_forward.35} parent=0 // pred_fallthru
    _
  %v21 = vld [vmem:[#allocation2] sm:$0xff]
  %v22 = vld [vmem:[#allocation2 + $0x8] sm:$0xff]
  %v23 = vld [vmem:[#allocation2 + $0x10] sm:$0xff]
  %v24 = vld [vmem:[#allocation2 + $0x18] sm:$0xff]
  %v25 = vld [vmem:[%s0] sm:$0xff]
  %v26 = vld [vmem:[%s0 + $0x8] sm:$0xff]
  %v27 = vld [vmem:[%s0 + $0x10] sm:$0xff]
  %v28 = vld [vmem:[%s0 + $0x18] sm:$0xff]
  %v29 = vld [vmem:[%s1] sm:$0xf]
  %v30 = vld [vmem:[%s1 + $0x4] sm:$0xf]
  %v31 = vld [vmem:[%s1 + $0x8] sm:$0xf]
  %v32 = vld [vmem:[%s1 + $0xc] sm:$0xf]
  %v33 = vld [vmem:[%s1 + $0x10] sm:$0xf]
  %v34 = vld [vmem:[%s1 + $0x14] sm:$0xf]
  %v35 = vld [vmem:[%s1 + $0x18] sm:$0xf]
  %v36 = vld [vmem:[%s1 + $0x1c] sm:$0xf]
  %v37 = vld [vmem:[%s1 + $0x20] sm:$0xf]
  %v38 = vld [vmem:[%s1 + $0x24] sm:$0xf]
  %v39 = vld [vmem:[%s1 + $0x28] sm:$0xf]
  %v40 = vld [vmem:[%s1 + $0x2c] sm:$0xf]
  %v41 = vld [vmem:[%s1 + $0x30] sm:$0xf]
  %v42 = vld [vmem:[%s1 + $0x34] sm:$0xf]
  %v43 = vld [vmem:[%s1 + $0x38] sm:$0xf]
  %v44 = vld [vmem:[%s1 + $0x3c] sm:$0xf]
  %v45 = vld [vmem:[%s1 + $0x40] sm:$0xf]
  %v46 = vld [vmem:[%s1 + $0x44] sm:$0xf]
  %v47 = vld [vmem:[%s1 + $0x48] sm:$0xf]
  %v48 = vld [vmem:[%s1 + $0x4c] sm:$0xf]
  %v49 = vld [vmem:[%s1 + $0x50] sm:$0xf]
  %v50 = vld [vmem:[%s1 + $0x54] sm:$0xf]
  %v51 = vld [vmem:[%s1 + $0x58] sm:$0xf]
  %v52 = vld [vmem:[%s1 + $0x5c] sm:$0xf]
  %v53 = vld [vmem:[%s1 + $0x60] sm:$0xf]
  %v54 = vld [vmem:[%s1 + $0x64] sm:$0xf]
  %v55 = vld [vmem:[%s1 + $0x68] sm:$0xf]
  %v56 = vld [vmem:[%s1 + $0x6c] sm:$0xf]
  %v57 = vld [vmem:[%s1 + $0x70] sm:$0xf]
  %v58 = vld [vmem:[%s1 + $0x74] sm:$0xf]
  %v59 = vld [vmem:[%s1 + $0x78] sm:$0xf]
  %v60 = vld [vmem:[%s1 + $0x7c] sm:$0xf]
  %v65 = vunpack.c.l.b16 %v25
  %v66 = vunpack.c.h.b16 %v25
  %v67 = vunpack.c.l.b16 %v26
  %v68 = vunpack.c.h.b16 %v26
  %v69 = vunpack.c.l.b16 %v27
  %v70 = vunpack.c.h.b16 %v27
  %v71 = vunpack.c.l.b16 %v28
  %v72 = vunpack.c.h.b16 %v28
  %v73 = vpack.c.b16 %v67, %v65
  %v74 = vpack.c.b16 %v68, %v66
  %v75 = vpack.c.b16 %v71, %v69
  %v76 = vpack.c.b16 %v72, %v70
  %v113 = vunpack.c.l.b16 %v29
  %v114 = vunpack.c.l.b16 %v30
  %v115 = vunpack.c.l.b16 %v31
  %v116 = vunpack.c.l.b16 %v32
  %v117 = vunpack.c.l.b16 %v33
  %v118 = vunpack.c.l.b16 %v34
  %v119 = vunpack.c.l.b16 %v35
  %v120 = vunpack.c.l.b16 %v36
  %v121 = vunpack.c.l.b16 %v37
  %v122 = vunpack.c.l.b16 %v38
  %v123 = vunpack.c.l.b16 %v39
  %v124 = vunpack.c.l.b16 %v40
  %v125 = vunpack.c.l.b16 %v41
  %v126 = vunpack.c.l.b16 %v42
  %v127 = vunpack.c.l.b16 %v43
  %v128 = vunpack.c.l.b16 %v44
  %v129 = vunpack.c.l.b16 %v45
  %v130 = vunpack.c.l.b16 %v46
  %v131 = vunpack.c.l.b16 %v47
  %v132 = vunpack.c.l.b16 %v48
  %v133 = vunpack.c.l.b16 %v49
  %v134 = vunpack.c.l.b16 %v50
  %v135 = vunpack.c.l.b16 %v51
  %v136 = vunpack.c.l.b16 %v52
  %v137 = vunpack.c.l.b16 %v53
  %v138 = vunpack.c.l.b16 %v54
  %v139 = vunpack.c.l.b16 %v55
  %v140 = vunpack.c.l.b16 %v56
  %v141 = vunpack.c.l.b16 %v57
  %v142 = vunpack.c.l.b16 %v58
  %v143 = vunpack.c.l.b16 %v59
  %v144 = vunpack.c.l.b16 %v60
  %v145 = vpack.c.b16 %v114, %v113
  %v146 = vpack.c.b16 %v116, %v115
  %v147 = vpack.c.b16 %v118, %v117
  %v148 = vpack.c.b16 %v120, %v119
  %v149 = vpack.c.b16 %v122, %v121
  %v150 = vpack.c.b16 %v124, %v123
  %v151 = vpack.c.b16 %v126, %v125
  %v152 = vpack.c.b16 %v128, %v127
  %v153 = vpack.c.b16 %v130, %v129
  %v154 = vpack.c.b16 %v132, %v131
  %v155 = vpack.c.b16 %v134, %v133
  %v156 = vpack.c.b16 %v136, %v135
  %v157 = vpack.c.b16 %v138, %v137
  %v158 = vpack.c.b16 %v140, %v139
  %v159 = vpack.c.b16 %v142, %v141
  %v160 = vpack.c.b16 %v144, %v143
  %177 = vmatpush.bf16.msra.mxu0 %v152
  %178 = vmatpush.bf16.msra.mxu0 %v151
  %179 = vmatpush.bf16.msra.mxu0 %v150
  %180 = vmatpush.bf16.msra.mxu0 %v149
  %181 = vmatpush.bf16.msra.mxu0 %v148
  %182 = vmatpush.bf16.msra.mxu0 %v147
  %183 = vmatpush.bf16.msra.mxu0 %v146
  %184 = vmatpush.bf16.msra.mxu0 %v145
  %185 = vmatmul.bf16.gmra.mxu0 %v73
  %v186 = vpop.f32.mrf.mxu0
  %v187 = vadd.f32 0.0, %v186
  %v188 = vpop.f32.mrf.mxu0
  %v189 = vadd.f32 0.0, %v188
  %190 = vmatmul.bf16.gmra.mxu0 %v75
  %v191 = vpop.f32.mrf.mxu0
  %v192 = vadd.f32 0.0, %v191
  %v193 = vpop.f32.mrf.mxu0
  %v194 = vadd.f32 0.0, %v193
  %195 = vdwg.mxu0
  %196 = vmatpush.bf16.msra.mxu0 %v160
  %197 = vmatpush.bf16.msra.mxu0 %v159
  %198 = vmatpush.bf16.msra.mxu0 %v158
  %199 = vmatpush.bf16.msra.mxu0 %v157
  %200 = vmatpush.bf16.msra.mxu0 %v156
  %201 = vmatpush.bf16.msra.mxu0 %v155
  %202 = vmatpush.bf16.msra.mxu0 %v154
  %203 = vmatpush.bf16.msra.mxu0 %v153
  %204 = vmatmul.bf16.gmra.mxu0 %v74
  %v205 = vpop.f32.mrf.mxu0
  %v206 = vadd.f32 %v187, %v205
  %v207 = vpop.f32.mrf.mxu0
  %v208 = vadd.f32 %v189, %v207
  %209 = vmatmul.bf16.gmra.mxu0 %v76
  %v210 = vpop.f32.mrf.mxu0
  %v211 = vadd.f32 %v192, %v210
  %v212 = vpop.f32.mrf.mxu0
  %v213 = vadd.f32 %v194, %v212
  %214 = vdwg.mxu0
  %v215 = vadd.f32 %v21, %v206
  %v216 = vadd.f32 %v22, %v208
  %v217 = vadd.f32 %v23, %v211
  %v218 = vadd.f32 %v24, %v213
  %219 = vst [vmem:[#allocation2] sm:$0xff] %v215
  %220 = vst [vmem:[#allocation2 + $0x8] sm:$0xff] %v216
  %221 = vst [vmem:[#allocation2 + $0x10] sm:$0xff] %v217
  %222 = vst [vmem:[#allocation2 + $0x18] sm:$0xff] %v218
  // Predicated region
  $region14: #{resnet_generator_forward.35} parent=0 // pred_check
    %p223 = pneg %p13
  $region15: #{resnet_generator_forward.35} parent=0 // pred_check_branch
    %225 = sbr.rel (%p223) target = $region17
  $region16: #{resnet_generator_forward.35} parent=0 // pred_region
    %v226 = vld [vmem:[#allocation2] sm:$0xff]
    %v227 = vld [vmem:[#allocation2 + $0x8] sm:$0xff]
    %v228 = vld [vmem:[#allocation2 + $0x10] sm:$0xff]
    %v229 = vld [vmem:[#allocation2 + $0x18] sm:$0xff]
    %v230 = vpack.c.bf16 %v226, %v226
    %v231 = vpack.c.bf16 %v227, %v227
    %v232 = vpack.c.bf16 %v228, %v228
    %v233 = vpack.c.bf16 %v229, %v229
    %234 = vst [vmem:[%s2] sm:$0xf] %v230
    %235 = vst [vmem:[%s2 + $0x4] sm:$0xf] %v231
    %236 = vst [vmem:[%s2 + $0x8] sm:$0xf] %v232
    %237 = vst [vmem:[%s2 + $0xc] sm:$0xf] %v233
    %v238 = vadd.f32 %v226, %v227
    %v239 = vadd.f32 %v238, %v228
    %v240 = vadd.f32 %v239, %v229
    %v241 = vrot.slane %v240, 4
    %v242 = vadd.f32 %v240, %v241
    %v243 = vrot.slane %v242, 2
    %v244 = vadd.f32 %v242, %v243
    %v245 = vrot.slane %v244, 1
    %v246 = vadd.f32 %v244, %v245
    %v247 = vmul.f32 %v226, %v226
    %v248 = vmul.f32 %v227, %v227
    %v249 = vmul.f32 %v228, %v228
    %v250 = vmul.f32 %v229, %v229
    %v251 = vadd.f32 %v247, %v248
    %v252 = vadd.f32 %v251, %v249
    %v253 = vadd.f32 %v252, %v250
    %v254 = vrot.slane %v253, 4
    %v255 = vadd.f32 %v253, %v254
    %v256 = vrot.slane %v255, 2
    %v257 = vadd.f32 %v255, %v256
    %v258 = vrot.slane %v257, 1
    %v259 = vadd.f32 %v257, %v258
    %v260 = vlaneseq
    %v261 = vshrl.u32 %v260, 7
    %vm262 = vcmp.eq.s32.totalorder %v261, 0
    %vm263 = vcmp.eq.s32.totalorder %v261, 1
    %v264 = vsel %vm263, %v259, 0.0
    %v265 = vsel %vm262, %v246, %v264
    %266 = vst [vmem:[%s3] sm:$0xff] %v265
  $region17: #{resnet_generator_forward.35} parent=0 // pred_fallthru
    _
  // Predicated region
  $region18: #{resnet_generator_forward.35} parent=0 // pred_check
    _
  $region19: #{resnet_generator_forward.35} parent=0 // pred_check_branch
    %268 = sbr.rel (0) target = $region21
  $region20: #{resnet_generator_forward.35} parent=0 // pred_region
    _
  $region21: #{resnet_generator_forward.35} parent=0 // pred_fallthru
    _
  // Predicated region
  $region22: #{resnet_generator_forward.35} parent=0 // pred_check
    _
  $region23: #{resnet_generator_forward.35} parent=0 // pred_check_branch
    %270 = sbr.rel (0) target = $region25
  $region24: #{resnet_generator_forward.35} parent=0 // pred_region
    _
  $region25: #{resnet_generator_forward.35} parent=0 // pred_fallthru
    _
  // Predicated region
  $region26: #{resnet_generator_forward.35} parent=0 // pred_check
    _
  $region27: #{resnet_generator_forward.35} parent=0 // pred_check_branch
    %272 = sbr.rel (0) target = $region29
  $region28: #{resnet_generator_forward.35} parent=0 // pred_region
    _
  $region29: #{resnet_generator_forward.35} parent=0 // pred_fallthru
    _
  // Predicated region
  $region30: #{resnet_generator_forward.35} parent=0 // pred_check
    _
  $region31: #{resnet_generator_forward.35} parent=0 // pred_check_branch
    %274 = sbr.rel (0) target = $region33
  $region32: #{resnet_generator_forward.35} parent=0 // pred_region
    _
  $region33: #{resnet_generator_forward.35} parent=0 // pred_fallthru
    _

// kernel: resnet_generator_forward.40
$region0: #{resnet_generator_forward.40}
  #allocation0 [shape = 'u32[]', space=smem, size = 0x4, offset = 0x4, fixed_abs, tag = 'smem constant byte address 0x4 - core index']
  #allocation1 [shape = 'u32[72,128]{1,0:T(1,128)}', space=vmem, size = 0x9000, scoped, tag = 'internal scratch']
  %s0 = inlined_call_operand.vmem [shape: bf16[32,128], index: 0, kind: input, shape index: {}]
  %s1 = inlined_call_operand.vmem [shape: bf16[32,128], index: 1, kind: input, shape index: {}]
  %s2 = inlined_call_operand.vmem [shape: f32[1,128], index: 2, kind: input, shape index: {}]
  %s3 = inlined_call_operand.vmem [shape: f32[1,128], index: 3, kind: input, shape index: {}]
  %s4 = inlined_call_operand.vmem [shape: bf16[32,128], index: 4, kind: output, shape index: {}]
  %s5 = sld [smem:[#allocation0]]
  $region26: #{resnet_generator_forward.40} parent=0
    _
  %s7 = ssub.s32 1, %s5
  %s8 = scalar_select 0, %s7, %s5
  // Predicated region
  $region2: #{resnet_generator_forward.40} parent=0 // pred_check
    _
  $region3: #{resnet_generator_forward.40} parent=0 // pred_check_branch
    %10 = sbr.rel (0) target = $region5
  $region4: #{resnet_generator_forward.40} parent=0 // pred_region
    _
  $region5: #{resnet_generator_forward.40} parent=0 // pred_fallthru
    _
  // Predicated region
  $region6: #{resnet_generator_forward.40} parent=0 // pred_check
    _
  $region7: #{resnet_generator_forward.40} parent=0 // pred_check_branch
    %12 = sbr.rel (0) target = $region9
  $region8: #{resnet_generator_forward.40} parent=0 // pred_region
    _
  $region9: #{resnet_generator_forward.40} parent=0 // pred_fallthru
    _
  // Predicated region
  $region10: #{resnet_generator_forward.40} parent=0 // pred_check
    _
  $region11: #{resnet_generator_forward.40} parent=0 // pred_check_branch
    %14 = sbr.rel (0) target = $region13
  $region12: #{resnet_generator_forward.40} parent=0 // pred_region
    _
  $region13: #{resnet_generator_forward.40} parent=0 // pred_fallthru
    _
  // Predicated region
  $region14: #{resnet_generator_forward.40} parent=0 // pred_check
    _
  $region15: #{resnet_generator_forward.40} parent=0 // pred_check_branch
    %16 = sbr.rel (0) target = $region17
  $region16: #{resnet_generator_forward.40} parent=0 // pred_region
    _
  $region17: #{resnet_generator_forward.40} parent=0 // pred_fallthru
    _
  %v17 = vld [vmem:[%s0] sm:$0xf]
  %v18 = vld [vmem:[%s0 + $0x4] sm:$0xf]
  %v19 = vld [vmem:[%s0 + $0x8] sm:$0xf]
  %v20 = vld [vmem:[%s0 + $0xc] sm:$0xf]
  %v21 = vunpack.c.l.bf16 %v17
  %v22 = vunpack.c.l.bf16 %v18
  %v23 = vunpack.c.l.bf16 %v19
  %v24 = vunpack.c.l.bf16 %v20
  %v25 = vld [vmem:[%s2] sm:$0x1]
  %v27 = vperm.slane %v25, 0
  %v29 = vmul.f32 %v21, %v27
  %v30 = vmul.f32 %v22, %v27
  %v31 = vmul.f32 %v23, %v27
  %v32 = vmul.f32 %v24, %v27
  %v33 = vld [vmem:[%s3] sm:$0x1]
  %v35 = vperm.slane %v33, 0
  %v37 = vadd.f32 %v29, %v35
  %v38 = vadd.f32 %v30, %v35
  %v39 = vadd.f32 %v31, %v35
  %v40 = vadd.f32 %v32, %v35
  %v41 = vld [vmem:[%s1] sm:$0xf]
  %v42 = vld [vmem:[%s1 + $0x4] sm:$0xf]
  %v43 = vld [vmem:[%s1 + $0x8] sm:$0xf]
  %v44 = vld [vmem:[%s1 + $0xc] sm:$0xf]
  %v45 = vunpack.c.l.bf16 %v41
  %v46 = vunpack.c.l.bf16 %v42
  %v47 = vunpack.c.l.bf16 %v43
  %v48 = vunpack.c.l.bf16 %v44
  %v49 = vadd.f32 %v45, %v37
  %v50 = vadd.f32 %v46, %v38
  %v51 = vadd.f32 %v47, %v39
  %v52 = vadd.f32 %v48, %v40
  %v53 = vpack.c.bf16 %v49, %v49
  %v54 = vpack.c.bf16 %v50, %v50
  %v55 = vpack.c.bf16 %v51, %v51
  %v56 = vpack.c.bf16 %v52, %v52
  %57 = vst [vmem:[%s4] sm:$0xf] %v53
  %58 = vst [vmem:[%s4 + $0x4] sm:$0xf] %v54
  %59 = vst [vmem:[%s4 + $0x8] sm:$0xf] %v55
  %60 = vst [vmem:[%s4 + $0xc] sm:$0xf] %v56
  // Predicated region
  $region18: #{resnet_generator_forward.40} parent=0 // pred_check
    _
  $region19: #{resnet_generator_forward.40} parent=0 // pred_check_branch
    %62 = sbr.rel (0) target = $region21
  $region20: #{resnet_generator_forward.40} parent=0 // pred_region
    _
  $region21: #{resnet_generator_forward.40} parent=0 // pred_fallthru
    _
  // Predicated region
  $region22: #{resnet_generator_forward.40} parent=0 // pred_check
    _
  $region23: #{resnet_generator_forward.40} parent=0 // pred_check_branch
    %64 = sbr.rel (0) target = $region25
  $region24: #{resnet_generator_forward.40} parent=0 // pred_region
    _
  $region25: #{resnet_generator_forward.40} parent=0 // pred_fallthru
    _

// kernel: resnet_generator_forward.37
$region0: #{resnet_generator_forward.37}
  #allocation0 [shape = 'u32[]', space=smem, size = 0x4, offset = 0x4, fixed_abs, tag = 'smem constant byte address 0x4 - core index']
  #allocation1 [shape = 'u32[72,128]{1,0:T(1,128)}', space=vmem, size = 0x9000, scoped, tag = 'internal scratch']
  #allocation2 [shape = 'f32[32,128]{1,0:T(8,128)}', space=vmem, size = 0x4000, scoped, tag = 'scratch operand']
  %s0 = inlined_call_operand.vmem [shape: bf16[32,384], index: 0, kind: input, shape index: {}]
  %s1 = inlined_call_operand.vmem [shape: bf16[384,128], index: 1, kind: input, shape index: {}]
  %s2 = inlined_call_operand.vmem [shape: bf16[32,128], index: 2, kind: output, shape index: {0}]
  %s3 = inlined_call_operand.vmem [shape: f32[8,128], index: 3, kind: output, shape index: {1}]
  %4 = xla_tuple %s2, %s3
  %s5 = sld [smem:[#allocation0]]
  $region34: #{resnet_generator_forward.37} parent=0
    _
  %s7 = ssub.s32 1, %s5
  %s8 = scalar_select 0, %s7, %s5
  // Predicated region
  $region2: #{resnet_generator_forward.37} parent=0 // pred_check
    _
  $region3: #{resnet_generator_forward.37} parent=0 // pred_check_branch
    %10 = sbr.rel (0) target = $region5
  $region4: #{resnet_generator_forward.37} parent=0 // pred_region
    _
  $region5: #{resnet_generator_forward.37} parent=0 // pred_fallthru
    _
  // Predicated region
  $region6: #{resnet_generator_forward.37} parent=0 // pred_check
    _
  $region7: #{resnet_generator_forward.37} parent=0 // pred_check_branch
    %12 = sbr.rel (0) target = $region9
  $region8: #{resnet_generator_forward.37} parent=0 // pred_region
    _
  $region9: #{resnet_generator_forward.37} parent=0 // pred_fallthru
    _
  %p13 = scmp.eq.s32.totalorder 0, 0
  // Predicated region
  $region10: #{resnet_generator_forward.37} parent=0 // pred_check
    %p14 = pneg %p13
  $region11: #{resnet_generator_forward.37} parent=0 // pred_check_branch
    %16 = sbr.rel (%p14) target = $region13
  $region12: #{resnet_generator_forward.37} parent=0 // pred_region
    %17 = vst [vmem:[#allocation2] sm:$0xff] 0.0
    %18 = vst [vmem:[#allocation2 + $0x8] sm:$0xff] 0.0
    %19 = vst [vmem:[#allocation2 + $0x10] sm:$0xff] 0.0
    %20 = vst [vmem:[#allocation2 + $0x18] sm:$0xff] 0.0
  $region13: #{resnet_generator_forward.37} parent=0 // pred_fallthru
    _
  %v21 = vld [vmem:[#allocation2] sm:$0xff]
  %v22 = vld [vmem:[#allocation2 + $0x8] sm:$0xff]
  %v23 = vld [vmem:[#allocation2 + $0x10] sm:$0xff]
  %v24 = vld [vmem:[#allocation2 + $0x18] sm:$0xff]
  %v25 = vld [vmem:[%s0] sm:$0xff]
  %v26 = vld [vmem:[%s0 + $0x8] sm:$0xf]
  %v27 = vld [vmem:[%s0 + $0xc] sm:$0xff]
  %v28 = vld [vmem:[%s0 + $0x14] sm:$0xf]
  %v29 = vld [vmem:[%s0 + $0x18] sm:$0xff]
  %v30 = vld [vmem:[%s0 + $0x20] sm:$0xf]
  %v31 = vld [vmem:[%s0 + $0x24] sm:$0xff]
  %v32 = vld [vmem:[%s0 + $0x2c] sm:$0xf]
  %v33 = vld [vmem:[%s1] sm:$0xf]
  %v34 = vld [vmem:[%s1 + $0x4] sm:$0xf]
  %v35 = vld [vmem:[%s1 + $0x8] sm:$0xf]
  %v36 = vld [vmem:[%s1 + $0xc] sm:$0xf]
  %v37 = vld [vmem:[%s1 + $0x10] sm:$0xf]
  %v38 = vld [vmem:[%s1 + $0x14] sm:$0xf]
  %v39 = vld [vmem:[%s1 + $0x18] sm:$0xf]
  %v40 = vld [vmem:[%s1 + $0x1c] sm:$0xf]
  %v41 = vld [vmem:[%s1 + $0x20] sm:$0xf]
  %v42 = vld [vmem:[%s1 + $0x24] sm:$0xf]
  %v43 = vld [vmem:[%s1 + $0x28] sm:$0xf]
  %v44 = vld [vmem:[%s1 + $0x2c] sm:$0xf]
  %v45 = vld [vmem:[%s1 + $0x30] sm:$0xf]
  %v46 = vld [vmem:[%s1 + $0x34] sm:$0xf]
  %v47 = vld [vmem:[%s1 + $0x38] sm:$0xf]
  %v48 = vld [vmem:[%s1 + $0x3c] sm:$0xf]
  %v49 = vld [vmem:[%s1 + $0x40] sm:$0xf]
  %v50 = vld [vmem:[%s1 + $0x44] sm:$0xf]
  %v51 = vld [vmem:[%s1 + $0x48] sm:$0xf]
  %v52 = vld [vmem:[%s1 + $0x4c] sm:$0xf]
  %v53 = vld [vmem:[%s1 + $0x50] sm:$0xf]
  %v54 = vld [vmem:[%s1 + $0x54] sm:$0xf]
  %v55 = vld [vmem:[%s1 + $0x58] sm:$0xf]
  %v56 = vld [vmem:[%s1 + $0x5c] sm:$0xf]
  %v57 = vld [vmem:[%s1 + $0x60] sm:$0xf]
  %v58 = vld [vmem:[%s1 + $0x64] sm:$0xf]
  %v59 = vld [vmem:[%s1 + $0x68] sm:$0xf]
  %v60 = vld [vmem:[%s1 + $0x6c] sm:$0xf]
  %v61 = vld [vmem:[%s1 + $0x70] sm:$0xf]
  %v62 = vld [vmem:[%s1 + $0x74] sm:$0xf]
  %v63 = vld [vmem:[%s1 + $0x78] sm:$0xf]
  %v64 = vld [vmem:[%s1 + $0x7c] sm:$0xf]
  %v65 = vld [vmem:[%s1 + $0x80] sm:$0xf]
  %v66 = vld [vmem:[%s1 + $0x84] sm:$0xf]
  %v67 = vld [vmem:[%s1 + $0x88] sm:$0xf]
  %v68 = vld [vmem:[%s1 + $0x8c] sm:$0xf]
  %v69 = vld [vmem:[%s1 + $0x90] sm:$0xf]
  %v70 = vld [vmem:[%s1 + $0x94] sm:$0xf]
  %v71 = vld [vmem:[%s1 + $0x98] sm:$0xf]
  %v72 = vld [vmem:[%s1 + $0x9c] sm:$0xf]
  %v73 = vld [vmem:[%s1 + $0xa0] sm:$0xf]
  %v74 = vld [vmem:[%s1 + $0xa4] sm:$0xf]
  %v75 = vld [vmem:[%s1 + $0xa8] sm:$0xf]
  %v76 = vld [vmem:[%s1 + $0xac] sm:$0xf]
  %v77 = vld [vmem:[%s1 + $0xb0] sm:$0xf]
  %v78 = vld [vmem:[%s1 + $0xb4] sm:$0xf]
  %v79 = vld [vmem:[%s1 + $0xb8] sm:$0xf]
  %v80 = vld [vmem:[%s1 + $0xbc] sm:$0xf]
  %v89 = vunpack.c.l.b16 %v25
  %v90 = vunpack.c.h.b16 %v25
  %v91 = vunpack.c.l.b16 %v26
  %v92 = vunpack.c.l.b16 %v27
  %v93 = vunpack.c.h.b16 %v27
  %v94 = vunpack.c.l.b16 %v28
  %v95 = vunpack.c.l.b16 %v29
  %v96 = vunpack.c.h.b16 %v29
  %v97 = vunpack.c.l.b16 %v30
  %v98 = vunpack.c.l.b16 %v31
  %v99 = vunpack.c.h.b16 %v31
  %v100 = vunpack.c.l.b16 %v32
  %v101 = vpack.c.b16 %v92, %v89
  %v102 = vpack.c.b16 %v93, %v90
  %v103 = vpack.c.b16 %v94, %v91
  %v104 = vpack.c.b16 %v98, %v95
  %v105 = vpack.c.b16 %v99, %v96
  %v106 = vpack.c.b16 %v100, %v97
  %v161 = vunpack.c.l.b16 %v33
  %v162 = vunpack.c.l.b16 %v34
  %v163 = vunpack.c.l.b16 %v35
  %v164 = vunpack.c.l.b16 %v36
  %v165 = vunpack.c.l.b16 %v37
  %v166 = vunpack.c.l.b16 %v38
  %v167 = vunpack.c.l.b16 %v39
  %v168 = vunpack.c.l.b16 %v40
  %v169 = vunpack.c.l.b16 %v41
  %v170 = vunpack.c.l.b16 %v42
  %v171 = vunpack.c.l.b16 %v43
  %v172 = vunpack.c.l.b16 %v44
  %v173 = vunpack.c.l.b16 %v45
  %v174 = vunpack.c.l.b16 %v46
  %v175 = vunpack.c.l.b16 %v47
  %v176 = vunpack.c.l.b16 %v48
  %v177 = vunpack.c.l.b16 %v49
  %v178 = vunpack.c.l.b16 %v50
  %v179 = vunpack.c.l.b16 %v51
  %v180 = vunpack.c.l.b16 %v52
  %v181 = vunpack.c.l.b16 %v53
  %v182 = vunpack.c.l.b16 %v54
  %v183 = vunpack.c.l.b16 %v55
  %v184 = vunpack.c.l.b16 %v56
  %v185 = vunpack.c.l.b16 %v57
  %v186 = vunpack.c.l.b16 %v58
  %v187 = vunpack.c.l.b16 %v59
  %v188 = vunpack.c.l.b16 %v60
  %v189 = vunpack.c.l.b16 %v61
  %v190 = vunpack.c.l.b16 %v62
  %v191 = vunpack.c.l.b16 %v63
  %v192 = vunpack.c.l.b16 %v64
  %v193 = vunpack.c.l.b16 %v65
  %v194 = vunpack.c.l.b16 %v66
  %v195 = vunpack.c.l.b16 %v67
  %v196 = vunpack.c.l.b16 %v68
  %v197 = vunpack.c.l.b16 %v69
  %v198 = vunpack.c.l.b16 %v70
  %v199 = vunpack.c.l.b16 %v71
  %v200 = vunpack.c.l.b16 %v72
  %v201 = vunpack.c.l.b16 %v73
  %v202 = vunpack.c.l.b16 %v74
  %v203 = vunpack.c.l.b16 %v75
  %v204 = vunpack.c.l.b16 %v76
  %v205 = vunpack.c.l.b16 %v77
  %v206 = vunpack.c.l.b16 %v78
  %v207 = vunpack.c.l.b16 %v79
  %v208 = vunpack.c.l.b16 %v80
  %v209 = vpack.c.b16 %v162, %v161
  %v210 = vpack.c.b16 %v164, %v163
  %v211 = vpack.c.b16 %v166, %v165
  %v212 = vpack.c.b16 %v168, %v167
  %v213 = vpack.c.b16 %v170, %v169
  %v214 = vpack.c.b16 %v172, %v171
  %v215 = vpack.c.b16 %v174, %v173
  %v216 = vpack.c.b16 %v176, %v175
  %v217 = vpack.c.b16 %v178, %v177
  %v218 = vpack.c.b16 %v180, %v179
  %v219 = vpack.c.b16 %v182, %v181
  %v220 = vpack.c.b16 %v184, %v183
  %v221 = vpack.c.b16 %v186, %v185
  %v222 = vpack.c.b16 %v188, %v187
  %v223 = vpack.c.b16 %v190, %v189
  %v224 = vpack.c.b16 %v192, %v191
  %v225 = vpack.c.b16 %v194, %v193
  %v226 = vpack.c.b16 %v196, %v195
  %v227 = vpack.c.b16 %v198, %v197
  %v228 = vpack.c.b16 %v200, %v199
  %v229 = vpack.c.b16 %v202, %v201
  %v230 = vpack.c.b16 %v204, %v203
  %v231 = vpack.c.b16 %v206, %v205
  %v232 = vpack.c.b16 %v208, %v207
  %257 = vmatpush.bf16.msra.mxu0 %v216
  %258 = vmatpush.bf16.msra.mxu0 %v215
  %259 = vmatpush.bf16.msra.mxu0 %v214
  %260 = vmatpush.bf16.msra.mxu0 %v213
  %261 = vmatpush.bf16.msra.mxu0 %v212
  %262 = vmatpush.bf16.msra.mxu0 %v211
  %263 = vmatpush.bf16.msra.mxu0 %v210
  %264 = vmatpush.bf16.msra.mxu0 %v209
  %265 = vmatmul.bf16.gmra.mxu0 %v101
  %v266 = vpop.f32.mrf.mxu0
  %v267 = vadd.f32 0.0, %v266
  %v268 = vpop.f32.mrf.mxu0
  %v269 = vadd.f32 0.0, %v268
  %270 = vmatmul.bf16.gmra.mxu0 %v104
  %v271 = vpop.f32.mrf.mxu0
  %v272 = vadd.f32 0.0, %v271
  %v273 = vpop.f32.mrf.mxu0
  %v274 = vadd.f32 0.0, %v273
  %275 = vdwg.mxu0
  %276 = vmatpush.bf16.msra.mxu0 %v224
  %277 = vmatpush.bf16.msra.mxu0 %v223
  %278 = vmatpush.bf16.msra.mxu0 %v222
  %279 = vmatpush.bf16.msra.mxu0 %v221
  %280 = vmatpush.bf16.msra.mxu0 %v220
  %281 = vmatpush.bf16.msra.mxu0 %v219
  %282 = vmatpush.bf16.msra.mxu0 %v218
  %283 = vmatpush.bf16.msra.mxu0 %v217
  %284 = vmatmul.bf16.gmra.mxu0 %v102
  %v285 = vpop.f32.mrf.mxu0
  %v286 = vadd.f32 %v267, %v285
  %v287 = vpop.f32.mrf.mxu0
  %v288 = vadd.f32 %v269, %v287
  %289 = vmatmul.bf16.gmra.mxu0 %v105
  %v290 = vpop.f32.mrf.mxu0
  %v291 = vadd.f32 %v272, %v290
  %v292 = vpop.f32.mrf.mxu0
  %v293 = vadd.f32 %v274, %v292
  %294 = vdwg.mxu0
  %295 = vmatpush.bf16.msra.mxu0 %v232
  %296 = vmatpush.bf16.msra.mxu0 %v231
  %297 = vmatpush.bf16.msra.mxu0 %v230
  %298 = vmatpush.bf16.msra.mxu0 %v229
  %299 = vmatpush.bf16.msra.mxu0 %v228
  %300 = vmatpush.bf16.msra.mxu0 %v227
  %301 = vmatpush.bf16.msra.mxu0 %v226
  %302 = vmatpush.bf16.msra.mxu0 %v225
  %303 = vmatmul.bf16.gmra.mxu0 %v103
  %v304 = vpop.f32.mrf.mxu0
  %v305 = vadd.f32 %v286, %v304
  %v306 = vpop.f32.mrf.mxu0
  %v307 = vadd.f32 %v288, %v306
  %308 = vmatmul.bf16.gmra.mxu0 %v106
  %v309 = vpop.f32.mrf.mxu0
  %v310 = vadd.f32 %v291, %v309
  %v311 = vpop.f32.mrf.mxu0
  %v312 = vadd.f32 %v293, %v311
  %313 = vdwg.mxu0
  %v314 = vadd.f32 %v21, %v305
  %v315 = vadd.f32 %v22, %v307
  %v316 = vadd.f32 %v23, %v310
  %v317 = vadd.f32 %v24, %v312
  %318 = vst [vmem:[#allocation2] sm:$0xff] %v314
  %319 = vst [vmem:[#allocation2 + $0x8] sm:$0xff] %v315
  %320 = vst [vmem:[#allocation2 + $0x10] sm:$0xff] %v316
  %321 = vst [vmem:[#allocation2 + $0x18] sm:$0xff] %v317
  // Predicated region
  $region14: #{resnet_generator_forward.37} parent=0 // pred_check
    %p322 = pneg %p13
  $region15: #{resnet_generator_forward.37} parent=0 // pred_check_branch
    %324 = sbr.rel (%p322) target = $region17
  $region16: #{resnet_generator_forward.37} parent=0 // pred_region
    %v325 = vld [vmem:[#allocation2] sm:$0xff]
    %v326 = vld [vmem:[#allocation2 + $0x8] sm:$0xff]
    %v327 = vld [vmem:[#allocation2 + $0x10] sm:$0xff]
    %v328 = vld [vmem:[#allocation2 + $0x18] sm:$0xff]
    %v329 = vpack.c.bf16 %v325, %v325
    %v330 = vpack.c.bf16 %v326, %v326
    %v331 = vpack.c.bf16 %v327, %v327
    %v332 = vpack.c.bf16 %v328, %v328
    %333 = vst [vmem:[%s2] sm:$0xf] %v329
    %334 = vst [vmem:[%s2 + $0x4] sm:$0xf] %v330
    %335 = vst [vmem:[%s2 + $0x8] sm:$0xf] %v331
    %336 = vst [vmem:[%s2 + $0xc] sm:$0xf] %v332
    %v337 = vadd.f32 %v325, %v326
    %v338 = vadd.f32 %v337, %v327
    %v339 = vadd.f32 %v338, %v328
    %v340 = vrot.slane %v339, 4
    %v341 = vadd.f32 %v339, %v340
    %v342 = vrot.slane %v341, 2
    %v343 = vadd.f32 %v341, %v342
    %v344 = vrot.slane %v343, 1
    %v345 = vadd.f32 %v343, %v344
    %v346 = vmul.f32 %v325, %v325
    %v347 = vmul.f32 %v326, %v326
    %v348 = vmul.f32 %v327, %v327
    %v349 = vmul.f32 %v328, %v328
    %v350 = vadd.f32 %v346, %v347
    %v351 = vadd.f32 %v350, %v348
    %v352 = vadd.f32 %v351, %v349
    %v353 = vrot.slane %v352, 4
    %v354 = vadd.f32 %v352, %v353
    %v355 = vrot.slane %v354, 2
    %v356 = vadd.f32 %v354, %v355
    %v357 = vrot.slane %v356, 1
    %v358 = vadd.f32 %v356, %v357
    %v359 = vlaneseq
    %v360 = vshrl.u32 %v359, 7
    %vm361 = vcmp.eq.s32.totalorder %v360, 0
    %vm362 = vcmp.eq.s32.totalorder %v360, 1
    %v363 = vsel %vm362, %v358, 0.0
    %v364 = vsel %vm361, %v345, %v363
    %365 = vst [vmem:[%s3] sm:$0xff] %v364
  $region17: #{resnet_generator_forward.37} parent=0 // pred_fallthru
    _
  // Predicated region
  $region18: #{resnet_generator_forward.37} parent=0 // pred_check
    _
  $region19: #{resnet_generator_forward.37} parent=0 // pred_check_branch
    %367 = sbr.rel (0) target = $region21
  $region20: #{resnet_generator_forward.37} parent=0 // pred_region
    _
  $region21: #{resnet_generator_forward.37} parent=0 // pred_fallthru
    _
  // Predicated region
  $region22: #{resnet_generator_forward.37} parent=0 // pred_check
    _
  $region23: #{resnet_generator_forward.37} parent=0 // pred_check_branch
    %369 = sbr.rel (0) target = $region25
  $region24: #{resnet_generator_forward.37} parent=0 // pred_region
    _
  $region25: #{resnet_generator_forward.37} parent=0 // pred_fallthru
    _
  // Predicated region
  $region26: #{resnet_generator_forward.37} parent=0 // pred_check
    _
  $region27: #{resnet_generator_forward.37} parent=0 // pred_check_branch
    %371 = sbr.rel (0) target = $region29
  $region28: #{resnet_generator_forward.37} parent=0 // pred_region
    _
  $region29: #{resnet_generator_forward.37} parent=0 // pred_fallthru
    _
  // Predicated region
  $region30: #{resnet_generator_forward.37} parent=0 // pred_check
    _
  $region31: #{resnet_generator_forward.37} parent=0 // pred_check_branch
    %373 = sbr.rel (0) target = $region33
  $region32: #{resnet_generator_forward.37} parent=0 // pred_region
    _
  $region33: #{resnet_generator_forward.37} parent=0 // pred_fallthru
    _

// kernel: resnet_generator_forward.46
$region0: #{resnet_generator_forward.46}
  #allocation0 [shape = 'u32[]', space=smem, size = 0x4, offset = 0x4, fixed_abs, tag = 'smem constant byte address 0x4 - core index']
  #allocation1 [shape = 'u32[72,128]{1,0:T(1,128)}', space=vmem, size = 0x9000, scoped, tag = 'internal scratch']
  #allocation2 [shape = 'f32[32,128]{1,0:T(8,128)}', space=vmem, size = 0x4000, scoped, tag = 'scratch operand']
  %s0 = inlined_call_operand.vmem [shape: bf16[32,128], index: 0, kind: input, shape index: {}]
  %s1 = inlined_call_operand.vmem [shape: bf16[128,128], index: 1, kind: input, shape index: {}]
  %s2 = inlined_call_operand.vmem [shape: bf16[32,128], index: 2, kind: output, shape index: {0}]
  %s3 = inlined_call_operand.vmem [shape: f32[8,128], index: 3, kind: output, shape index: {1}]
  %4 = xla_tuple %s2, %s3
  %s5 = sld [smem:[#allocation0]]
  $region34: #{resnet_generator_forward.46} parent=0
    _
  %s7 = ssub.s32 1, %s5
  %s8 = scalar_select 0, %s7, %s5
  // Predicated region
  $region2: #{resnet_generator_forward.46} parent=0 // pred_check
    _
  $region3: #{resnet_generator_forward.46} parent=0 // pred_check_branch
    %10 = sbr.rel (0) target = $region5
  $region4: #{resnet_generator_forward.46} parent=0 // pred_region
    _
  $region5: #{resnet_generator_forward.46} parent=0 // pred_fallthru
    _
  // Predicated region
  $region6: #{resnet_generator_forward.46} parent=0 // pred_check
    _
  $region7: #{resnet_generator_forward.46} parent=0 // pred_check_branch
    %12 = sbr.rel (0) target = $region9
  $region8: #{resnet_generator_forward.46} parent=0 // pred_region
    _
  $region9: #{resnet_generator_forward.46} parent=0 // pred_fallthru
    _
  %p13 = scmp.eq.s32.totalorder 0, 0
  // Predicated region
  $region10: #{resnet_generator_forward.46} parent=0 // pred_check
    %p14 = pneg %p13
  $region11: #{resnet_generator_forward.46} parent=0 // pred_check_branch
    %16 = sbr.rel (%p14) target = $region13
  $region12: #{resnet_generator_forward.46} parent=0 // pred_region
    %17 = vst [vmem:[#allocation2] sm:$0xff] 0.0
    %18 = vst [vmem:[#allocation2 + $0x8] sm:$0xff] 0.0
    %19 = vst [vmem:[#allocation2 + $0x10] sm:$0xff] 0.0
    %20 = vst [vmem:[#allocation2 + $0x18] sm:$0xff] 0.0
  $region13: #{resnet_generator_forward.46} parent=0 // pred_fallthru
    _
  %v21 = vld [vmem:[#allocation2] sm:$0xff]
  %v22 = vld [vmem:[#allocation2 + $0x8] sm:$0xff]
  %v23 = vld [vmem:[#allocation2 + $0x10] sm:$0xff]
  %v24 = vld [vmem:[#allocation2 + $0x18] sm:$0xff]
  %v25 = vld [vmem:[%s0] sm:$0xf]
  %v26 = vld [vmem:[%s0 + $0x4] sm:$0xf]
  %v27 = vld [vmem:[%s0 + $0x8] sm:$0xf]
  %v28 = vld [vmem:[%s0 + $0xc] sm:$0xf]
  %v29 = vld [vmem:[%s1] sm:$0xf]
  %v30 = vld [vmem:[%s1 + $0x4] sm:$0xf]
  %v31 = vld [vmem:[%s1 + $0x8] sm:$0xf]
  %v32 = vld [vmem:[%s1 + $0xc] sm:$0xf]
  %v33 = vld [vmem:[%s1 + $0x10] sm:$0xf]
  %v34 = vld [vmem:[%s1 + $0x14] sm:$0xf]
  %v35 = vld [vmem:[%s1 + $0x18] sm:$0xf]
  %v36 = vld [vmem:[%s1 + $0x1c] sm:$0xf]
  %v37 = vld [vmem:[%s1 + $0x20] sm:$0xf]
  %v38 = vld [vmem:[%s1 + $0x24] sm:$0xf]
  %v39 = vld [vmem:[%s1 + $0x28] sm:$0xf]
  %v40 = vld [vmem:[%s1 + $0x2c] sm:$0xf]
  %v41 = vld [vmem:[%s1 + $0x30] sm:$0xf]
  %v42 = vld [vmem:[%s1 + $0x34] sm:$0xf]
  %v43 = vld [vmem:[%s1 + $0x38] sm:$0xf]
  %v44 = vld [vmem:[%s1 + $0x3c] sm:$0xf]
  %v49 = vunpack.c.l.b16 %v25
  %v50 = vunpack.c.l.b16 %v26
  %v51 = vunpack.c.l.b16 %v27
  %v52 = vunpack.c.l.b16 %v28
  %v53 = vpack.c.b16 %v50, %v49
  %v54 = vpack.c.b16 %v52, %v51
  %v73 = vunpack.c.l.b16 %v29
  %v74 = vunpack.c.l.b16 %v30
  %v75 = vunpack.c.l.b16 %v31
  %v76 = vunpack.c.l.b16 %v32
  %v77 = vunpack.c.l.b16 %v33
  %v78 = vunpack.c.l.b16 %v34
  %v79 = vunpack.c.l.b16 %v35
  %v80 = vunpack.c.l.b16 %v36
  %v81 = vunpack.c.l.b16 %v37
  %v82 = vunpack.c.l.b16 %v38
  %v83 = vunpack.c.l.b16 %v39
  %v84 = vunpack.c.l.b16 %v40
  %v85 = vunpack.c.l.b16 %v41
  %v86 = vunpack.c.l.b16 %v42
  %v87 = vunpack.c.l.b16 %v43
  %v88 = vunpack.c.l.b16 %v44
  %v89 = vpack.c.b16 %v74, %v73
  %v90 = vpack.c.b16 %v76, %v75
  %v91 = vpack.c.b16 %v78, %v77
  %v92 = vpack.c.b16 %v80, %v79
  %v93 = vpack.c.b16 %v82, %v81
  %v94 = vpack.c.b16 %v84, %v83
  %v95 = vpack.c.b16 %v86, %v85
  %v96 = vpack.c.b16 %v88, %v87
  %105 = vmatpush.bf16.msra.mxu0 %v96
  %106 = vmatpush.bf16.msra.mxu0 %v95
  %107 = vmatpush.bf16.msra.mxu0 %v94
  %108 = vmatpush.bf16.msra.mxu0 %v93
  %109 = vmatpush.bf16.msra.mxu0 %v92
  %110 = vmatpush.bf16.msra.mxu0 %v91
  %111 = vmatpush.bf16.msra.mxu0 %v90
  %112 = vmatpush.bf16.msra.mxu0 %v89
  %113 = vmatmul.bf16.gmra.mxu0 %v53
  %v114 = vpop.f32.mrf.mxu0
  %v115 = vadd.f32 0.0, %v114
  %v116 = vpop.f32.mrf.mxu0
  %v117 = vadd.f32 0.0, %v116
  %118 = vmatmul.bf16.gmra.mxu0 %v54
  %v119 = vpop.f32.mrf.mxu0
  %v120 = vadd.f32 0.0, %v119
  %v121 = vpop.f32.mrf.mxu0
  %v122 = vadd.f32 0.0, %v121
  %123 = vdwg.mxu0
  %v124 = vadd.f32 %v21, %v115
  %v125 = vadd.f32 %v22, %v117
  %v126 = vadd.f32 %v23, %v120
  %v127 = vadd.f32 %v24, %v122
  %128 = vst [vmem:[#allocation2] sm:$0xff] %v124
  %129 = vst [vmem:[#allocation2 + $0x8] sm:$0xff] %v125
  %130 = vst [vmem:[#allocation2 + $0x10] sm:$0xff] %v126
  %131 = vst [vmem:[#allocation2 + $0x18] sm:$0xff] %v127
  // Predicated region
  $region14: #{resnet_generator_forward.46} parent=0 // pred_check
    %p132 = pneg %p13
  $region15: #{resnet_generator_forward.46} parent=0 // pred_check_branch
    %134 = sbr.rel (%p132) target = $region17
  $region16: #{resnet_generator_forward.46} parent=0 // pred_region
    %v135 = vld [vmem:[#allocation2] sm:$0xff]
    %v136 = vld [vmem:[#allocation2 + $0x8] sm:$0xff]
    %v137 = vld [vmem:[#allocation2 + $0x10] sm:$0xff]
    %v138 = vld [vmem:[#allocation2 + $0x18] sm:$0xff]
    %v139 = vpack.c.bf16 %v135, %v135
    %v140 = vpack.c.bf16 %v136, %v136
    %v141 = vpack.c.bf16 %v137, %v137
    %v142 = vpack.c.bf16 %v138, %v138
    %143 = vst [vmem:[%s2] sm:$0xf] %v139
    %144 = vst [vmem:[%s2 + $0x4] sm:$0xf] %v140
    %145 = vst [vmem:[%s2 + $0x8] sm:$0xf] %v141
    %146 = vst [vmem:[%s2 + $0xc] sm:$0xf] %v142
    %v147 = vadd.f32 %v135, %v136
    %v148 = vadd.f32 %v147, %v137
    %v149 = vadd.f32 %v148, %v138
    %v150 = vrot.slane %v149, 4
    %v151 = vadd.f32 %v149, %v150
    %v152 = vrot.slane %v151, 2
    %v153 = vadd.f32 %v151, %v152
    %v154 = vrot.slane %v153, 1
    %v155 = vadd.f32 %v153, %v154
    %v156 = vmul.f32 %v135, %v135
    %v157 = vmul.f32 %v136, %v136
    %v158 = vmul.f32 %v137, %v137
    %v159 = vmul.f32 %v138, %v138
    %v160 = vadd.f32 %v156, %v157
    %v161 = vadd.f32 %v160, %v158
    %v162 = vadd.f32 %v161, %v159
    %v163 = vrot.slane %v162, 4
    %v164 = vadd.f32 %v162, %v163
    %v165 = vrot.slane %v164, 2
    %v166 = vadd.f32 %v164, %v165
    %v167 = vrot.slane %v166, 1
    %v168 = vadd.f32 %v166, %v167
    %v169 = vlaneseq
    %v170 = vshrl.u32 %v169, 7
    %vm171 = vcmp.eq.s32.totalorder %v170, 0
    %vm172 = vcmp.eq.s32.totalorder %v170, 1
    %v173 = vsel %vm172, %v168, 0.0
    %v174 = vsel %vm171, %v155, %v173
    %175 = vst [vmem:[%s3] sm:$0xff] %v174
  $region17: #{resnet_generator_forward.46} parent=0 // pred_fallthru
    _
  // Predicated region
  $region18: #{resnet_generator_forward.46} parent=0 // pred_check
    _
  $region19: #{resnet_generator_forward.46} parent=0 // pred_check_branch
    %177 = sbr.rel (0) target = $region21
  $region20: #{resnet_generator_forward.46} parent=0 // pred_region
    _
  $region21: #{resnet_generator_forward.46} parent=0 // pred_fallthru
    _
  // Predicated region
  $region22: #{resnet_generator_forward.46} parent=0 // pred_check
    _
  $region23: #{resnet_generator_forward.46} parent=0 // pred_check_branch
    %179 = sbr.rel (0) target = $region25
  $region24: #{resnet_generator_forward.46} parent=0 // pred_region
    _
  $region25: #{resnet_generator_forward.46} parent=0 // pred_fallthru
    _
  // Predicated region
  $region26: #{resnet_generator_forward.46} parent=0 // pred_check
    _
  $region27: #{resnet_generator_forward.46} parent=0 // pred_check_branch
    %181 = sbr.rel (0) target = $region29
  $region28: #{resnet_generator_forward.46} parent=0 // pred_region
    _
  $region29: #{resnet_generator_forward.46} parent=0 // pred_fallthru
    _
  // Predicated region
  $region30: #{resnet_generator_forward.46} parent=0 // pred_check
    _
  $region31: #{resnet_generator_forward.46} parent=0 // pred_check_branch
    %183 = sbr.rel (0) target = $region33
  $region32: #{resnet_generator_forward.46} parent=0 // pred_region
    _
  $region33: #{resnet_generator_forward.46} parent=0 // pred_fallthru
    _

// kernel: resnet_generator_forward.61
$region0: #{resnet_generator_forward.61}
  #allocation0 [shape = 'u32[]', space=smem, size = 0x4, offset = 0x4, fixed_abs, tag = 'smem constant byte address 0x4 - core index']
  #allocation1 [shape = 'u32[72,128]{1,0:T(1,128)}', space=vmem, size = 0x9000, scoped, tag = 'internal scratch']
  #allocation2 [shape = 'f32[256,128]{1,0:T(8,128)}', space=vmem, size = 0x20000, scoped, tag = 'scratch operand']
  %s0 = inlined_call_operand.vmem [shape: bf16[512,512], index: 0, kind: input, shape index: {}]
  %s1 = inlined_call_operand.vmem [shape: bf16[512,128], index: 1, kind: input, shape index: {}]
  %s2 = inlined_call_operand.vmem [shape: f32[1,128], index: 2, kind: input, shape index: {}]
  %s3 = inlined_call_operand.vmem [shape: f32[512,128], index: 3, kind: output, shape index: {}]
  %s4 = sld [smem:[#allocation0]]
  $region53: #{resnet_generator_forward.61} parent=0
    _
  %s6 = ssub.s32 1, %s4
  %s7 = scalar_select 0, %s6, %s4
  loop: start=0, step=1, limit=4
  $region2: #{resnet_generator_forward.61} parent=0 // loop_pre_header
    _
  $region3: #{resnet_generator_forward.61} parent=0 // loop_header
    %s9 = sphi 0, %s13
    %p10 = scmp.ge.s32.totalorder %s9, 4
    %s16 = sphi 0, %s35
    %s17 = sphi 0, %s31
    %s18 = sphi 0, %s27
    %s19 = sphi 0, %s16
    %s20 = sphi 0, %s17
    %s21 = sphi 0, %s18
    %s22 = sphi 0, %s19
    %s23 = sphi 0, %s20
    %s24 = sphi 0, %s21
    %s40 = sphi 0, %s42
    %s43 = sphi 0, %s40
    %s44 = sphi 0, %s43
    %s60 = sphi 0, %s44
    %s68 = sphi 0, %s70
    %s71 = sphi 0, %s68
    %s72 = sphi 0, %s71
    %s88 = sphi 0, %s72
    %s94 = sphi 0, %s96
    %s97 = sphi 0, %s94
    %s98 = sphi 0, %s97
    %s114 = sphi 0, %s98
    %s122 = sphi 0, %s124
    %s125 = sphi 0, %s122
    %s126 = sphi 0, %s125
    %s142 = sphi 0, %s126
  $region4: #{resnet_generator_forward.61} parent=0 // loop_header_branch
    %12 = sbr.rel (%p10) target = $region8
  $region5: #{resnet_generator_forward.61} parent=0 // loop_body
    %s14 = ssub.s32 %s9, 1
    %s15 = ssub.s32 %s9, 2
    %s25 = sadd.s32 1, %s18
    %p26 = scmp.ge.s32.totalorder %s25, 1
    %s27 = scalar_select %p26, 0, %s25
    %s28 = sadd.s32 1, %s17
    %s29 = scalar_select %p26, %s28, %s17
    %p30 = scmp.ge.s32.totalorder %s29, 1
    %s31 = scalar_select %p30, 0, %s29
    %s32 = sadd.s32 1, %s16
    %s33 = scalar_select %p30, %s32, %s16
    %p34 = scmp.ge.s32.totalorder %s33, 2
    %s35 = scalar_select %p34, 0, %s33
    %s36 = ssub.s32 %s16, %s35
    %s37 = ssub.s32 %s18, %s27
    %s38 = sor.u32 %s36, %s37
    %p39 = scmp.eq.s32.totalorder %s38, 0
    %s41 = sadd.s32 %s40, 1
    %s42 = scalar_select %p39, %s40, %s41
    %p45 = pneg %p39
    %p46 = scmp.eq.s32.totalorder %s9, 1
    %p47 = por %p45, %p46
    %p48 = scmp.ne.s32.totalorder %s40, %s43
    %p49 = scmp.eq.s32.totalorder %s9, 0
    %p50 = por %p48, %p49
    %p51 = scmp.ne.s32.totalorder %s40, %s43
    %p52 = scmp.eq.s32.totalorder %s14, 1
    %p53 = por %p51, %p52
    %p54 = scmp.ne.s32.totalorder %s43, %s44
    %p55 = scmp.eq.s32.totalorder %s14, 0
    %p56 = por %p54, %p55
    %p57 = scmp.ne.s32.totalorder %s43, %s44
    %p58 = scmp.eq.s32.totalorder %s15, 1
    %p59 = por %p57, %p58
    %p61 = scmp.ne.s32.totalorder %s44, %s60
    %p62 = scmp.eq.s32.totalorder %s15, 0
    %p63 = por %p61, %p62
    %s64 = ssub.s32 %s18, %s27
    %s65 = ssub.s32 %s17, %s31
    %s66 = sor.u32 %s64, %s65
    %p67 = scmp.eq.s32.totalorder %s66, 0
    %s69 = sadd.s32 %s68, 1
    %s70 = scalar_select %p67, %s68, %s69
    %p73 = pneg %p67
    %p74 = scmp.eq.s32.totalorder %s9, 1
    %p75 = por %p73, %p74
    %p76 = scmp.ne.s32.totalorder %s68, %s71
    %p77 = scmp.eq.s32.totalorder %s9, 0
    %p78 = por %p76, %p77
    %p79 = scmp.ne.s32.totalorder %s68, %s71
    %p80 = scmp.eq.s32.totalorder %s14, 1
    %p81 = por %p79, %p80
    %p82 = scmp.ne.s32.totalorder %s71, %s72
    %p83 = scmp.eq.s32.totalorder %s14, 0
    %p84 = por %p82, %p83
    %p85 = scmp.ne.s32.totalorder %s71, %s72
    %p86 = scmp.eq.s32.totalorder %s15, 1
    %p87 = por %p85, %p86
    %p89 = scmp.ne.s32.totalorder %s72, %s88
    %p90 = scmp.eq.s32.totalorder %s15, 0
    %p91 = por %p89, %p90
    %s92 = ssub.s32 %s17, %s31
    %p93 = scmp.eq.s32.totalorder %s92, 0
    %s95 = sadd.s32 %s94, 1
    %s96 = scalar_select %p93, %s94, %s95
    %p99 = pneg %p93
    %p100 = scmp.eq.s32.totalorder %s9, 1
    %p101 = por %p99, %p100
    %p102 = scmp.ne.s32.totalorder %s94, %s97
    %p103 = scmp.eq.s32.totalorder %s9, 0
    %p104 = por %p102, %p103
    %p105 = scmp.ne.s32.totalorder %s94, %s97
    %p106 = scmp.eq.s32.totalorder %s14, 1
    %p107 = por %p105, %p106
    %p108 = scmp.ne.s32.totalorder %s97, %s98
    %p109 = scmp.eq.s32.totalorder %s14, 0
    %p110 = por %p108, %p109
    %p111 = scmp.ne.s32.totalorder %s97, %s98
    %p112 = scmp.eq.s32.totalorder %s15, 1
    %p113 = por %p111, %p112
    %p115 = scmp.ne.s32.totalorder %s98, %s114
    %p116 = scmp.eq.s32.totalorder %s15, 0
    %p117 = por %p115, %p116
    %s118 = ssub.s32 %s16, %s35
    %s119 = ssub.s32 %s17, %s31
    %s120 = sor.u32 %s118, %s119
    %p121 = scmp.eq.s32.totalorder %s120, 0
    %s123 = sadd.s32 %s122, 1
    %s124 = scalar_select %p121, %s122, %s123
    %p127 = pneg %p121
    %p128 = scmp.eq.s32.totalorder %s9, 1
    %p129 = por %p127, %p128
    %p130 = scmp.ne.s32.totalorder %s122, %s125
    %p131 = scmp.eq.s32.totalorder %s9, 0
    %p132 = por %p130, %p131
    %p133 = scmp.ne.s32.totalorder %s122, %s125
    %p134 = scmp.eq.s32.totalorder %s14, 1
    %p135 = por %p133, %p134
    %p136 = scmp.ne.s32.totalorder %s125, %s126
    %p137 = scmp.eq.s32.totalorder %s14, 0
    %p138 = por %p136, %p137
    %p139 = scmp.ne.s32.totalorder %s125, %s126
    %p140 = scmp.eq.s32.totalorder %s15, 1
    %p141 = por %p139, %p140
    %p143 = scmp.ne.s32.totalorder %s126, %s142
    %p144 = scmp.eq.s32.totalorder %s15, 0
    %p145 = por %p143, %p144
    %p146 = scmp.le.s32.totalorder 1, %s9
    %p147 = scmp.lt.s32.totalorder %s9, 3
    %p148 = pnand %p146, %p147
    %p149 = pneg %p148
    // Predicated region
    $region9: #{resnet_generator_forward.61} parent=5 // pred_check
      _
    $region10: #{resnet_generator_forward.61} parent=5 // pred_check_branch
      %151 = sbr.rel (%p148) target = $region12
    $region11: #{resnet_generator_forward.61} parent=5 // pred_region
      %s152 = ssub.s32 %s9, 1
      // Predicated region
      $region13: #{resnet_generator_forward.61} parent=11 // pred_check
        %p153 = pneg %p84
      $region14: #{resnet_generator_forward.61} parent=11 // pred_check_branch
        %155 = sbr.rel (%p153) target = $region16
      $region15: #{resnet_generator_forward.61} parent=11 // pred_region
        %s156 = smul.u32 64, %s21
        %p157 = scmp.lt.s32.totalorder %s156, 63
        %s158 = scalar_select %p157, %s156, 63
        %p159 = scmp.lt.s32.totalorder %s20, 0
        %s160 = scalar_select %p159, %s20, 0
        %s161 = sadd.s32 %s160, %s158
        %s162 = smul.addr %s161, 4
        %s163 = scalar_lea.vmem %s1, %s162
        %s164 = smul.u32 64, %s21
      $region16: #{resnet_generator_forward.61} parent=11 // pred_fallthru
        _
      // Predicated region
      $region17: #{resnet_generator_forward.61} parent=11 // pred_check
        %p165 = pneg %p110
      $region18: #{resnet_generator_forward.61} parent=11 // pred_check_branch
        %167 = sbr.rel (%p165) target = $region20
      $region19: #{resnet_generator_forward.61} parent=11 // pred_region
        %p168 = scmp.lt.s32.totalorder %s20, 0
        %s169 = scalar_select %p168, %s20, 0
        %s170 = scalar_lea.vmem %s2, %s169
      $region20: #{resnet_generator_forward.61} parent=11 // pred_fallthru
        _
    $region12: #{resnet_generator_forward.61} parent=5 // pred_fallthru
      _
    %p171 = scmp.lt.s32.totalorder %s9, 2
    // Predicated region
    $region21: #{resnet_generator_forward.61} parent=5 // pred_check
      %p172 = pneg %p171
    $region22: #{resnet_generator_forward.61} parent=5 // pred_check_branch
      %174 = sbr.rel (%p172) target = $region24
    $region23: #{resnet_generator_forward.61} parent=5 // pred_region
      // Predicated region
      $region25: #{resnet_generator_forward.61} parent=23 // pred_check
        %p175 = pneg %p50
      $region26: #{resnet_generator_forward.61} parent=23 // pred_check_branch
        %177 = sbr.rel (%p175) target = $region28
      $region27: #{resnet_generator_forward.61} parent=23 // pred_region
        %s178 = smul.u32 32, %s16
        %s179 = smul.u32 4, %s18
        %p180 = scmp.lt.s32.totalorder %s178, 63
        %s181 = scalar_select %p180, %s178, 63
        %p182 = scmp.lt.s32.totalorder %s179, 3
        %s183 = scalar_select %p182, %s179, 3
        %s184 = smul.addr %s181, 4
        %s185 = sadd.s32 %s183, %s184
        %s186 = smul.addr %s185, 4
        %s187 = scalar_lea.vmem %s0, %s186
        %s188 = smul.u32 32, %s16
        %s189 = smul.u32 4, %s18
      $region28: #{resnet_generator_forward.61} parent=23 // pred_fallthru
        _
    $region24: #{resnet_generator_forward.61} parent=5 // pred_fallthru
      _
    %p190 = scmp.le.s32.totalorder 1, %s9
    %p191 = scmp.lt.s32.totalorder %s9, 3
    %p192 = pnand %p190, %p191
    %p193 = pneg %p192
    // Predicated region
    $region29: #{resnet_generator_forward.61} parent=5 // pred_check
      _
    $region30: #{resnet_generator_forward.61} parent=5 // pred_check_branch
      %195 = sbr.rel (%p192) target = $region32
    $region31: #{resnet_generator_forward.61} parent=5 // pred_region
      %s196 = ssub.s32 %s9, 1
      %s197 = smul.u32 32, %s19
      %s198 = smul.u32 4, %s21
      %p199 = scmp.lt.s32.totalorder %s197, 63
      %s200 = scalar_select %p199, %s197, 63
      %p201 = scmp.lt.s32.totalorder %s198, 3
      %s202 = scalar_select %p201, %s198, 3
      %s203 = smul.addr %s200, 4
      %s204 = sadd.s32 %s202, %s203
      %s205 = smul.addr %s204, 4
      %s206 = scalar_lea.vmem %s0, %s205
      %p207 = pneg %p56
      %p208 = pneg %p53
      %s209 = smul.u32 64, %s21
      %p210 = scmp.lt.s32.totalorder %s209, 63
      %s211 = scalar_select %p210, %s209, 63
      %p212 = scmp.lt.s32.totalorder %s20, 0
      %s213 = scalar_select %p212, %s20, 0
      %s214 = sadd.s32 %s213, %s211
      %s215 = smul.addr %s214, 4
      %s216 = scalar_lea.vmem %s1, %s215
      %p217 = pneg %p84
      %p218 = pneg %p81
      %p219 = scmp.lt.s32.totalorder %s20, 0
      %s220 = scalar_select %p219, %s20, 0
      %s221 = scalar_lea.vmem %s2, %s220
      %p222 = pneg %p110
      %p223 = pneg %p107
      %p224 = pneg %p138
      %p225 = pneg %p135
      %s226 = smul.u32 32, %s19
      %p227 = scmp.lt.s32.totalorder %s226, 63
      %s228 = scalar_select %p227, %s226, 63
      %p229 = scmp.lt.s32.totalorder %s20, 0
      %s230 = scalar_select %p229, %s20, 0
      %s231 = sadd.s32 %s230, %s228
      %s232 = smul.addr %s231, 8
      %s233 = scalar_lea.vmem %s3, %s232
      %s234 = smul.u32 32, %s19
      %s235 = smul.u32 4, %s21
      %p236 = scmp.lt.s32.totalorder %s234, 63
      %s237 = scalar_select %p236, %s234, 63
      %p238 = scmp.lt.s32.totalorder %s235, 3
      %s239 = scalar_select %p238, %s235, 3
      %s240 = smul.addr %s237, 4
      %s241 = sadd.s32 %s239, %s240
      %s242 = smul.addr %s241, 4
      %s243 = scalar_lea.vmem %s0, %s242
      %s244 = smul.u32 32, %s19
      %s245 = smul.u32 4, %s21
      %s246 = smul.u32 64, %s21
      %p247 = scmp.lt.s32.totalorder %s246, 63
      %s248 = scalar_select %p247, %s246, 63
      %p249 = scmp.lt.s32.totalorder %s20, 0
      %s250 = scalar_select %p249, %s20, 0
      %s251 = sadd.s32 %s250, %s248
      %s252 = smul.addr %s251, 4
      %s253 = scalar_lea.vmem %s1, %s252
      %s254 = smul.u32 64, %s21
      %p255 = scmp.lt.s32.totalorder %s20, 0
      %s256 = scalar_select %p255, %s20, 0
      %s257 = scalar_lea.vmem %s2, %s256
      %s258 = smul.u32 32, %s19
      %p259 = scmp.lt.s32.totalorder %s258, 63
      %s260 = scalar_select %p259, %s258, 63
      %p261 = scmp.lt.s32.totalorder %s20, 0
      %s262 = scalar_select %p261, %s20, 0
      %s263 = sadd.s32 %s262, %s260
      %s264 = smul.addr %s263, 8
      %s265 = scalar_lea.vmem %s3, %s264
      %s266 = smul.u32 32, %s19
      %p267 = scmp.eq.s32.totalorder %s21, 0
      // Predicated region
      $region33: #{resnet_generator_forward.61} parent=31 // pred_check
        %p268 = pneg %p267
      $region34: #{resnet_generator_forward.61} parent=31 // pred_check_branch
        %270 = sbr.rel (%p268) target = $region36
      $region35: #{resnet_generator_forward.61} parent=31 // pred_region
        %271 = vst [vmem:[#allocation2] sm:$0xff] 0.0
        %272 = vst [vmem:[#allocation2 + $0x8] sm:$0xff] 0.0
        %273 = vst [vmem:[#allocation2 + $0x10] sm:$0xff] 0.0
        %274 = vst [vmem:[#allocation2 + $0x18] sm:$0xff] 0.0
        %275 = vst [vmem:[#allocation2 + $0x20] sm:$0xff] 0.0
        %276 = vst [vmem:[#allocation2 + $0x28] sm:$0xff] 0.0
        %277 = vst [vmem:[#allocation2 + $0x30] sm:$0xff] 0.0
        %278 = vst [vmem:[#allocation2 + $0x38] sm:$0xff] 0.0
        %279 = vst [vmem:[#allocation2 + $0x40] sm:$0xff] 0.0
        %280 = vst [vmem:[#allocation2 + $0x48] sm:$0xff] 0.0
        %281 = vst [vmem:[#allocation2 + $0x50] sm:$0xff] 0.0
        %282 = vst [vmem:[#allocation2 + $0x58] sm:$0xff] 0.0
        %283 = vst [vmem:[#allocation2 + $0x60] sm:$0xff] 0.0
        %284 = vst [vmem:[#allocation2 + $0x68] sm:$0xff] 0.0
        %285 = vst [vmem:[#allocation2 + $0x70] sm:$0xff] 0.0
        %286 = vst [vmem:[#allocation2 + $0x78] sm:$0xff] 0.0
        %287 = vst [vmem:[#allocation2 + $0x80] sm:$0xff] 0.0
        %288 = vst [vmem:[#allocation2 + $0x88] sm:$0xff] 0.0
        %289 = vst [vmem:[#allocation2 + $0x90] sm:$0xff] 0.0
        %290 = vst [vmem:[#allocation2 + $0x98] sm:$0xff] 0.0
        %291 = vst [vmem:[#allocation2 + $0xa0] sm:$0xff] 0.0
        %292 = vst [vmem:[#allocation2 + $0xa8] sm:$0xff] 0.0
        %293 = vst [vmem:[#allocation2 + $0xb0] sm:$0xff] 0.0
        %294 = vst [vmem:[#allocation2 + $0xb8] sm:$0xff] 0.0
        %295 = vst [vmem:[#allocation2 + $0xc0] sm:$0xff] 0.0
        %296 = vst [vmem:[#allocation2 + $0xc8] sm:$0xff] 0.0
        %297 = vst [vmem:[#allocation2 + $0xd0] sm:$0xff] 0.0
        %298 = vst [vmem:[#allocation2 + $0xd8] sm:$0xff] 0.0
        %299 = vst [vmem:[#allocation2 + $0xe0] sm:$0xff] 0.0
        %300 = vst [vmem:[#allocation2 + $0xe8] sm:$0xff] 0.0
        %301 = vst [vmem:[#allocation2 + $0xf0] sm:$0xff] 0.0
        %302 = vst [vmem:[#allocation2 + $0xf8] sm:$0xff] 0.0
      $region36: #{resnet_generator_forward.61} parent=31 // pred_fallthru
        _
      %v303 = vld [vmem:[#allocation2] sm:$0xff]
      %v304 = vld [vmem:[#allocation2 + $0x8] sm:$0xff]
      %v305 = vld [vmem:[#allocation2 + $0x10] sm:$0xff]
      %v306 = vld [vmem:[#allocation2 + $0x18] sm:$0xff]
      %v307 = vld [vmem:[#allocation2 + $0x20] sm:$0xff]
      %v308 = vld [vmem:[#allocation2 + $0x28] sm:$0xff]
      %v309 = vld [vmem:[#allocation2 + $0x30] sm:$0xff]
      %v310 = vld [vmem:[#allocation2 + $0x38] sm:$0xff]
      %v311 = vld [vmem:[#allocation2 + $0x40] sm:$0xff]
      %v312 = vld [vmem:[#allocation2 + $0x48] sm:$0xff]
      %v313 = vld [vmem:[#allocation2 + $0x50] sm:$0xff]
      %v314 = vld [vmem:[#allocation2 + $0x58] sm:$0xff]
      %v315 = vld [vmem:[#allocation2 + $0x60] sm:$0xff]
      %v316 = vld [vmem:[#allocation2 + $0x68] sm:$0xff]
      %v317 = vld [vmem:[#allocation2 + $0x70] sm:$0xff]
      %v318 = vld [vmem:[#allocation2 + $0x78] sm:$0xff]
      %v319 = vld [vmem:[#allocation2 + $0x80] sm:$0xff]
      %v320 = vld [vmem:[#allocation2 + $0x88] sm:$0xff]
      %v321 = vld [vmem:[#allocation2 + $0x90] sm:$0xff]
      %v322 = vld [vmem:[#allocation2 + $0x98] sm:$0xff]
      %v323 = vld [vmem:[#allocation2 + $0xa0] sm:$0xff]
      %v324 = vld [vmem:[#allocation2 + $0xa8] sm:$0xff]
      %v325 = vld [vmem:[#allocation2 + $0xb0] sm:$0xff]
      %v326 = vld [vmem:[#allocation2 + $0xb8] sm:$0xff]
      %v327 = vld [vmem:[#allocation2 + $0xc0] sm:$0xff]
      %v328 = vld [vmem:[#allocation2 + $0xc8] sm:$0xff]
      %v329 = vld [vmem:[#allocation2 + $0xd0] sm:$0xff]
      %v330 = vld [vmem:[#allocation2 + $0xd8] sm:$0xff]
      %v331 = vld [vmem:[#allocation2 + $0xe0] sm:$0xff]
      %v332 = vld [vmem:[#allocation2 + $0xe8] sm:$0xff]
      %v333 = vld [vmem:[#allocation2 + $0xf0] sm:$0xff]
      %v334 = vld [vmem:[#allocation2 + $0xf8] sm:$0xff]
      %v335 = vld [vmem:[%s243] sm:$0xff]
      %v336 = vld [vmem:[%s243 + $0x8] sm:$0xff]
      %v337 = vld [vmem:[%s243 + $0x10] sm:$0xff]
      %v338 = vld [vmem:[%s243 + $0x18] sm:$0xff]
      %v339 = vld [vmem:[%s243 + $0x20] sm:$0xff]
      %v340 = vld [vmem:[%s243 + $0x28] sm:$0xff]
      %v341 = vld [vmem:[%s243 + $0x30] sm:$0xff]
      %v342 = vld [vmem:[%s243 + $0x38] sm:$0xff]
      %v343 = vld [vmem:[%s243 + $0x40] sm:$0xff]
      %v344 = vld [vmem:[%s243 + $0x48] sm:$0xff]
      %v345 = vld [vmem:[%s243 + $0x50] sm:$0xff]
      %v346 = vld [vmem:[%s243 + $0x58] sm:$0xff]
      %v347 = vld [vmem:[%s243 + $0x60] sm:$0xff]
      %v348 = vld [vmem:[%s243 + $0x68] sm:$0xff]
      %v349 = vld [vmem:[%s243 + $0x70] sm:$0xff]
      %v350 = vld [vmem:[%s243 + $0x78] sm:$0xff]
      %v351 = vld [vmem:[%s243 + $0x80] sm:$0xff]
      %v352 = vld [vmem:[%s243 + $0x88] sm:$0xff]
      %v353 = vld [vmem:[%s243 + $0x90] sm:$0xff]
      %v354 = vld [vmem:[%s243 + $0x98] sm:$0xff]
      %v355 = vld [vmem:[%s243 + $0xa0] sm:$0xff]
      %v356 = vld [vmem:[%s243 + $0xa8] sm:$0xff]
      %v357 = vld [vmem:[%s243 + $0xb0] sm:$0xff]
      %v358 = vld [vmem:[%s243 + $0xb8] sm:$0xff]
      %v359 = vld [vmem:[%s243 + $0xc0] sm:$0xff]
      %v360 = vld [vmem:[%s243 + $0xc8] sm:$0xff]
      %v361 = vld [vmem:[%s243 + $0xd0] sm:$0xff]
      %v362 = vld [vmem:[%s243 + $0xd8] sm:$0xff]
      %v363 = vld [vmem:[%s243 + $0xe0] sm:$0xff]
      %v364 = vld [vmem:[%s243 + $0xe8] sm:$0xff]
      %v365 = vld [vmem:[%s243 + $0xf0] sm:$0xff]
      %v366 = vld [vmem:[%s243 + $0xf8] sm:$0xff]
      %v367 = vld [vmem:[%s243 + $0x100] sm:$0xff]
      %v368 = vld [vmem:[%s243 + $0x108] sm:$0xff]
      %v369 = vld [vmem:[%s243 + $0x110] sm:$0xff]
      %v370 = vld [vmem:[%s243 + $0x118] sm:$0xff]
      %v371 = vld [vmem:[%s243 + $0x120] sm:$0xff]
      %v372 = vld [vmem:[%s243 + $0x128] sm:$0xff]
      %v373 = vld [vmem:[%s243 + $0x130] sm:$0xff]
      %v374 = vld [vmem:[%s243 + $0x138] sm:$0xff]
      %v375 = vld [vmem:[%s243 + $0x140] sm:$0xff]
      %v376 = vld [vmem:[%s243 + $0x148] sm:$0xff]
      %v377 = vld [vmem:[%s243 + $0x150] sm:$0xff]
      %v378 = vld [vmem:[%s243 + $0x158] sm:$0xff]
      %v379 = vld [vmem:[%s243 + $0x160] sm:$0xff]
      %v380 = vld [vmem:[%s243 + $0x168] sm:$0xff]
      %v381 = vld [vmem:[%s243 + $0x170] sm:$0xff]
      %v382 = vld [vmem:[%s243 + $0x178] sm:$0xff]
      %v383 = vld [vmem:[%s243 + $0x180] sm:$0xff]
      %v384 = vld [vmem:[%s243 + $0x188] sm:$0xff]
      %v385 = vld [vmem:[%s243 + $0x190] sm:$0xff]
      %v386 = vld [vmem:[%s243 + $0x198] sm:$0xff]
      %v387 = vld [vmem:[%s243 + $0x1a0] sm:$0xff]
      %v388 = vld [vmem:[%s243 + $0x1a8] sm:$0xff]
      %v389 = vld [vmem:[%s243 + $0x1b0] sm:$0xff]
      %v390 = vld [vmem:[%s243 + $0x1b8] sm:$0xff]
      %v391 = vld [vmem:[%s243 + $0x1c0] sm:$0xff]
      %v392 = vld [vmem:[%s243 + $0x1c8] sm:$0xff]
      %v393 = vld [vmem:[%s243 + $0x1d0] sm:$0xff]
      %v394 = vld [vmem:[%s243 + $0x1d8] sm:$0xff]
      %v395 = vld [vmem:[%s243 + $0x1e0] sm:$0xff]
      %v396 = vld [vmem:[%s243 + $0x1e8] sm:$0xff]
      %v397 = vld [vmem:[%s243 + $0x1f0] sm:$0xff]
      %v398 = vld [vmem:[%s243 + $0x1f8] sm:$0xff]
      %v399 = vld [vmem:[%s253] sm:$0xf]
      %v400 = vld [vmem:[%s253 + $0x4] sm:$0xf]
      %v401 = vld [vmem:[%s253 + $0x8] sm:$0xf]
      %v402 = vld [vmem:[%s253 + $0xc] sm:$0xf]
      %v403 = vld [vmem:[%s253 + $0x10] sm:$0xf]
      %v404 = vld [vmem:[%s253 + $0x14] sm:$0xf]
      %v405 = vld [vmem:[%s253 + $0x18] sm:$0xf]
      %v406 = vld [vmem:[%s253 + $0x1c] sm:$0xf]
      %v407 = vld [vmem:[%s253 + $0x20] sm:$0xf]
      %v408 = vld [vmem:[%s253 + $0x24] sm:$0xf]
      %v409 = vld [vmem:[%s253 + $0x28] sm:$0xf]
      %v410 = vld [vmem:[%s253 + $0x2c] sm:$0xf]
      %v411 = vld [vmem:[%s253 + $0x30] sm:$0xf]
      %v412 = vld [vmem:[%s253 + $0x34] sm:$0xf]
      %v413 = vld [vmem:[%s253 + $0x38] sm:$0xf]
      %v414 = vld [vmem:[%s253 + $0x3c] sm:$0xf]
      %v415 = vld [vmem:[%s253 + $0x40] sm:$0xf]
      %v416 = vld [vmem:[%s253 + $0x44] sm:$0xf]
      %v417 = vld [vmem:[%s253 + $0x48] sm:$0xf]
      %v418 = vld [vmem:[%s253 + $0x4c] sm:$0xf]
      %v419 = vld [vmem:[%s253 + $0x50] sm:$0xf]
      %v420 = vld [vmem:[%s253 + $0x54] sm:$0xf]
      %v421 = vld [vmem:[%s253 + $0x58] sm:$0xf]
      %v422 = vld [vmem:[%s253 + $0x5c] sm:$0xf]
      %v423 = vld [vmem:[%s253 + $0x60] sm:$0xf]
      %v424 = vld [vmem:[%s253 + $0x64] sm:$0xf]
      %v425 = vld [vmem:[%s253 + $0x68] sm:$0xf]
      %v426 = vld [vmem:[%s253 + $0x6c] sm:$0xf]
      %v427 = vld [vmem:[%s253 + $0x70] sm:$0xf]
      %v428 = vld [vmem:[%s253 + $0x74] sm:$0xf]
      %v429 = vld [vmem:[%s253 + $0x78] sm:$0xf]
      %v430 = vld [vmem:[%s253 + $0x7c] sm:$0xf]
      %v431 = vld [vmem:[%s253 + $0x80] sm:$0xf]
      %v432 = vld [vmem:[%s253 + $0x84] sm:$0xf]
      %v433 = vld [vmem:[%s253 + $0x88] sm:$0xf]
      %v434 = vld [vmem:[%s253 + $0x8c] sm:$0xf]
      %v435 = vld [vmem:[%s253 + $0x90] sm:$0xf]
      %v436 = vld [vmem:[%s253 + $0x94] sm:$0xf]
      %v437 = vld [vmem:[%s253 + $0x98] sm:$0xf]
      %v438 = vld [vmem:[%s253 + $0x9c] sm:$0xf]
      %v439 = vld [vmem:[%s253 + $0xa0] sm:$0xf]
      %v440 = vld [vmem:[%s253 + $0xa4] sm:$0xf]
      %v441 = vld [vmem:[%s253 + $0xa8] sm:$0xf]
      %v442 = vld [vmem:[%s253 + $0xac] sm:$0xf]
      %v443 = vld [vmem:[%s253 + $0xb0] sm:$0xf]
      %v444 = vld [vmem:[%s253 + $0xb4] sm:$0xf]
      %v445 = vld [vmem:[%s253 + $0xb8] sm:$0xf]
      %v446 = vld [vmem:[%s253 + $0xbc] sm:$0xf]
      %v447 = vld [vmem:[%s253 + $0xc0] sm:$0xf]
      %v448 = vld [vmem:[%s253 + $0xc4] sm:$0xf]
      %v449 = vld [vmem:[%s253 + $0xc8] sm:$0xf]
      %v450 = vld [vmem:[%s253 + $0xcc] sm:$0xf]
      %v451 = vld [vmem:[%s253 + $0xd0] sm:$0xf]
      %v452 = vld [vmem:[%s253 + $0xd4] sm:$0xf]
      %v453 = vld [vmem:[%s253 + $0xd8] sm:$0xf]
      %v454 = vld [vmem:[%s253 + $0xdc] sm:$0xf]
      %v455 = vld [vmem:[%s253 + $0xe0] sm:$0xf]
      %v456 = vld [vmem:[%s253 + $0xe4] sm:$0xf]
      %v457 = vld [vmem:[%s253 + $0xe8] sm:$0xf]
      %v458 = vld [vmem:[%s253 + $0xec] sm:$0xf]
      %v459 = vld [vmem:[%s253 + $0xf0] sm:$0xf]
      %v460 = vld [vmem:[%s253 + $0xf4] sm:$0xf]
      %v461 = vld [vmem:[%s253 + $0xf8] sm:$0xf]
      %v462 = vld [vmem:[%s253 + $0xfc] sm:$0xf]
      %v527 = vunpack.c.l.b16 %v335
      %v528 = vunpack.c.h.b16 %v335
      %v529 = vunpack.c.l.b16 %v336
      %v530 = vunpack.c.h.b16 %v336
      %v531 = vunpack.c.l.b16 %v337
      %v532 = vunpack.c.h.b16 %v337
      %v533 = vunpack.c.l.b16 %v338
      %v534 = vunpack.c.h.b16 %v338
      %v535 = vunpack.c.l.b16 %v339
      %v536 = vunpack.c.h.b16 %v339
      %v537 = vunpack.c.l.b16 %v340
      %v538 = vunpack.c.h.b16 %v340
      %v539 = vunpack.c.l.b16 %v341
      %v540 = vunpack.c.h.b16 %v341
      %v541 = vunpack.c.l.b16 %v342
      %v542 = vunpack.c.h.b16 %v342
      %v543 = vunpack.c.l.b16 %v343
      %v544 = vunpack.c.h.b16 %v343
      %v545 = vunpack.c.l.b16 %v344
      %v546 = vunpack.c.h.b16 %v344
      %v547 = vunpack.c.l.b16 %v345
      %v548 = vunpack.c.h.b16 %v345
      %v549 = vunpack.c.l.b16 %v346
      %v550 = vunpack.c.h.b16 %v346
      %v551 = vunpack.c.l.b16 %v347
      %v552 = vunpack.c.h.b16 %v347
      %v553 = vunpack.c.l.b16 %v348
      %v554 = vunpack.c.h.b16 %v348
      %v555 = vunpack.c.l.b16 %v349
      %v556 = vunpack.c.h.b16 %v349
      %v557 = vunpack.c.l.b16 %v350
      %v558 = vunpack.c.h.b16 %v350
      %v559 = vunpack.c.l.b16 %v351
      %v560 = vunpack.c.h.b16 %v351
      %v561 = vunpack.c.l.b16 %v352
      %v562 = vunpack.c.h.b16 %v352
      %v563 = vunpack.c.l.b16 %v353
      %v564 = vunpack.c.h.b16 %v353
      %v565 = vunpack.c.l.b16 %v354
      %v566 = vunpack.c.h.b16 %v354
      %v567 = vunpack.c.l.b16 %v355
      %v568 = vunpack.c.h.b16 %v355
      %v569 = vunpack.c.l.b16 %v356
      %v570 = vunpack.c.h.b16 %v356
      %v571 = vunpack.c.l.b16 %v357
      %v572 = vunpack.c.h.b16 %v357
      %v573 = vunpack.c.l.b16 %v358
      %v574 = vunpack.c.h.b16 %v358
      %v575 = vunpack.c.l.b16 %v359
      %v576 = vunpack.c.h.b16 %v359
      %v577 = vunpack.c.l.b16 %v360
      %v578 = vunpack.c.h.b16 %v360
      %v579 = vunpack.c.l.b16 %v361
      %v580 = vunpack.c.h.b16 %v361
      %v581 = vunpack.c.l.b16 %v362
      %v582 = vunpack.c.h.b16 %v362
      %v583 = vunpack.c.l.b16 %v363
      %v584 = vunpack.c.h.b16 %v363
      %v585 = vunpack.c.l.b16 %v364
      %v586 = vunpack.c.h.b16 %v364
      %v587 = vunpack.c.l.b16 %v365
      %v588 = vunpack.c.h.b16 %v365
      %v589 = vunpack.c.l.b16 %v366
      %v590 = vunpack.c.h.b16 %v366
      %v591 = vunpack.c.l.b16 %v367
      %v592 = vunpack.c.h.b16 %v367
      %v593 = vunpack.c.l.b16 %v368
      %v594 = vunpack.c.h.b16 %v368
      %v595 = vunpack.c.l.b16 %v369
      %v596 = vunpack.c.h.b16 %v369
      %v597 = vunpack.c.l.b16 %v370
      %v598 = vunpack.c.h.b16 %v370
      %v599 = vunpack.c.l.b16 %v371
      %v600 = vunpack.c.h.b16 %v371
      %v601 = vunpack.c.l.b16 %v372
      %v602 = vunpack.c.h.b16 %v372
      %v603 = vunpack.c.l.b16 %v373
      %v604 = vunpack.c.h.b16 %v373
      %v605 = vunpack.c.l.b16 %v374
      %v606 = vunpack.c.h.b16 %v374
      %v607 = vunpack.c.l.b16 %v375
      %v608 = vunpack.c.h.b16 %v375
      %v609 = vunpack.c.l.b16 %v376
      %v610 = vunpack.c.h.b16 %v376
      %v611 = vunpack.c.l.b16 %v377
      %v612 = vunpack.c.h.b16 %v377
      %v613 = vunpack.c.l.b16 %v378
      %v614 = vunpack.c.h.b16 %v378
      %v615 = vunpack.c.l.b16 %v379
      %v616 = vunpack.c.h.b16 %v379
      %v617 = vunpack.c.l.b16 %v380
      %v618 = vunpack.c.h.b16 %v380
      %v619 = vunpack.c.l.b16 %v381
      %v620 = vunpack.c.h.b16 %v381
      %v621 = vunpack.c.l.b16 %v382
      %v622 = vunpack.c.h.b16 %v382
      %v623 = vunpack.c.l.b16 %v383
      %v624 = vunpack.c.h.b16 %v383
      %v625 = vunpack.c.l.b16 %v384
      %v626 = vunpack.c.h.b16 %v384
      %v627 = vunpack.c.l.b16 %v385
      %v628 = vunpack.c.h.b16 %v385
      %v629 = vunpack.c.l.b16 %v386
      %v630 = vunpack.c.h.b16 %v386
      %v631 = vunpack.c.l.b16 %v387
      %v632 = vunpack.c.h.b16 %v387
      %v633 = vunpack.c.l.b16 %v388
      %v634 = vunpack.c.h.b16 %v388
      %v635 = vunpack.c.l.b16 %v389
      %v636 = vunpack.c.h.b16 %v389
      %v637 = vunpack.c.l.b16 %v390
      %v638 = vunpack.c.h.b16 %v390
      %v639 = vunpack.c.l.b16 %v391
      %v640 = vunpack.c.h.b16 %v391
      %v641 = vunpack.c.l.b16 %v392
      %v642 = vunpack.c.h.b16 %v392
      %v643 = vunpack.c.l.b16 %v393
      %v644 = vunpack.c.h.b16 %v393
      %v645 = vunpack.c.l.b16 %v394
      %v646 = vunpack.c.h.b16 %v394
      %v647 = vunpack.c.l.b16 %v395
      %v648 = vunpack.c.h.b16 %v395
      %v649 = vunpack.c.l.b16 %v396
      %v650 = vunpack.c.h.b16 %v396
      %v651 = vunpack.c.l.b16 %v397
      %v652 = vunpack.c.h.b16 %v397
      %v653 = vunpack.c.l.b16 %v398
      %v654 = vunpack.c.h.b16 %v398
      %v655 = vpack.c.b16 %v531, %v527
      %v656 = vpack.c.b16 %v532, %v528
      %v657 = vpack.c.b16 %v533, %v529
      %v658 = vpack.c.b16 %v534, %v530
      %v659 = vpack.c.b16 %v539, %v535
      %v660 = vpack.c.b16 %v540, %v536
      %v661 = vpack.c.b16 %v541, %v537
      %v662 = vpack.c.b16 %v542, %v538
      %v663 = vpack.c.b16 %v547, %v543
      %v664 = vpack.c.b16 %v548, %v544
      %v665 = vpack.c.b16 %v549, %v545
      %v666 = vpack.c.b16 %v550, %v546
      %v667 = vpack.c.b16 %v555, %v551
      %v668 = vpack.c.b16 %v556, %v552
      %v669 = vpack.c.b16 %v557, %v553
      %v670 = vpack.c.b16 %v558, %v554
      %v671 = vpack.c.b16 %v563, %v559
      %v672 = vpack.c.b16 %v564, %v560
      %v673 = vpack.c.b16 %v565, %v561
      %v674 = vpack.c.b16 %v566, %v562
      %v675 = vpack.c.b16 %v571, %v567
      %v676 = vpack.c.b16 %v572, %v568
      %v677 = vpack.c.b16 %v573, %v569
      %v678 = vpack.c.b16 %v574, %v570
      %v679 = vpack.c.b16 %v579, %v575
      %v680 = vpack.c.b16 %v580, %v576
      %v681 = vpack.c.b16 %v581, %v577
      %v682 = vpack.c.b16 %v582, %v578
      %v683 = vpack.c.b16 %v587, %v583
      %v684 = vpack.c.b16 %v588, %v584
      %v685 = vpack.c.b16 %v589, %v585
      %v686 = vpack.c.b16 %v590, %v586
      %v687 = vpack.c.b16 %v595, %v591
      %v688 = vpack.c.b16 %v596, %v592
      %v689 = vpack.c.b16 %v597, %v593
      %v690 = vpack.c.b16 %v598, %v594
      %v691 = vpack.c.b16 %v603, %v599
      %v692 = vpack.c.b16 %v604, %v600
      %v693 = vpack.c.b16 %v605, %v601
      %v694 = vpack.c.b16 %v606, %v602
      %v695 = vpack.c.b16 %v611, %v607
      %v696 = vpack.c.b16 %v612, %v608
      %v697 = vpack.c.b16 %v613, %v609
      %v698 = vpack.c.b16 %v614, %v610
      %v699 = vpack.c.b16 %v619, %v615
      %v700 = vpack.c.b16 %v620, %v616
      %v701 = vpack.c.b16 %v621, %v617
      %v702 = vpack.c.b16 %v622, %v618
      %v703 = vpack.c.b16 %v627, %v623
      %v704 = vpack.c.b16 %v628, %v624
      %v705 = vpack.c.b16 %v629, %v625
      %v706 = vpack.c.b16 %v630, %v626
      %v707 = vpack.c.b16 %v635, %v631
      %v708 = vpack.c.b16 %v636, %v632
      %v709 = vpack.c.b16 %v637, %v633
      %v710 = vpack.c.b16 %v638, %v634
      %v711 = vpack.c.b16 %v643, %v639
      %v712 = vpack.c.b16 %v644, %v640
      %v713 = vpack.c.b16 %v645, %v641
      %v714 = vpack.c.b16 %v646, %v642
      %v715 = vpack.c.b16 %v651, %v647
      %v716 = vpack.c.b16 %v652, %v648
      %v717 = vpack.c.b16 %v653, %v649
      %v718 = vpack.c.b16 %v654, %v650
      %v847 = vunpack.c.l.b16 %v399
      %v848 = vunpack.c.l.b16 %v400
      %v849 = vunpack.c.l.b16 %v401
      %v850 = vunpack.c.l.b16 %v402
      %v851 = vunpack.c.l.b16 %v403
      %v852 = vunpack.c.l.b16 %v404
      %v853 = vunpack.c.l.b16 %v405
      %v854 = vunpack.c.l.b16 %v406
      %v855 = vunpack.c.l.b16 %v407
      %v856 = vunpack.c.l.b16 %v408
      %v857 = vunpack.c.l.b16 %v409
      %v858 = vunpack.c.l.b16 %v410
      %v859 = vunpack.c.l.b16 %v411
      %v860 = vunpack.c.l.b16 %v412
      %v861 = vunpack.c.l.b16 %v413
      %v862 = vunpack.c.l.b16 %v414
      %v863 = vunpack.c.l.b16 %v415
      %v864 = vunpack.c.l.b16 %v416
      %v865 = vunpack.c.l.b16 %v417
      %v866 = vunpack.c.l.b16 %v418
      %v867 = vunpack.c.l.b16 %v419
      %v868 = vunpack.c.l.b16 %v420
      %v869 = vunpack.c.l.b16 %v421
      %v870 = vunpack.c.l.b16 %v422
      %v871 = vunpack.c.l.b16 %v423
      %v872 = vunpack.c.l.b16 %v424
      %v873 = vunpack.c.l.b16 %v425
      %v874 = vunpack.c.l.b16 %v426
      %v875 = vunpack.c.l.b16 %v427
      %v876 = vunpack.c.l.b16 %v428
      %v877 = vunpack.c.l.b16 %v429
      %v878 = vunpack.c.l.b16 %v430
      %v879 = vunpack.c.l.b16 %v431
      %v880 = vunpack.c.l.b16 %v432
      %v881 = vunpack.c.l.b16 %v433
      %v882 = vunpack.c.l.b16 %v434
      %v883 = vunpack.c.l.b16 %v435
      %v884 = vunpack.c.l.b16 %v436
      %v885 = vunpack.c.l.b16 %v437
      %v886 = vunpack.c.l.b16 %v438
      %v887 = vunpack.c.l.b16 %v439
      %v888 = vunpack.c.l.b16 %v440
      %v889 = vunpack.c.l.b16 %v441
      %v890 = vunpack.c.l.b16 %v442
      %v891 = vunpack.c.l.b16 %v443
      %v892 = vunpack.c.l.b16 %v444
      %v893 = vunpack.c.l.b16 %v445
      %v894 = vunpack.c.l.b16 %v446
      %v895 = vunpack.c.l.b16 %v447
      %v896 = vunpack.c.l.b16 %v448
      %v897 = vunpack.c.l.b16 %v449
      %v898 = vunpack.c.l.b16 %v450
      %v899 = vunpack.c.l.b16 %v451
      %v900 = vunpack.c.l.b16 %v452
      %v901 = vunpack.c.l.b16 %v453
      %v902 = vunpack.c.l.b16 %v454
      %v903 = vunpack.c.l.b16 %v455
      %v904 = vunpack.c.l.b16 %v456
      %v905 = vunpack.c.l.b16 %v457
      %v906 = vunpack.c.l.b16 %v458
      %v907 = vunpack.c.l.b16 %v459
      %v908 = vunpack.c.l.b16 %v460
      %v909 = vunpack.c.l.b16 %v461
      %v910 = vunpack.c.l.b16 %v462
      %v911 = vpack.c.b16 %v848, %v847
      %v912 = vpack.c.b16 %v850, %v849
      %v913 = vpack.c.b16 %v852, %v851
      %v914 = vpack.c.b16 %v854, %v853
      %v915 = vpack.c.b16 %v856, %v855
      %v916 = vpack.c.b16 %v858, %v857
      %v917 = vpack.c.b16 %v860, %v859
      %v918 = vpack.c.b16 %v862, %v861
      %v919 = vpack.c.b16 %v864, %v863
      %v920 = vpack.c.b16 %v866, %v865
      %v921 = vpack.c.b16 %v868, %v867
      %v922 = vpack.c.b16 %v870, %v869
      %v923 = vpack.c.b16 %v872, %v871
      %v924 = vpack.c.b16 %v874, %v873
      %v925 = vpack.c.b16 %v876, %v875
      %v926 = vpack.c.b16 %v878, %v877
      %v927 = vpack.c.b16 %v880, %v879
      %v928 = vpack.c.b16 %v882, %v881
      %v929 = vpack.c.b16 %v884, %v883
      %v930 = vpack.c.b16 %v886, %v885
      %v931 = vpack.c.b16 %v888, %v887
      %v932 = vpack.c.b16 %v890, %v889
      %v933 = vpack.c.b16 %v892, %v891
      %v934 = vpack.c.b16 %v894, %v893
      %v935 = vpack.c.b16 %v896, %v895
      %v936 = vpack.c.b16 %v898, %v897
      %v937 = vpack.c.b16 %v900, %v899
      %v938 = vpack.c.b16 %v902, %v901
      %v939 = vpack.c.b16 %v904, %v903
      %v940 = vpack.c.b16 %v906, %v905
      %v941 = vpack.c.b16 %v908, %v907
      %v942 = vpack.c.b16 %v910, %v909
      %975 = vmatpush.bf16.msra.mxu0 %v918
      %976 = vmatpush.bf16.msra.mxu0 %v917
      %977 = vmatpush.bf16.msra.mxu0 %v916
      %978 = vmatpush.bf16.msra.mxu0 %v915
      %979 = vmatpush.bf16.msra.mxu0 %v914
      %980 = vmatpush.bf16.msra.mxu0 %v913
      %981 = vmatpush.bf16.msra.mxu0 %v912
      %982 = vmatpush.bf16.msra.mxu0 %v911
      %983 = vmatmul.bf16.gmra.mxu0 %v655
      %v984 = vpop.f32.mrf.mxu0
      %v985 = vadd.f32 0.0, %v984
      %v986 = vpop.f32.mrf.mxu0
      %v987 = vadd.f32 0.0, %v986
      %988 = vmatmul.bf16.gmra.mxu0 %v659
      %v989 = vpop.f32.mrf.mxu0
      %v990 = vadd.f32 0.0, %v989
      %v991 = vpop.f32.mrf.mxu0
      %v992 = vadd.f32 0.0, %v991
      %993 = vmatmul.bf16.gmra.mxu0 %v663
      %v994 = vpop.f32.mrf.mxu0
      %v995 = vadd.f32 0.0, %v994
      %v996 = vpop.f32.mrf.mxu0
      %v997 = vadd.f32 0.0, %v996
      %998 = vmatmul.bf16.gmra.mxu0 %v667
      %v999 = vpop.f32.mrf.mxu0
      %v1000 = vadd.f32 0.0, %v999
      %v1001 = vpop.f32.mrf.mxu0
      %v1002 = vadd.f32 0.0, %v1001
      %1003 = vmatmul.bf16.gmra.mxu0 %v671
      %v1004 = vpop.f32.mrf.mxu0
      %v1005 = vadd.f32 0.0, %v1004
      %v1006 = vpop.f32.mrf.mxu0
      %v1007 = vadd.f32 0.0, %v1006
      %1008 = vmatmul.bf16.gmra.mxu0 %v675
      %v1009 = vpop.f32.mrf.mxu0
      %v1010 = vadd.f32 0.0, %v1009
      %v1011 = vpop.f32.mrf.mxu0
      %v1012 = vadd.f32 0.0, %v1011
      %1013 = vmatmul.bf16.gmra.mxu0 %v679
      %v1014 = vpop.f32.mrf.mxu0
      %v1015 = vadd.f32 0.0, %v1014
      %v1016 = vpop.f32.mrf.mxu0
      %v1017 = vadd.f32 0.0, %v1016
      %1018 = vmatmul.bf16.gmra.mxu0 %v683
      %v1019 = vpop.f32.mrf.mxu0
      %v1020 = vadd.f32 0.0, %v1019
      %v1021 = vpop.f32.mrf.mxu0
      %v1022 = vadd.f32 0.0, %v1021
      %1023 = vmatmul.bf16.gmra.mxu0 %v687
      %v1024 = vpop.f32.mrf.mxu0
      %v1025 = vadd.f32 0.0, %v1024
      %v1026 = vpop.f32.mrf.mxu0
      %v1027 = vadd.f32 0.0, %v1026
      %1028 = vmatmul.bf16.gmra.mxu0 %v691
      %v1029 = vpop.f32.mrf.mxu0
      %v1030 = vadd.f32 0.0, %v1029
      %v1031 = vpop.f32.mrf.mxu0
      %v1032 = vadd.f32 0.0, %v1031
      %1033 = vmatmul.bf16.gmra.mxu0 %v695
      %v1034 = vpop.f32.mrf.mxu0
      %v1035 = vadd.f32 0.0, %v1034
      %v1036 = vpop.f32.mrf.mxu0
      %v1037 = vadd.f32 0.0, %v1036
      %1038 = vmatmul.bf16.gmra.mxu0 %v699
      %v1039 = vpop.f32.mrf.mxu0
      %v1040 = vadd.f32 0.0, %v1039
      %v1041 = vpop.f32.mrf.mxu0
      %v1042 = vadd.f32 0.0, %v1041
      %1043 = vmatmul.bf16.gmra.mxu0 %v703
      %v1044 = vpop.f32.mrf.mxu0
      %v1045 = vadd.f32 0.0, %v1044
      %v1046 = vpop.f32.mrf.mxu0
      %v1047 = vadd.f32 0.0, %v1046
      %1048 = vmatmul.bf16.gmra.mxu0 %v707
      %v1049 = vpop.f32.mrf.mxu0
      %v1050 = vadd.f32 0.0, %v1049
      %v1051 = vpop.f32.mrf.mxu0
      %v1052 = vadd.f32 0.0, %v1051
      %1053 = vmatmul.bf16.gmra.mxu0 %v711
      %v1054 = vpop.f32.mrf.mxu0
      %v1055 = vadd.f32 0.0, %v1054
      %v1056 = vpop.f32.mrf.mxu0
      %v1057 = vadd.f32 0.0, %v1056
      %1058 = vmatmul.bf16.gmra.mxu0 %v715
      %v1059 = vpop.f32.mrf.mxu0
      %v1060 = vadd.f32 0.0, %v1059
      %v1061 = vpop.f32.mrf.mxu0
      %v1062 = vadd.f32 0.0, %v1061
      %1063 = vdwg.mxu0
      %1064 = vmatpush.bf16.msra.mxu0 %v926
      %1065 = vmatpush.bf16.msra.mxu0 %v925
      %1066 = vmatpush.bf16.msra.mxu0 %v924
      %1067 = vmatpush.bf16.msra.mxu0 %v923
      %1068 = vmatpush.bf16.msra.mxu0 %v922
      %1069 = vmatpush.bf16.msra.mxu0 %v921
      %1070 = vmatpush.bf16.msra.mxu0 %v920
      %1071 = vmatpush.bf16.msra.mxu0 %v919
      %1072 = vmatmul.bf16.gmra.mxu0 %v656
      %v1073 = vpop.f32.mrf.mxu0
      %v1074 = vadd.f32 %v985, %v1073
      %v1075 = vpop.f32.mrf.mxu0
      %v1076 = vadd.f32 %v987, %v1075
      %1077 = vmatmul.bf16.gmra.mxu0 %v660
      %v1078 = vpop.f32.mrf.mxu0
      %v1079 = vadd.f32 %v990, %v1078
      %v1080 = vpop.f32.mrf.mxu0
      %v1081 = vadd.f32 %v992, %v1080
      %1082 = vmatmul.bf16.gmra.mxu0 %v664
      %v1083 = vpop.f32.mrf.mxu0
      %v1084 = vadd.f32 %v995, %v1083
      %v1085 = vpop.f32.mrf.mxu0
      %v1086 = vadd.f32 %v997, %v1085
      %1087 = vmatmul.bf16.gmra.mxu0 %v668
      %v1088 = vpop.f32.mrf.mxu0
      %v1089 = vadd.f32 %v1000, %v1088
      %v1090 = vpop.f32.mrf.mxu0
      %v1091 = vadd.f32 %v1002, %v1090
      %1092 = vmatmul.bf16.gmra.mxu0 %v672
      %v1093 = vpop.f32.mrf.mxu0
      %v1094 = vadd.f32 %v1005, %v1093
      %v1095 = vpop.f32.mrf.mxu0
      %v1096 = vadd.f32 %v1007, %v1095
      %1097 = vmatmul.bf16.gmra.mxu0 %v676
      %v1098 = vpop.f32.mrf.mxu0
      %v1099 = vadd.f32 %v1010, %v1098
      %v1100 = vpop.f32.mrf.mxu0
      %v1101 = vadd.f32 %v1012, %v1100
      %1102 = vmatmul.bf16.gmra.mxu0 %v680
      %v1103 = vpop.f32.mrf.mxu0
      %v1104 = vadd.f32 %v1015, %v1103
      %v1105 = vpop.f32.mrf.mxu0
      %v1106 = vadd.f32 %v1017, %v1105
      %1107 = vmatmul.bf16.gmra.mxu0 %v684
      %v1108 = vpop.f32.mrf.mxu0
      %v1109 = vadd.f32 %v1020, %v1108
      %v1110 = vpop.f32.mrf.mxu0
      %v1111 = vadd.f32 %v1022, %v1110
      %1112 = vmatmul.bf16.gmra.mxu0 %v688
      %v1113 = vpop.f32.mrf.mxu0
      %v1114 = vadd.f32 %v1025, %v1113
      %v1115 = vpop.f32.mrf.mxu0
      %v1116 = vadd.f32 %v1027, %v1115
      %1117 = vmatmul.bf16.gmra.mxu0 %v692
      %v1118 = vpop.f32.mrf.mxu0
      %v1119 = vadd.f32 %v1030, %v1118
      %v1120 = vpop.f32.mrf.mxu0
      %v1121 = vadd.f32 %v1032, %v1120
      %1122 = vmatmul.bf16.gmra.mxu0 %v696
      %v1123 = vpop.f32.mrf.mxu0
      %v1124 = vadd.f32 %v1035, %v1123
      %v1125 = vpop.f32.mrf.mxu0
      %v1126 = vadd.f32 %v1037, %v1125
      %1127 = vmatmul.bf16.gmra.mxu0 %v700
      %v1128 = vpop.f32.mrf.mxu0
      %v1129 = vadd.f32 %v1040, %v1128
      %v1130 = vpop.f32.mrf.mxu0
      %v1131 = vadd.f32 %v1042, %v1130
      %1132 = vmatmul.bf16.gmra.mxu0 %v704
      %v1133 = vpop.f32.mrf.mxu0
      %v1134 = vadd.f32 %v1045, %v1133
      %v1135 = vpop.f32.mrf.mxu0
      %v1136 = vadd.f32 %v1047, %v1135
      %1137 = vmatmul.bf16.gmra.mxu0 %v708
      %v1138 = vpop.f32.mrf.mxu0
      %v1139 = vadd.f32 %v1050, %v1138
      %v1140 = vpop.f32.mrf.mxu0
      %v1141 = vadd.f32 %v1052, %v1140
      %1142 = vmatmul.bf16.gmra.mxu0 %v712
      %v1143 = vpop.f32.mrf.mxu0
      %v1144 = vadd.f32 %v1055, %v1143
      %v1145 = vpop.f32.mrf.mxu0
      %v1146 = vadd.f32 %v1057, %v1145
      %1147 = vmatmul.bf16.gmra.mxu0 %v716
      %v1148 = vpop.f32.mrf.mxu0
      %v1149 = vadd.f32 %v1060, %v1148
      %v1150 = vpop.f32.mrf.mxu0
      %v1151 = vadd.f32 %v1062, %v1150
      %1152 = vdwg.mxu0
      %1153 = vmatpush.bf16.msra.mxu0 %v934
      %1154 = vmatpush.bf16.msra.mxu0 %v933
      %1155 = vmatpush.bf16.msra.mxu0 %v932
      %1156 = vmatpush.bf16.msra.mxu0 %v931
      %1157 = vmatpush.bf16.msra.mxu0 %v930
      %1158 = vmatpush.bf16.msra.mxu0 %v929
      %1159 = vmatpush.bf16.msra.mxu0 %v928
      %1160 = vmatpush.bf16.msra.mxu0 %v927
      %1161 = vmatmul.bf16.gmra.mxu0 %v657
      %v1162 = vpop.f32.mrf.mxu0
      %v1163 = vadd.f32 %v1074, %v1162
      %v1164 = vpop.f32.mrf.mxu0
      %v1165 = vadd.f32 %v1076, %v1164
      %1166 = vmatmul.bf16.gmra.mxu0 %v661
      %v1167 = vpop.f32.mrf.mxu0
      %v1168 = vadd.f32 %v1079, %v1167
      %v1169 = vpop.f32.mrf.mxu0
      %v1170 = vadd.f32 %v1081, %v1169
      %1171 = vmatmul.bf16.gmra.mxu0 %v665
      %v1172 = vpop.f32.mrf.mxu0
      %v1173 = vadd.f32 %v1084, %v1172
      %v1174 = vpop.f32.mrf.mxu0
      %v1175 = vadd.f32 %v1086, %v1174
      %1176 = vmatmul.bf16.gmra.mxu0 %v669
      %v1177 = vpop.f32.mrf.mxu0
      %v1178 = vadd.f32 %v1089, %v1177
      %v1179 = vpop.f32.mrf.mxu0
      %v1180 = vadd.f32 %v1091, %v1179
      %1181 = vmatmul.bf16.gmra.mxu0 %v673
      %v1182 = vpop.f32.mrf.mxu0
      %v1183 = vadd.f32 %v1094, %v1182
      %v1184 = vpop.f32.mrf.mxu0
      %v1185 = vadd.f32 %v1096, %v1184
      %1186 = vmatmul.bf16.gmra.mxu0 %v677
      %v1187 = vpop.f32.mrf.mxu0
      %v1188 = vadd.f32 %v1099, %v1187
      %v1189 = vpop.f32.mrf.mxu0
      %v1190 = vadd.f32 %v1101, %v1189
      %1191 = vmatmul.bf16.gmra.mxu0 %v681
      %v1192 = vpop.f32.mrf.mxu0
      %v1193 = vadd.f32 %v1104, %v1192
      %v1194 = vpop.f32.mrf.mxu0
      %v1195 = vadd.f32 %v1106, %v1194
      %1196 = vmatmul.bf16.gmra.mxu0 %v685
      %v1197 = vpop.f32.mrf.mxu0
      %v1198 = vadd.f32 %v1109, %v1197
      %v1199 = vpop.f32.mrf.mxu0
      %v1200 = vadd.f32 %v1111, %v1199
      %1201 = vmatmul.bf16.gmra.mxu0 %v689
      %v1202 = vpop.f32.mrf.mxu0
      %v1203 = vadd.f32 %v1114, %v1202
      %v1204 = vpop.f32.mrf.mxu0
      %v1205 = vadd.f32 %v1116, %v1204
      %1206 = vmatmul.bf16.gmra.mxu0 %v693
      %v1207 = vpop.f32.mrf.mxu0
      %v1208 = vadd.f32 %v1119, %v1207
      %v1209 = vpop.f32.mrf.mxu0
      %v1210 = vadd.f32 %v1121, %v1209
      %1211 = vmatmul.bf16.gmra.mxu0 %v697
      %v1212 = vpop.f32.mrf.mxu0
      %v1213 = vadd.f32 %v1124, %v1212
      %v1214 = vpop.f32.mrf.mxu0
      %v1215 = vadd.f32 %v1126, %v1214
      %1216 = vmatmul.bf16.gmra.mxu0 %v701
      %v1217 = vpop.f32.mrf.mxu0
      %v1218 = vadd.f32 %v1129, %v1217
      %v1219 = vpop.f32.mrf.mxu0
      %v1220 = vadd.f32 %v1131, %v1219
      %1221 = vmatmul.bf16.gmra.mxu0 %v705
      %v1222 = vpop.f32.mrf.mxu0
      %v1223 = vadd.f32 %v1134, %v1222
      %v1224 = vpop.f32.mrf.mxu0
      %v1225 = vadd.f32 %v1136, %v1224
      %1226 = vmatmul.bf16.gmra.mxu0 %v709
      %v1227 = vpop.f32.mrf.mxu0
      %v1228 = vadd.f32 %v1139, %v1227
      %v1229 = vpop.f32.mrf.mxu0
      %v1230 = vadd.f32 %v1141, %v1229
      %1231 = vmatmul.bf16.gmra.mxu0 %v713
      %v1232 = vpop.f32.mrf.mxu0
      %v1233 = vadd.f32 %v1144, %v1232
      %v1234 = vpop.f32.mrf.mxu0
      %v1235 = vadd.f32 %v1146, %v1234
      %1236 = vmatmul.bf16.gmra.mxu0 %v717
      %v1237 = vpop.f32.mrf.mxu0
      %v1238 = vadd.f32 %v1149, %v1237
      %v1239 = vpop.f32.mrf.mxu0
      %v1240 = vadd.f32 %v1151, %v1239
      %1241 = vdwg.mxu0
      %1242 = vmatpush.bf16.msra.mxu0 %v942
      %1243 = vmatpush.bf16.msra.mxu0 %v941
      %1244 = vmatpush.bf16.msra.mxu0 %v940
      %1245 = vmatpush.bf16.msra.mxu0 %v939
      %1246 = vmatpush.bf16.msra.mxu0 %v938
      %1247 = vmatpush.bf16.msra.mxu0 %v937
      %1248 = vmatpush.bf16.msra.mxu0 %v936
      %1249 = vmatpush.bf16.msra.mxu0 %v935
      %1250 = vmatmul.bf16.gmra.mxu0 %v658
      %v1251 = vpop.f32.mrf.mxu0
      %v1252 = vadd.f32 %v1163, %v1251
      %v1253 = vpop.f32.mrf.mxu0
      %v1254 = vadd.f32 %v1165, %v1253
      %1255 = vmatmul.bf16.gmra.mxu0 %v662
      %v1256 = vpop.f32.mrf.mxu0
      %v1257 = vadd.f32 %v1168, %v1256
      %v1258 = vpop.f32.mrf.mxu0
      %v1259 = vadd.f32 %v1170, %v1258
      %1260 = vmatmul.bf16.gmra.mxu0 %v666
      %v1261 = vpop.f32.mrf.mxu0
      %v1262 = vadd.f32 %v1173, %v1261
      %v1263 = vpop.f32.mrf.mxu0
      %v1264 = vadd.f32 %v1175, %v1263
      %1265 = vmatmul.bf16.gmra.mxu0 %v670
      %v1266 = vpop.f32.mrf.mxu0
      %v1267 = vadd.f32 %v1178, %v1266
      %v1268 = vpop.f32.mrf.mxu0
      %v1269 = vadd.f32 %v1180, %v1268
      %1270 = vmatmul.bf16.gmra.mxu0 %v674
      %v1271 = vpop.f32.mrf.mxu0
      %v1272 = vadd.f32 %v1183, %v1271
      %v1273 = vpop.f32.mrf.mxu0
      %v1274 = vadd.f32 %v1185, %v1273
      %1275 = vmatmul.bf16.gmra.mxu0 %v678
      %v1276 = vpop.f32.mrf.mxu0
      %v1277 = vadd.f32 %v1188, %v1276
      %v1278 = vpop.f32.mrf.mxu0
      %v1279 = vadd.f32 %v1190, %v1278
      %1280 = vmatmul.bf16.gmra.mxu0 %v682
      %v1281 = vpop.f32.mrf.mxu0
      %v1282 = vadd.f32 %v1193, %v1281
      %v1283 = vpop.f32.mrf.mxu0
      %v1284 = vadd.f32 %v1195, %v1283
      %1285 = vmatmul.bf16.gmra.mxu0 %v686
      %v1286 = vpop.f32.mrf.mxu0
      %v1287 = vadd.f32 %v1198, %v1286
      %v1288 = vpop.f32.mrf.mxu0
      %v1289 = vadd.f32 %v1200, %v1288
      %1290 = vmatmul.bf16.gmra.mxu0 %v690
      %v1291 = vpop.f32.mrf.mxu0
      %v1292 = vadd.f32 %v1203, %v1291
      %v1293 = vpop.f32.mrf.mxu0
      %v1294 = vadd.f32 %v1205, %v1293
      %1295 = vmatmul.bf16.gmra.mxu0 %v694
      %v1296 = vpop.f32.mrf.mxu0
      %v1297 = vadd.f32 %v1208, %v1296
      %v1298 = vpop.f32.mrf.mxu0
      %v1299 = vadd.f32 %v1210, %v1298
      %1300 = vmatmul.bf16.gmra.mxu0 %v698
      %v1301 = vpop.f32.mrf.mxu0
      %v1302 = vadd.f32 %v1213, %v1301
      %v1303 = vpop.f32.mrf.mxu0
      %v1304 = vadd.f32 %v1215, %v1303
      %1305 = vmatmul.bf16.gmra.mxu0 %v702
      %v1306 = vpop.f32.mrf.mxu0
      %v1307 = vadd.f32 %v1218, %v1306
      %v1308 = vpop.f32.mrf.mxu0
      %v1309 = vadd.f32 %v1220, %v1308
      %1310 = vmatmul.bf16.gmra.mxu0 %v706
      %v1311 = vpop.f32.mrf.mxu0
      %v1312 = vadd.f32 %v1223, %v1311
      %v1313 = vpop.f32.mrf.mxu0
      %v1314 = vadd.f32 %v1225, %v1313
      %1315 = vmatmul.bf16.gmra.mxu0 %v710
      %v1316 = vpop.f32.mrf.mxu0
      %v1317 = vadd.f32 %v1228, %v1316
      %v1318 = vpop.f32.mrf.mxu0
      %v1319 = vadd.f32 %v1230, %v1318
      %1320 = vmatmul.bf16.gmra.mxu0 %v714
      %v1321 = vpop.f32.mrf.mxu0
      %v1322 = vadd.f32 %v1233, %v1321
      %v1323 = vpop.f32.mrf.mxu0
      %v1324 = vadd.f32 %v1235, %v1323
      %1325 = vmatmul.bf16.gmra.mxu0 %v718
      %v1326 = vpop.f32.mrf.mxu0
      %v1327 = vadd.f32 %v1238, %v1326
      %v1328 = vpop.f32.mrf.mxu0
      %v1329 = vadd.f32 %v1240, %v1328
      %1330 = vdwg.mxu0
      %v1331 = vadd.f32 %v303, %v1252
      %v1332 = vadd.f32 %v304, %v1254
      %v1333 = vadd.f32 %v305, %v1257
      %v1334 = vadd.f32 %v306, %v1259
      %v1335 = vadd.f32 %v307, %v1262
      %v1336 = vadd.f32 %v308, %v1264
      %v1337 = vadd.f32 %v309, %v1267
      %v1338 = vadd.f32 %v310, %v1269
      %v1339 = vadd.f32 %v311, %v1272
      %v1340 = vadd.f32 %v312, %v1274
      %v1341 = vadd.f32 %v313, %v1277
      %v1342 = vadd.f32 %v314, %v1279
      %v1343 = vadd.f32 %v315, %v1282
      %v1344 = vadd.f32 %v316, %v1284
      %v1345 = vadd.f32 %v317, %v1287
      %v1346 = vadd.f32 %v318, %v1289
      %v1347 = vadd.f32 %v319, %v1292
      %v1348 = vadd.f32 %v320, %v1294
      %v1349 = vadd.f32 %v321, %v1297
      %v1350 = vadd.f32 %v322, %v1299
      %v1351 = vadd.f32 %v323, %v1302
      %v1352 = vadd.f32 %v324, %v1304
      %v1353 = vadd.f32 %v325, %v1307
      %v1354 = vadd.f32 %v326, %v1309
      %v1355 = vadd.f32 %v327, %v1312
      %v1356 = vadd.f32 %v328, %v1314
      %v1357 = vadd.f32 %v329, %v1317
      %v1358 = vadd.f32 %v330, %v1319
      %v1359 = vadd.f32 %v331, %v1322
      %v1360 = vadd.f32 %v332, %v1324
      %v1361 = vadd.f32 %v333, %v1327
      %v1362 = vadd.f32 %v334, %v1329
      %1363 = vst [vmem:[#allocation2] sm:$0xff] %v1331
      %1364 = vst [vmem:[#allocation2 + $0x8] sm:$0xff] %v1332
      %1365 = vst [vmem:[#allocation2 + $0x10] sm:$0xff] %v1333
      %1366 = vst [vmem:[#allocation2 + $0x18] sm:$0xff] %v1334
      %1367 = vst [vmem:[#allocation2 + $0x20] sm:$0xff] %v1335
      %1368 = vst [vmem:[#allocation2 + $0x28] sm:$0xff] %v1336
      %1369 = vst [vmem:[#allocation2 + $0x30] sm:$0xff] %v1337
      %1370 = vst [vmem:[#allocation2 + $0x38] sm:$0xff] %v1338
      %1371 = vst [vmem:[#allocation2 + $0x40] sm:$0xff] %v1339
      %1372 = vst [vmem:[#allocation2 + $0x48] sm:$0xff] %v1340
      %1373 = vst [vmem:[#allocation2 + $0x50] sm:$0xff] %v1341
      %1374 = vst [vmem:[#allocation2 + $0x58] sm:$0xff] %v1342
      %1375 = vst [vmem:[#allocation2 + $0x60] sm:$0xff] %v1343
      %1376 = vst [vmem:[#allocation2 + $0x68] sm:$0xff] %v1344
      %1377 = vst [vmem:[#allocation2 + $0x70] sm:$0xff] %v1345
      %1378 = vst [vmem:[#allocation2 + $0x78] sm:$0xff] %v1346
      %1379 = vst [vmem:[#allocation2 + $0x80] sm:$0xff] %v1347
      %1380 = vst [vmem:[#allocation2 + $0x88] sm:$0xff] %v1348
      %1381 = vst [vmem:[#allocation2 + $0x90] sm:$0xff] %v1349
      %1382 = vst [vmem:[#allocation2 + $0x98] sm:$0xff] %v1350
      %1383 = vst [vmem:[#allocation2 + $0xa0] sm:$0xff] %v1351
      %1384 = vst [vmem:[#allocation2 + $0xa8] sm:$0xff] %v1352
      %1385 = vst [vmem:[#allocation2 + $0xb0] sm:$0xff] %v1353
      %1386 = vst [vmem:[#allocation2 + $0xb8] sm:$0xff] %v1354
      %1387 = vst [vmem:[#allocation2 + $0xc0] sm:$0xff] %v1355
      %1388 = vst [vmem:[#allocation2 + $0xc8] sm:$0xff] %v1356
      %1389 = vst [vmem:[#allocation2 + $0xd0] sm:$0xff] %v1357
      %1390 = vst [vmem:[#allocation2 + $0xd8] sm:$0xff] %v1358
      %1391 = vst [vmem:[#allocation2 + $0xe0] sm:$0xff] %v1359
      %1392 = vst [vmem:[#allocation2 + $0xe8] sm:$0xff] %v1360
      %1393 = vst [vmem:[#allocation2 + $0xf0] sm:$0xff] %v1361
      %1394 = vst [vmem:[#allocation2 + $0xf8] sm:$0xff] %v1362
      // Predicated region
      $region37: #{resnet_generator_forward.61} parent=31 // pred_check
        %p1395 = pneg %p267
      $region38: #{resnet_generator_forward.61} parent=31 // pred_check_branch
        %1397 = sbr.rel (%p1395) target = $region40
      $region39: #{resnet_generator_forward.61} parent=31 // pred_region
        %v1398 = vld [vmem:[#allocation2] sm:$0xff]
        %v1399 = vld [vmem:[#allocation2 + $0x8] sm:$0xff]
        %v1400 = vld [vmem:[#allocation2 + $0x10] sm:$0xff]
        %v1401 = vld [vmem:[#allocation2 + $0x18] sm:$0xff]
        %v1402 = vld [vmem:[#allocation2 + $0x20] sm:$0xff]
        %v1403 = vld [vmem:[#allocation2 + $0x28] sm:$0xff]
        %v1404 = vld [vmem:[#allocation2 + $0x30] sm:$0xff]
        %v1405 = vld [vmem:[#allocation2 + $0x38] sm:$0xff]
        %v1406 = vld [vmem:[#allocation2 + $0x40] sm:$0xff]
        %v1407 = vld [vmem:[#allocation2 + $0x48] sm:$0xff]
        %v1408 = vld [vmem:[#allocation2 + $0x50] sm:$0xff]
        %v1409 = vld [vmem:[#allocation2 + $0x58] sm:$0xff]
        %v1410 = vld [vmem:[#allocation2 + $0x60] sm:$0xff]
        %v1411 = vld [vmem:[#allocation2 + $0x68] sm:$0xff]
        %v1412 = vld [vmem:[#allocation2 + $0x70] sm:$0xff]
        %v1413 = vld [vmem:[#allocation2 + $0x78] sm:$0xff]
        %v1414 = vld [vmem:[#allocation2 + $0x80] sm:$0xff]
        %v1415 = vld [vmem:[#allocation2 + $0x88] sm:$0xff]
        %v1416 = vld [vmem:[#allocation2 + $0x90] sm:$0xff]
        %v1417 = vld [vmem:[#allocation2 + $0x98] sm:$0xff]
        %v1418 = vld [vmem:[#allocation2 + $0xa0] sm:$0xff]
        %v1419 = vld [vmem:[#allocation2 + $0xa8] sm:$0xff]
        %v1420 = vld [vmem:[#allocation2 + $0xb0] sm:$0xff]
        %v1421 = vld [vmem:[#allocation2 + $0xb8] sm:$0xff]
        %v1422 = vld [vmem:[#allocation2 + $0xc0] sm:$0xff]
        %v1423 = vld [vmem:[#allocation2 + $0xc8] sm:$0xff]
        %v1424 = vld [vmem:[#allocation2 + $0xd0] sm:$0xff]
        %v1425 = vld [vmem:[#allocation2 + $0xd8] sm:$0xff]
        %v1426 = vld [vmem:[#allocation2 + $0xe0] sm:$0xff]
        %v1427 = vld [vmem:[#allocation2 + $0xe8] sm:$0xff]
        %v1428 = vld [vmem:[#allocation2 + $0xf0] sm:$0xff]
        %v1429 = vld [vmem:[#allocation2 + $0xf8] sm:$0xff]
        %v1430 = vld [vmem:[%s257] sm:$0x1]
        %v1432 = vperm.slane %v1430, 0
        %v1434 = vadd.f32 %v1398, %v1432
        %v1435 = vadd.f32 %v1399, %v1432
        %v1436 = vadd.f32 %v1400, %v1432
        %v1437 = vadd.f32 %v1401, %v1432
        %v1438 = vadd.f32 %v1402, %v1432
        %v1439 = vadd.f32 %v1403, %v1432
        %v1440 = vadd.f32 %v1404, %v1432
        %v1441 = vadd.f32 %v1405, %v1432
        %v1442 = vadd.f32 %v1406, %v1432
        %v1443 = vadd.f32 %v1407, %v1432
        %v1444 = vadd.f32 %v1408, %v1432
        %v1445 = vadd.f32 %v1409, %v1432
        %v1446 = vadd.f32 %v1410, %v1432
        %v1447 = vadd.f32 %v1411, %v1432
        %v1448 = vadd.f32 %v1412, %v1432
        %v1449 = vadd.f32 %v1413, %v1432
        %v1450 = vadd.f32 %v1414, %v1432
        %v1451 = vadd.f32 %v1415, %v1432
        %v1452 = vadd.f32 %v1416, %v1432
        %v1453 = vadd.f32 %v1417, %v1432
        %v1454 = vadd.f32 %v1418, %v1432
        %v1455 = vadd.f32 %v1419, %v1432
        %v1456 = vadd.f32 %v1420, %v1432
        %v1457 = vadd.f32 %v1421, %v1432
        %v1458 = vadd.f32 %v1422, %v1432
        %v1459 = vadd.f32 %v1423, %v1432
        %v1460 = vadd.f32 %v1424, %v1432
        %v1461 = vadd.f32 %v1425, %v1432
        %v1462 = vadd.f32 %v1426, %v1432
        %v1463 = vadd.f32 %v1427, %v1432
        %v1464 = vadd.f32 %v1428, %v1432
        %v1465 = vadd.f32 %v1429, %v1432
        %v1466 = vtanh.pop %v1434
        %v1467 = vtanh.pop %v1435
        %v1468 = vtanh.pop %v1436
        %v1469 = vtanh.pop %v1437
        %v1470 = vtanh.pop %v1438
        %v1471 = vtanh.pop %v1439
        %v1472 = vtanh.pop %v1440
        %v1473 = vtanh.pop %v1441
        %v1474 = vtanh.pop %v1442
        %v1475 = vtanh.pop %v1443
        %v1476 = vtanh.pop %v1444
        %v1477 = vtanh.pop %v1445
        %v1478 = vtanh.pop %v1446
        %v1479 = vtanh.pop %v1447
        %v1480 = vtanh.pop %v1448
        %v1481 = vtanh.pop %v1449
        %v1482 = vtanh.pop %v1450
        %v1483 = vtanh.pop %v1451
        %v1484 = vtanh.pop %v1452
        %v1485 = vtanh.pop %v1453
        %v1486 = vtanh.pop %v1454
        %v1487 = vtanh.pop %v1455
        %v1488 = vtanh.pop %v1456
        %v1489 = vtanh.pop %v1457
        %v1490 = vtanh.pop %v1458
        %v1491 = vtanh.pop %v1459
        %v1492 = vtanh.pop %v1460
        %v1493 = vtanh.pop %v1461
        %v1494 = vtanh.pop %v1462
        %v1495 = vtanh.pop %v1463
        %v1496 = vtanh.pop %v1464
        %v1497 = vtanh.pop %v1465
        %1498 = vst [vmem:[%s265] sm:$0xff] %v1466
        %1499 = vst [vmem:[%s265 + $0x8] sm:$0xff] %v1467
        %1500 = vst [vmem:[%s265 + $0x10] sm:$0xff] %v1468
        %1501 = vst [vmem:[%s265 + $0x18] sm:$0xff] %v1469
        %1502 = vst [vmem:[%s265 + $0x20] sm:$0xff] %v1470
        %1503 = vst [vmem:[%s265 + $0x28] sm:$0xff] %v1471
        %1504 = vst [vmem:[%s265 + $0x30] sm:$0xff] %v1472
        %1505 = vst [vmem:[%s265 + $0x38] sm:$0xff] %v1473
        %1506 = vst [vmem:[%s265 + $0x40] sm:$0xff] %v1474
        %1507 = vst [vmem:[%s265 + $0x48] sm:$0xff] %v1475
        %1508 = vst [vmem:[%s265 + $0x50] sm:$0xff] %v1476
        %1509 = vst [vmem:[%s265 + $0x58] sm:$0xff] %v1477
        %1510 = vst [vmem:[%s265 + $0x60] sm:$0xff] %v1478
        %1511 = vst [vmem:[%s265 + $0x68] sm:$0xff] %v1479
        %1512 = vst [vmem:[%s265 + $0x70] sm:$0xff] %v1480
        %1513 = vst [vmem:[%s265 + $0x78] sm:$0xff] %v1481
        %1514 = vst [vmem:[%s265 + $0x80] sm:$0xff] %v1482
        %1515 = vst [vmem:[%s265 + $0x88] sm:$0xff] %v1483
        %1516 = vst [vmem:[%s265 + $0x90] sm:$0xff] %v1484
        %1517 = vst [vmem:[%s265 + $0x98] sm:$0xff] %v1485
        %1518 = vst [vmem:[%s265 + $0xa0] sm:$0xff] %v1486
        %1519 = vst [vmem:[%s265 + $0xa8] sm:$0xff] %v1487
        %1520 = vst [vmem:[%s265 + $0xb0] sm:$0xff] %v1488
        %1521 = vst [vmem:[%s265 + $0xb8] sm:$0xff] %v1489
        %1522 = vst [vmem:[%s265 + $0xc0] sm:$0xff] %v1490
        %1523 = vst [vmem:[%s265 + $0xc8] sm:$0xff] %v1491
        %1524 = vst [vmem:[%s265 + $0xd0] sm:$0xff] %v1492
        %1525 = vst [vmem:[%s265 + $0xd8] sm:$0xff] %v1493
        %1526 = vst [vmem:[%s265 + $0xe0] sm:$0xff] %v1494
        %1527 = vst [vmem:[%s265 + $0xe8] sm:$0xff] %v1495
        %1528 = vst [vmem:[%s265 + $0xf0] sm:$0xff] %v1496
        %1529 = vst [vmem:[%s265 + $0xf8] sm:$0xff] %v1497
      $region40: #{resnet_generator_forward.61} parent=31 // pred_fallthru
        _
      %s1530 = smul.u32 32, %s19
      %p1531 = scmp.lt.s32.totalorder %s1530, 63
      %s1532 = scalar_select %p1531, %s1530, 63
      %p1533 = scmp.lt.s32.totalorder %s20, 0
      %s1534 = scalar_select %p1533, %s20, 0
      %s1535 = sadd.s32 %s1534, %s1532
      %s1536 = smul.addr %s1535, 8
      %s1537 = scalar_lea.vmem %s3, %s1536
      // Predicated region
      $region41: #{resnet_generator_forward.61} parent=31 // pred_check
        %p1538 = pneg %p135
      $region42: #{resnet_generator_forward.61} parent=31 // pred_check_branch
        %1540 = sbr.rel (%p1538) target = $region44
      $region43: #{resnet_generator_forward.61} parent=31 // pred_region
        %s1541 = smul.u32 32, %s19
      $region44: #{resnet_generator_forward.61} parent=31 // pred_fallthru
        _
    $region32: #{resnet_generator_forward.61} parent=5 // pred_fallthru
      _
    %p1542 = scmp.le.s32.totalorder 2, %s9
    // Predicated region
    $region45: #{resnet_generator_forward.61} parent=5 // pred_check
      %p1543 = pneg %p1542
    $region46: #{resnet_generator_forward.61} parent=5 // pred_check_branch
      %1545 = sbr.rel (%p1543) target = $region48
    $region47: #{resnet_generator_forward.61} parent=5 // pred_region
      %s1546 = ssub.s32 %s9, 2
      // Predicated region
      $region49: #{resnet_generator_forward.61} parent=47 // pred_check
        %p1547 = pneg %p141
      $region50: #{resnet_generator_forward.61} parent=47 // pred_check_branch
        %1549 = sbr.rel (%p1547) target = $region52
      $region51: #{resnet_generator_forward.61} parent=47 // pred_region
        %s1550 = smul.u32 32, %s22
        %p1551 = scmp.lt.s32.totalorder %s1550, 63
        %s1552 = scalar_select %p1551, %s1550, 63
        %p1553 = scmp.lt.s32.totalorder %s23, 0
        %s1554 = scalar_select %p1553, %s23, 0
        %s1555 = sadd.s32 %s1554, %s1552
        %s1556 = smul.addr %s1555, 8
        %s1557 = scalar_lea.vmem %s3, %s1556
      $region52: #{resnet_generator_forward.61} parent=47 // pred_fallthru
        _
    $region48: #{resnet_generator_forward.61} parent=5 // pred_fallthru
      _
  $region6: #{resnet_generator_forward.61} parent=0 // loop_footer
    %s13 = sadd.s32 1, %s9
  $region7: #{resnet_generator_forward.61} parent=0 // loop_footer_branch
    %8 = sbr.rel target = $region3
  $region8: #{resnet_generator_forward.61} parent=0 // loop_exit
    _

</llo_original>
